<compile_context>
chip_gen: v7x
topology: tpu7x:2x2x1
jax: 0.10.0
libtpu: 0.0.40
codegen_flags: <defaults>
</compile_context>

<pallas_src>
import numpy as np
import jax
import jax.numpy as jnp
from jax import lax
from jax.experimental import pallas as pl
from jax.experimental.pallas import tpu as pltpu


# ------------------------- interpolation constants ---------------------------

def _bilinear_matrix(out_size, in_size):
    """(out_size, in_size) row-stochastic matrix reproducing
    F.interpolate(mode='bilinear', align_corners=False) along one axis."""
    M = np.zeros((out_size, in_size), np.float32)
    scale = in_size / out_size
    for o in range(out_size):
        src = max((o + 0.5) * scale - 0.5, 0.0)
        i0 = min(int(np.floor(src)), in_size - 1)
        i1 = min(i0 + 1, in_size - 1)
        lam = src - i0
        M[o, i0] += 1.0 - lam
        M[o, i1] += lam
    return M


# ------------------------- in-kernel building blocks -------------------------

def _conv1x1(x_cs, w, b):
    """x_cs: (Cin, S) straight from NCHW, w: (Cin, Cout), b: (1, Cout).
    Transposed-LHS matmul -> (S, Cout); the MXU consumes the NCHW layout
    directly, so no host-side transpose is ever needed."""
    y = lax.dot_general(x_cs, w,
                        dimension_numbers=(((0,), (0,)), ((), ())),
                        preferred_element_type=jnp.float32)
    return y + b


def _upsample_dense_add(v, m_dense, y):
    """Fallback for tiny / sub-lane-aligned levels: v: (S_in, C),
    m_dense: (S_out, S_in) = kron(Mh, Mw)."""
    up = jnp.dot(m_dense, v, preferred_element_type=jnp.float32)
    return up + y


def _upsample_sep_add(v, hin, win, mw, y):
    """Separable bilinear 2x upsample (align_corners=False) of v: (hin*win, C)
    to (2*hin*2*win, C), plus y.
      W pass: batched matmul with mw (Wout, Win), batch over the H rows.
      H pass: exact 2-tap lerp (weights 0.25/0.75, edge-clamped) on the VPU.
    """
    C = v.shape[-1]
    wout = 2 * win
    # ---- W pass: t[h, wo, c] = sum_wi mw[wo, wi] * v[h, wi, c]
    v3 = v.reshape(hin, win, C)
    mw_b = jnp.broadcast_to(mw, (hin, wout, win))
    t = lax.dot_general(mw_b, v3,
                        dimension_numbers=(((2,), (1,)), ((0,), (0,))),
                        preferred_element_type=jnp.float32)      # (hin, wout, C)
    # ---- H pass: out rows 2k   = 0.25*t[k-1] + 0.75*t[k]   (edge-clamped)
    #              out rows 2k+1 = 0.75*t[k]   + 0.25*t[k+1] (edge-clamped)
    prev = jnp.concatenate([t[:1], t[:-1]], axis=0)
    nxt = jnp.concatenate([t[1:], t[-1:]], axis=0)
    even = 0.25 * prev + 0.75 * t
    odd = 0.75 * t + 0.25 * nxt
    up = jnp.concatenate([even[:, None], odd[:, None]], axis=1)  # (hin,2,wout,C)
    return up.reshape(2 * hin * wout, C) + y


def _build_kernel(level_plans):
    """level_plans: per upsample level, ('sep'|'dense', hin, win)."""
    n_levels = len(level_plans) + 1  # number of pyramid inputs (4)

    def kernel(*refs):
        x_refs = refs[0:n_levels]
        wb_refs = refs[n_levels:3 * n_levels]
        m_refs = refs[3 * n_levels:3 * n_levels + len(level_plans)]
        out_ref = refs[-1]

        def conv(i):
            return _conv1x1(x_refs[i][0], wb_refs[2 * i][...],
                            wb_refs[2 * i + 1][...])

        o = conv(0)                                     # coarsest level (res5)
        for lvl, (mode, hin, win) in enumerate(level_plans):
            y = conv(lvl + 1)
            m = m_refs[lvl][...]
            if mode == "sep":
                o = _upsample_sep_add(o, hin, win, m, y)
            else:
                o = _upsample_dense_add(o, m, y)
        # (S, C) -> (C, S): output block is already NCHW per image, so the
        # host-side reshape to (N, C, H, W) is free (no XLA transpose kernel).
        out_ref[0] = o.T

    return kernel


# --------------------------------- wrapper -----------------------------------

def _fpn_forward(x5, x4, x3, x2, params):
    """x*: NCHW float32 feature maps (coarse -> fine); params: dict of
    layer name -> (w (Cin, Cout), b (1, Cout)).  Returns NCHW (N, Cout, H, W)."""
    feats = (x5, x4, x3, x2)
    names = ("layer1", "layer2", "layer3", "layer4")
    N = x5.shape[0]
    cout = params["layer1"][0].shape[1]
    spat = [(f.shape[2], f.shape[3]) for f in feats]

    # TODO(synk): only the exact 2x-per-level FPN pyramid is supported (the
    # H-pass lerp hard-codes the 0.25/0.75 taps); arbitrary F.interpolate
    # target sizes would need per-level Mh matrices as well.
    for (ha, wa), (hb, wb) in zip(spat[:-1], spat[1:]):
        assert hb == 2 * ha and wb == 2 * wa, spat

    # Per-level upsample operators -- built at TRACE time only (under jit they
    # are baked as constants; no per-call host work / uploads).
    level_plans, mats = [], []
    for (hin, win) in spat[:-1]:
        hout, wout = 2 * hin, 2 * win
        if win % 8 == 0 and hin >= 2:
            level_plans.append(("sep", hin, win))
            mats.append(jnp.asarray(_bilinear_matrix(wout, win)))
        else:  # tiny level: keep a (small) dense kron for lowering robustness
            level_plans.append(("dense", hin, win))
            mats.append(jnp.asarray(np.kron(_bilinear_matrix(hout, hin),
                                            _bilinear_matrix(wout, win))))

    # NCHW -> (N, Cin, H*W): metadata-only reshape, no transpose.
    flats = tuple(f.reshape(f.shape[0], f.shape[1], -1) for f in feats)
    h_out, w_out = spat[-1]
    s_out = h_out * w_out

    in_arrays, in_specs = [], []
    for f in flats:
        in_arrays.append(f)
        in_specs.append(pl.BlockSpec((1,) + f.shape[1:], lambda n: (n, 0, 0)))
    for name in names:
        w, b = params[name]
        in_arrays += [w, b]
        in_specs += [pl.BlockSpec(w.shape, lambda n: (0, 0)),
                     pl.BlockSpec(b.shape, lambda n: (0, 0))]
    for m in mats:
        in_arrays.append(m)
        in_specs.append(pl.BlockSpec(m.shape, lambda n: (0, 0)))

    out = pl.pallas_call(
        _build_kernel(tuple(level_plans)),
        out_shape=jax.ShapeDtypeStruct((N, cout, s_out), jnp.float32),
        grid=(N,),
        in_specs=in_specs,
        out_specs=pl.BlockSpec((1, cout, s_out), lambda n: (n, 0, 0)),
        compiler_params=pltpu.CompilerParams(
            dimension_semantics=("parallel",),          # N>=2 keeps both v7x TCs busy
            vmem_limit_bytes=32 * 1024 * 1024),         # sized for v7x's 64 MiB VMEM
    )(*in_arrays)
    return out.reshape(N, cout, h_out, w_out)


# -------------------------------- FPNDecoder ----------------------------------

class FPNDecoder:
    """resnet18 config: out_dim=128; layer1: 512->128, layer2: 256->128,
    layer3: 128->128, layer4: 64->128 (all 1x1 convs), matching the PyTorch
    module's forward (o4 returned in NCHW)."""

    def __init__(self, key):
        self.out_dim = 128
        cins = {"layer1": 512, "layer2": 256, "layer3": 128, "layer4": 64}
        self.params = {}
        for i, (name, cin) in enumerate(cins.items()):
            kw, kb = jax.random.split(jax.random.fold_in(key, i))
            # deterministic synthetic init (no checkpoint); stored as (Cin, Cout)
            w = jax.random.normal(kw, (cin, self.out_dim), jnp.float32) * 0.02
            b = jax.random.normal(kb, (1, self.out_dim), jnp.float32) * 0.01
            self.params[name] = (w, b)
        self._forward = jax.jit(_fpn_forward)   # compiled once, cached by shape

    def __call__(self, x):
        return self._forward(x["res5"], x["res4"], x["res3"], x["res2"],
                             self.params)


# ----------------------------- pure-JAX reference -----------------------------

def _ref_forward(x, params):
    def conv(t, w, b):   # NCHW in -> NHWC out
        return jnp.einsum("nchw,co->nhwo", t, w) + b.reshape(1, 1, 1, -1)

    def upadd(a, y):
        N, Hin, Win, C = a.shape
        _, Hout, Wout, _ = y.shape
        M = jnp.asarray(np.kron(_bilinear_matrix(Hout, Hin),
                                _bilinear_matrix(Wout, Win)))
        up = jnp.einsum("pq,nqc->npc", M, a.reshape(N, Hin * Win, C))
        return up.reshape(N, Hout, Wout, C) + y

    o1 = conv(x["res5"], *params["layer1"])
    o2 = upadd(o1, conv(x["res4"], *params["layer2"]))
    o3 = upadd(o2, conv(x["res3"], *params["layer3"]))
    o4 = upadd(o3, conv(x["res2"], *params["layer4"]))
    return jnp.transpose(o4, (0, 3, 1, 2))


# ----------------------------------- main --------------------------------------

if __name__ == "__main__":
    key = jax.random.PRNGKey(0)
    k2, k3, k4, k5, kp = jax.random.split(key, 5)
    N = 2
    # small spatial sizes consistent with a resnet18 feature pyramid
    x = {
        "res2": jax.random.normal(k2, (N, 64, 32, 32), jnp.float32),
        "res3": jax.random.normal(k3, (N, 128, 16, 16), jnp.float32),
        "res4": jax.random.normal(k4, (N, 256, 8, 8), jnp.float32),
        "res5": jax.random.normal(k5, (N, 512, 4, 4), jnp.float32),
    }

    decoder = FPNDecoder(kp)
    out = jax.block_until_ready(decoder(x))
    assert out.shape == (N, 128, 32, 32), out.shape

    ref = jax.block_until_ready(_ref_forward(x, decoder.params))
    err = float(jnp.max(jnp.abs(out - ref)))
    assert jnp.allclose(out, ref, atol=2e-4, rtol=2e-4), err

    print("KERNEL_OK")
</pallas_src>

<mosaic_0001>
module attributes {stable_mosaic.version = 11 : i64} {
  func.func @kernel(%arg0: i32, %arg1: memref<1x512x16xf32, #tpu.memory_space<vmem>>, %arg2: memref<1x256x64xf32, #tpu.memory_space<vmem>>, %arg3: memref<1x128x256xf32, #tpu.memory_space<vmem>>, %arg4: memref<1x64x1024xf32, #tpu.memory_space<vmem>>, %arg5: memref<512x128xf32, #tpu.memory_space<vmem>>, %arg6: memref<1x128xf32, #tpu.memory_space<vmem>>, %arg7: memref<256x128xf32, #tpu.memory_space<vmem>>, %arg8: memref<1x128xf32, #tpu.memory_space<vmem>>, %arg9: memref<128x128xf32, #tpu.memory_space<vmem>>, %arg10: memref<1x128xf32, #tpu.memory_space<vmem>>, %arg11: memref<64x128xf32, #tpu.memory_space<vmem>>, %arg12: memref<1x128xf32, #tpu.memory_space<vmem>>, %arg13: memref<64x16xf32, #tpu.memory_space<vmem>>, %arg14: memref<16x8xf32, #tpu.memory_space<vmem>>, %arg15: memref<32x16xf32, #tpu.memory_space<vmem>>, %arg16: memref<1x128x1024xf32, #tpu.memory_space<vmem>>) attributes {dimension_semantics = [#tpu.dimension_semantics<parallel>], iteration_bounds = array<i64: 2>, scalar_prefetch = 0 : i64, scratch_operands = 0 : i64, tpu.core_type = #tpu.core_type<tc>, window_params = [{transform_indices = @transform_0, window_bounds = array<i64: 1, 512, 16>}, {transform_indices = @transform_1, window_bounds = array<i64: 1, 256, 64>}, {transform_indices = @transform_2, window_bounds = array<i64: 1, 128, 256>}, {transform_indices = @transform_3, window_bounds = array<i64: 1, 64, 1024>}, {pipeline_mode = #tpu.pipeline_mode<synchronous>, transform_indices = @transform_4, window_bounds = array<i64: 512, 128>}, {pipeline_mode = #tpu.pipeline_mode<synchronous>, transform_indices = @transform_5, window_bounds = array<i64: 1, 128>}, {pipeline_mode = #tpu.pipeline_mode<synchronous>, transform_indices = @transform_6, window_bounds = array<i64: 256, 128>}, {pipeline_mode = #tpu.pipeline_mode<synchronous>, transform_indices = @transform_7, window_bounds = array<i64: 1, 128>}, {pipeline_mode = #tpu.pipeline_mode<synchronous>, transform_indices = @transform_8, window_bounds = array<i64: 128, 128>}, {pipeline_mode = #tpu.pipeline_mode<synchronous>, transform_indices = @transform_9, window_bounds = array<i64: 1, 128>}, {pipeline_mode = #tpu.pipeline_mode<synchronous>, transform_indices = @transform_10, window_bounds = array<i64: 64, 128>}, {pipeline_mode = #tpu.pipeline_mode<synchronous>, transform_indices = @transform_11, window_bounds = array<i64: 1, 128>}, {pipeline_mode = #tpu.pipeline_mode<synchronous>, transform_indices = @transform_12, window_bounds = array<i64: 64, 16>}, {pipeline_mode = #tpu.pipeline_mode<synchronous>, transform_indices = @transform_13, window_bounds = array<i64: 16, 8>}, {pipeline_mode = #tpu.pipeline_mode<synchronous>, transform_indices = @transform_14, window_bounds = array<i64: 32, 16>}, {transform_indices = @transform_15, window_bounds = array<i64: 1, 128, 1024>}]} {
    %c0 = arith.constant 0 : index
    %c0_0 = arith.constant 0 : index
    %c0_1 = arith.constant 0 : index
    %0 = vector.load %arg1[%c0, %c0_0, %c0_1] : memref<1x512x16xf32, #tpu.memory_space<vmem>>, vector<1x512x16xf32>
    %1 = vector.shape_cast %0 : vector<1x512x16xf32> to vector<512x16xf32>
    %c0_2 = arith.constant 0 : index
    %c0_3 = arith.constant 0 : index
    %2 = vector.load %arg5[%c0_2, %c0_3] : memref<512x128xf32, #tpu.memory_space<vmem>>, vector<512x128xf32>
    %c0_4 = arith.constant 0 : index
    %c0_5 = arith.constant 0 : index
    %3 = vector.load %arg6[%c0_4, %c0_5] : memref<1x128xf32, #tpu.memory_space<vmem>>, vector<1x128xf32>
    %cst = arith.constant dense<0.000000e+00> : vector<16x128xf32>
    %4 = tpu.matmul %1, %2, %cst {dimension_numbers = #tpu.dot_dimension_numbers<[0], [0], [1], [1], [0, 1, 1, 1], [], []>} : vector<512x16xf32>, vector<512x128xf32>, vector<16x128xf32> -> vector<16x128xf32>
    %5 = vector.broadcast %3 : vector<1x128xf32> to vector<16x128xf32>
    %6 = arith.addf %4, %5 : vector<16x128xf32>
    %c0_6 = arith.constant 0 : index
    %c0_7 = arith.constant 0 : index
    %c0_8 = arith.constant 0 : index
    %7 = vector.load %arg2[%c0_6, %c0_7, %c0_8] : memref<1x256x64xf32, #tpu.memory_space<vmem>>, vector<1x256x64xf32>
    %8 = vector.shape_cast %7 : vector<1x256x64xf32> to vector<256x64xf32>
    %c0_9 = arith.constant 0 : index
    %c0_10 = arith.constant 0 : index
    %9 = vector.load %arg7[%c0_9, %c0_10] : memref<256x128xf32, #tpu.memory_space<vmem>>, vector<256x128xf32>
    %c0_11 = arith.constant 0 : index
    %c0_12 = arith.constant 0 : index
    %10 = vector.load %arg8[%c0_11, %c0_12] : memref<1x128xf32, #tpu.memory_space<vmem>>, vector<1x128xf32>
    %cst_13 = arith.constant dense<0.000000e+00> : vector<64x128xf32>
    %11 = tpu.matmul %8, %9, %cst_13 {dimension_numbers = #tpu.dot_dimension_numbers<[0], [0], [1], [1], [0, 1, 1, 1], [], []>} : vector<256x64xf32>, vector<256x128xf32>, vector<64x128xf32> -> vector<64x128xf32>
    %12 = vector.broadcast %10 : vector<1x128xf32> to vector<64x128xf32>
    %13 = arith.addf %11, %12 : vector<64x128xf32>
    %c0_14 = arith.constant 0 : index
    %c0_15 = arith.constant 0 : index
    %14 = vector.load %arg13[%c0_14, %c0_15] : memref<64x16xf32, #tpu.memory_space<vmem>>, vector<64x16xf32>
    %cst_16 = arith.constant dense<0.000000e+00> : vector<64x128xf32>
    %15 = tpu.matmul %14, %6, %cst_16 {dimension_numbers = #tpu.dot_dimension_numbers<[1], [0], [0], [1], [0, 0, 1, 1], [], []>} : vector<64x16xf32>, vector<16x128xf32>, vector<64x128xf32> -> vector<64x128xf32>
    %16 = arith.addf %15, %13 : vector<64x128xf32>
    %c0_17 = arith.constant 0 : index
    %c0_18 = arith.constant 0 : index
    %c0_19 = arith.constant 0 : index
    %17 = vector.load %arg3[%c0_17, %c0_18, %c0_19] : memref<1x128x256xf32, #tpu.memory_space<vmem>>, vector<1x128x256xf32>
    %18 = vector.shape_cast %17 : vector<1x128x256xf32> to vector<128x256xf32>
    %c0_20 = arith.constant 0 : index
    %c0_21 = arith.constant 0 : index
    %19 = vector.load %arg9[%c0_20, %c0_21] : memref<128x128xf32, #tpu.memory_space<vmem>>, vector<128x128xf32>
    %c0_22 = arith.constant 0 : index
    %c0_23 = arith.constant 0 : index
    %20 = vector.load %arg10[%c0_22, %c0_23] : memref<1x128xf32, #tpu.memory_space<vmem>>, vector<1x128xf32>
    %cst_24 = arith.constant dense<0.000000e+00> : vector<256x128xf32>
    %21 = tpu.matmul %18, %19, %cst_24 {dimension_numbers = #tpu.dot_dimension_numbers<[0], [0], [1], [1], [0, 1, 1, 1], [], []>} : vector<128x256xf32>, vector<128x128xf32>, vector<256x128xf32> -> vector<256x128xf32>
    %22 = vector.broadcast %20 : vector<1x128xf32> to vector<256x128xf32>
    %23 = arith.addf %21, %22 : vector<256x128xf32>
    %c0_25 = arith.constant 0 : index
    %c0_26 = arith.constant 0 : index
    %24 = vector.load %arg14[%c0_25, %c0_26] : memref<16x8xf32, #tpu.memory_space<vmem>>, vector<16x8xf32>
    %25 = vector.shape_cast %16 : vector<64x128xf32> to vector<8x8x128xf32>
    %26 = vector.shape_cast %24 : vector<16x8xf32> to vector<1x16x8xf32>
    %27 = vector.broadcast %26 : vector<1x16x8xf32> to vector<8x16x8xf32>
    %cst_27 = arith.constant dense<0.000000e+00> : vector<8x16x128xf32>
    %28 = tpu.matmul %27, %25, %cst_27 {dimension_numbers = #tpu.dot_dimension_numbers<[2], [1], [1], [2], [0, 0, 0, 1, 1, 2], [0], [0]>} : vector<8x16x8xf32>, vector<8x8x128xf32>, vector<8x16x128xf32> -> vector<8x16x128xf32>
    %29 = vector.extract_strided_slice %28 {offsets = [0, 0, 0], sizes = [1, 16, 128], strides = [1, 1, 1]} : vector<8x16x128xf32> to vector<1x16x128xf32>
    %30 = vector.extract_strided_slice %28 {offsets = [0, 0, 0], sizes = [7, 16, 128], strides = [1, 1, 1]} : vector<8x16x128xf32> to vector<7x16x128xf32>
    %31 = tpu.concatenate %29, %30 in 0 : vector<1x16x128xf32>, vector<7x16x128xf32> -> vector<8x16x128xf32>
    %32 = vector.extract_strided_slice %28 {offsets = [1, 0, 0], sizes = [7, 16, 128], strides = [1, 1, 1]} : vector<8x16x128xf32> to vector<7x16x128xf32>
    %33 = vector.extract_strided_slice %28 {offsets = [7, 0, 0], sizes = [1, 16, 128], strides = [1, 1, 1]} : vector<8x16x128xf32> to vector<1x16x128xf32>
    %34 = tpu.concatenate %32, %33 in 0 : vector<7x16x128xf32>, vector<1x16x128xf32> -> vector<8x16x128xf32>
    %cst_28 = arith.constant 2.500000e-01 : f32
    %35 = vector.broadcast %cst_28 : f32 to vector<8x16x128xf32>
    %36 = arith.mulf %35, %31 : vector<8x16x128xf32>
    %cst_29 = arith.constant 7.500000e-01 : f32
    %37 = vector.broadcast %cst_29 : f32 to vector<8x16x128xf32>
    %38 = arith.mulf %37, %28 : vector<8x16x128xf32>
    %39 = arith.addf %36, %38 : vector<8x16x128xf32>
    %cst_30 = arith.constant 7.500000e-01 : f32
    %40 = vector.broadcast %cst_30 : f32 to vector<8x16x128xf32>
    %41 = arith.mulf %40, %28 : vector<8x16x128xf32>
    %cst_31 = arith.constant 2.500000e-01 : f32
    %42 = vector.broadcast %cst_31 : f32 to vector<8x16x128xf32>
    %43 = arith.mulf %42, %34 : vector<8x16x128xf32>
    %44 = arith.addf %41, %43 : vector<8x16x128xf32>
    %45 = vector.shape_cast %39 : vector<8x16x128xf32> to vector<8x1x16x128xf32>
    %46 = vector.shape_cast %44 : vector<8x16x128xf32> to vector<8x1x16x128xf32>
    %47 = tpu.concatenate %45, %46 in 1 : vector<8x1x16x128xf32>, vector<8x1x16x128xf32> -> vector<8x2x16x128xf32>
    %48 = vector.shape_cast %47 : vector<8x2x16x128xf32> to vector<256x128xf32>
    %49 = arith.addf %48, %23 : vector<256x128xf32>
    %c0_32 = arith.constant 0 : index
    %c0_33 = arith.constant 0 : index
    %c0_34 = arith.constant 0 : index
    %50 = vector.load %arg4[%c0_32, %c0_33, %c0_34] : memref<1x64x1024xf32, #tpu.memory_space<vmem>>, vector<1x64x1024xf32>
    %51 = vector.shape_cast %50 : vector<1x64x1024xf32> to vector<64x1024xf32>
    %c0_35 = arith.constant 0 : index
    %c0_36 = arith.constant 0 : index
    %52 = vector.load %arg11[%c0_35, %c0_36] : memref<64x128xf32, #tpu.memory_space<vmem>>, vector<64x128xf32>
    %c0_37 = arith.constant 0 : index
    %c0_38 = arith.constant 0 : index
    %53 = vector.load %arg12[%c0_37, %c0_38] : memref<1x128xf32, #tpu.memory_space<vmem>>, vector<1x128xf32>
    %cst_39 = arith.constant dense<0.000000e+00> : vector<1024x128xf32>
    %54 = tpu.matmul %51, %52, %cst_39 {dimension_numbers = #tpu.dot_dimension_numbers<[0], [0], [1], [1], [0, 1, 1, 1], [], []>} : vector<64x1024xf32>, vector<64x128xf32>, vector<1024x128xf32> -> vector<1024x128xf32>
    %55 = vector.broadcast %53 : vector<1x128xf32> to vector<1024x128xf32>
    %56 = arith.addf %54, %55 : vector<1024x128xf32>
    %c0_40 = arith.constant 0 : index
    %c0_41 = arith.constant 0 : index
    %57 = vector.load %arg15[%c0_40, %c0_41] : memref<32x16xf32, #tpu.memory_space<vmem>>, vector<32x16xf32>
    %58 = vector.shape_cast %49 : vector<256x128xf32> to vector<16x16x128xf32>
    %59 = vector.shape_cast %57 : vector<32x16xf32> to vector<1x32x16xf32>
    %60 = vector.broadcast %59 : vector<1x32x16xf32> to vector<16x32x16xf32>
    %cst_42 = arith.constant dense<0.000000e+00> : vector<16x32x128xf32>
    %61 = tpu.matmul %60, %58, %cst_42 {dimension_numbers = #tpu.dot_dimension_numbers<[2], [1], [1], [2], [0, 0, 0, 1, 1, 2], [0], [0]>} : vector<16x32x16xf32>, vector<16x16x128xf32>, vector<16x32x128xf32> -> vector<16x32x128xf32>
    %62 = vector.extract_strided_slice %61 {offsets = [0, 0, 0], sizes = [1, 32, 128], strides = [1, 1, 1]} : vector<16x32x128xf32> to vector<1x32x128xf32>
    %63 = vector.extract_strided_slice %61 {offsets = [0, 0, 0], sizes = [15, 32, 128], strides = [1, 1, 1]} : vector<16x32x128xf32> to vector<15x32x128xf32>
    %64 = tpu.concatenate %62, %63 in 0 : vector<1x32x128xf32>, vector<15x32x128xf32> -> vector<16x32x128xf32>
    %65 = vector.extract_strided_slice %61 {offsets = [1, 0, 0], sizes = [15, 32, 128], strides = [1, 1, 1]} : vector<16x32x128xf32> to vector<15x32x128xf32>
    %66 = vector.extract_strided_slice %61 {offsets = [15, 0, 0], sizes = [1, 32, 128], strides = [1, 1, 1]} : vector<16x32x128xf32> to vector<1x32x128xf32>
    %67 = tpu.concatenate %65, %66 in 0 : vector<15x32x128xf32>, vector<1x32x128xf32> -> vector<16x32x128xf32>
    %cst_43 = arith.constant 2.500000e-01 : f32
    %68 = vector.broadcast %cst_43 : f32 to vector<16x32x128xf32>
    %69 = arith.mulf %68, %64 : vector<16x32x128xf32>
    %cst_44 = arith.constant 7.500000e-01 : f32
    %70 = vector.broadcast %cst_44 : f32 to vector<16x32x128xf32>
    %71 = arith.mulf %70, %61 : vector<16x32x128xf32>
    %72 = arith.addf %69, %71 : vector<16x32x128xf32>
    %cst_45 = arith.constant 7.500000e-01 : f32
    %73 = vector.broadcast %cst_45 : f32 to vector<16x32x128xf32>
    %74 = arith.mulf %73, %61 : vector<16x32x128xf32>
    %cst_46 = arith.constant 2.500000e-01 : f32
    %75 = vector.broadcast %cst_46 : f32 to vector<16x32x128xf32>
    %76 = arith.mulf %75, %67 : vector<16x32x128xf32>
    %77 = arith.addf %74, %76 : vector<16x32x128xf32>
    %78 = vector.shape_cast %72 : vector<16x32x128xf32> to vector<16x1x32x128xf32>
    %79 = vector.shape_cast %77 : vector<16x32x128xf32> to vector<16x1x32x128xf32>
    %80 = tpu.concatenate %78, %79 in 1 : vector<16x1x32x128xf32>, vector<16x1x32x128xf32> -> vector<16x2x32x128xf32>
    %81 = vector.shape_cast %80 : vector<16x2x32x128xf32> to vector<1024x128xf32>
    %82 = arith.addf %81, %56 : vector<1024x128xf32>
    %83 = tpu.transpose %82, [1, 0] : vector<1024x128xf32> -> vector<128x1024xf32>
    %c0_47 = arith.constant 0 : index
    %c0_48 = arith.constant 0 : index
    %c0_49 = arith.constant 0 : index
    %84 = vector.load %arg16[%c0_47, %c0_48, %c0_49] : memref<1x128x1024xf32, #tpu.memory_space<vmem>>, vector<1x128x1024xf32>
    %85 = vector.shape_cast %84 : vector<1x128x1024xf32> to vector<128x1024xf32>
    %86 = vector.shape_cast %83 : vector<128x1024xf32> to vector<1x128x1024xf32>
    tpu.vector_store %arg16[%c0_47, %c0_48, %c0_49], %86 {strides = array<i32>} : memref<1x128x1024xf32, #tpu.memory_space<vmem>>, vector<1x128x1024xf32>,
    return
  }
  func.func @transform_0(%arg0: i32) -> (i32, i32, i32) {
    %c0_i32 = arith.constant 0 : i32
    %c0_i32_0 = arith.constant 0 : i32
    %c0_i32_1 = arith.constant 0 : i32
    return %arg0, %c0_i32, %c0_i32_0 : i32, i32, i32
  }
  func.func @transform_1(%arg0: i32) -> (i32, i32, i32) {
    %c0_i32 = arith.constant 0 : i32
    %c0_i32_0 = arith.constant 0 : i32
    %c0_i32_1 = arith.constant 0 : i32
    return %arg0, %c0_i32, %c0_i32_0 : i32, i32, i32
  }
  func.func @transform_2(%arg0: i32) -> (i32, i32, i32) {
    %c0_i32 = arith.constant 0 : i32
    %c0_i32_0 = arith.constant 0 : i32
    %c0_i32_1 = arith.constant 0 : i32
    return %arg0, %c0_i32, %c0_i32_0 : i32, i32, i32
  }
  func.func @transform_3(%arg0: i32) -> (i32, i32, i32) {
    %c0_i32 = arith.constant 0 : i32
    %c0_i32_0 = arith.constant 0 : i32
    %c0_i32_1 = arith.constant 0 : i32
    return %arg0, %c0_i32, %c0_i32_0 : i32, i32, i32
  }
  func.func @transform_4(%arg0: i32) -> (i32, i32) {
    %c0_i32 = arith.constant 0 : i32
    %c0_i32_0 = arith.constant 0 : i32
    %c0_i32_1 = arith.constant 0 : i32
    return %c0_i32, %c0_i32_0 : i32, i32
  }
  func.func @transform_5(%arg0: i32) -> (i32, i32) {
    %c0_i32 = arith.constant 0 : i32
    %c0_i32_0 = arith.constant 0 : i32
    %c0_i32_1 = arith.constant 0 : i32
    return %c0_i32, %c0_i32_0 : i32, i32
  }
  func.func @transform_6(%arg0: i32) -> (i32, i32) {
    %c0_i32 = arith.constant 0 : i32
    %c0_i32_0 = arith.constant 0 : i32
    %c0_i32_1 = arith.constant 0 : i32
    return %c0_i32, %c0_i32_0 : i32, i32
  }
  func.func @transform_7(%arg0: i32) -> (i32, i32) {
    %c0_i32 = arith.constant 0 : i32
    %c0_i32_0 = arith.constant 0 : i32
    %c0_i32_1 = arith.constant 0 : i32
    return %c0_i32, %c0_i32_0 : i32, i32
  }
  func.func @transform_8(%arg0: i32) -> (i32, i32) {
    %c0_i32 = arith.constant 0 : i32
    %c0_i32_0 = arith.constant 0 : i32
    %c0_i32_1 = arith.constant 0 : i32
    return %c0_i32, %c0_i32_0 : i32, i32
  }
  func.func @transform_9(%arg0: i32) -> (i32, i32) {
    %c0_i32 = arith.constant 0 : i32
    %c0_i32_0 = arith.constant 0 : i32
    %c0_i32_1 = arith.constant 0 : i32
    return %c0_i32, %c0_i32_0 : i32, i32
  }
  func.func @transform_10(%arg0: i32) -> (i32, i32) {
    %c0_i32 = arith.constant 0 : i32
    %c0_i32_0 = arith.constant 0 : i32
    %c0_i32_1 = arith.constant 0 : i32
    return %c0_i32, %c0_i32_0 : i32, i32
  }
  func.func @transform_11(%arg0: i32) -> (i32, i32) {
    %c0_i32 = arith.constant 0 : i32
    %c0_i32_0 = arith.constant 0 : i32
    %c0_i32_1 = arith.constant 0 : i32
    return %c0_i32, %c0_i32_0 : i32, i32
  }
  func.func @transform_12(%arg0: i32) -> (i32, i32) {
    %c0_i32 = arith.constant 0 : i32
    %c0_i32_0 = arith.constant 0 : i32
    %c0_i32_1 = arith.constant 0 : i32
    return %c0_i32, %c0_i32_0 : i32, i32
  }
  func.func @transform_13(%arg0: i32) -> (i32, i32) {
    %c0_i32 = arith.constant 0 : i32
    %c0_i32_0 = arith.constant 0 : i32
    %c0_i32_1 = arith.constant 0 : i32
    return %c0_i32, %c0_i32_0 : i32, i32
  }
  func.func @transform_14(%arg0: i32) -> (i32, i32) {
    %c0_i32 = arith.constant 0 : i32
    %c0_i32_0 = arith.constant 0 : i32
    %c0_i32_1 = arith.constant 0 : i32
    return %c0_i32, %c0_i32_0 : i32, i32
  }
  func.func @transform_15(%arg0: i32) -> (i32, i32, i32) {
    %c0_i32 = arith.constant 0 : i32
    %c0_i32_0 = arith.constant 0 : i32
    %c0_i32_1 = arith.constant 0 : i32
    return %arg0, %c0_i32, %c0_i32_0 : i32, i32, i32
  }
}

</mosaic_0001>

<llo_original>
// kernel: _fpn_forward.1
$region0: #{_fpn_forward.1}
  #allocation0 [shape = 'u32[]', space=smem, size = 0x4, offset = 0x4, fixed_abs, tag = 'smem constant byte address 0x4 - core index']
  #allocation1 [shape = 'u32[144,128]{1,0:T(1,128)}', space=vmem, size = 0x12000, scoped, tag = 'internal scratch']
  %s0 = inlined_call_operand.vmem [shape: f32[2,512,16], index: 0, kind: input, shape index: {}]
  %s1 = inlined_call_operand.vmem [shape: f32[2,256,64], index: 1, kind: input, shape index: {}]
  %s2 = inlined_call_operand.vmem [shape: f32[2,128,256], index: 2, kind: input, shape index: {}]
  %s3 = inlined_call_operand.vmem [shape: f32[2,64,1024], index: 3, kind: input, shape index: {}]
  %s4 = inlined_call_operand.vmem [shape: f32[512,128], index: 4, kind: input, shape index: {}]
  %s5 = inlined_call_operand.vmem [shape: f32[1,128], index: 5, kind: input, shape index: {}]
  %s6 = inlined_call_operand.vmem [shape: f32[256,128], index: 6, kind: input, shape index: {}]
  %s7 = inlined_call_operand.vmem [shape: f32[1,128], index: 7, kind: input, shape index: {}]
  %s8 = inlined_call_operand.vmem [shape: f32[128,128], index: 8, kind: input, shape index: {}]
  %s9 = inlined_call_operand.vmem [shape: f32[1,128], index: 9, kind: input, shape index: {}]
  %s10 = inlined_call_operand.vmem [shape: f32[64,128], index: 10, kind: input, shape index: {}]
  %s11 = inlined_call_operand.vmem [shape: f32[1,128], index: 11, kind: input, shape index: {}]
  %s12 = inlined_call_operand.vmem [shape: f32[64,16], index: 12, kind: input, shape index: {}]
  %s13 = inlined_call_operand.vmem [shape: f32[16,8], index: 13, kind: input, shape index: {}]
  %s14 = inlined_call_operand.vmem [shape: f32[32,16], index: 14, kind: input, shape index: {}]
  %s15 = inlined_call_operand.vmem [shape: f32[2,128,1024], index: 15, kind: output, shape index: {}]
  %s16 = sld [smem:[#allocation0]]
  $region93: #{_fpn_forward.1} parent=0
    _
  %s18 = ssub.s32 1, %s16
  %s19 = scalar_select 0, %s18, %s16
  loop: start=0, step=1, limit=4
  $region2: #{_fpn_forward.1} parent=0 // loop_pre_header
    _
  $region3: #{_fpn_forward.1} parent=0 // loop_header
    %s21 = sphi 0, %s25
    %p22 = scmp.ge.s32.totalorder %s21, 4
    %s31 = sphi 0, %s33
    %s34 = sphi 0, %s31
    %s35 = sphi 0, %s34
    %s51 = sphi 0, %s35
    %s57 = sphi 0, %s59
    %s60 = sphi 0, %s57
    %s61 = sphi 0, %s60
    %s77 = sphi 0, %s61
    %s83 = sphi 0, %s85
    %s86 = sphi 0, %s83
    %s87 = sphi 0, %s86
    %s103 = sphi 0, %s87
    %s109 = sphi 0, %s111
    %s112 = sphi 0, %s109
    %s113 = sphi 0, %s112
    %s129 = sphi 0, %s113
    %s133 = sphi 0, %s133
    %s135 = sphi 0, %s133
    %s136 = sphi 0, %s135
    %s150 = sphi 0, %s136
    %s154 = sphi 0, %s154
    %s156 = sphi 0, %s154
    %s157 = sphi 0, %s156
    %s171 = sphi 0, %s157
    %s175 = sphi 0, %s175
    %s177 = sphi 0, %s175
    %s178 = sphi 0, %s177
    %s192 = sphi 0, %s178
    %s196 = sphi 0, %s196
    %s198 = sphi 0, %s196
    %s199 = sphi 0, %s198
    %s213 = sphi 0, %s199
    %s217 = sphi 0, %s217
    %s219 = sphi 0, %s217
    %s220 = sphi 0, %s219
    %s234 = sphi 0, %s220
    %s238 = sphi 0, %s238
    %s240 = sphi 0, %s238
    %s241 = sphi 0, %s240
    %s255 = sphi 0, %s241
    %s259 = sphi 0, %s259
    %s261 = sphi 0, %s259
    %s262 = sphi 0, %s261
    %s276 = sphi 0, %s262
    %s280 = sphi 0, %s280
    %s282 = sphi 0, %s280
    %s283 = sphi 0, %s282
    %s297 = sphi 0, %s283
    %s301 = sphi 0, %s301
    %s303 = sphi 0, %s301
    %s304 = sphi 0, %s303
    %s318 = sphi 0, %s304
    %s322 = sphi 0, %s322
    %s324 = sphi 0, %s322
    %s325 = sphi 0, %s324
    %s339 = sphi 0, %s325
    %s343 = sphi 0, %s343
    %s345 = sphi 0, %s343
    %s346 = sphi 0, %s345
    %s360 = sphi 0, %s346
    %s366 = sphi 0, %s368
    %s369 = sphi 0, %s366
    %s370 = sphi 0, %s369
    %s386 = sphi 0, %s370
  $region4: #{_fpn_forward.1} parent=0 // loop_header_branch
    %24 = sbr.rel (%p22) target = $region8
  $region5: #{_fpn_forward.1} parent=0 // loop_body
    %s26 = ssub.s32 %s21, 1
    %s27 = ssub.s32 %s21, 2
    %s28 = sadd.s32 %s21, 1
    %s29 = ssub.s32 %s21, %s28
    %p30 = scmp.eq.s32.totalorder %s29, 0
    %s32 = sadd.s32 %s31, 1
    %s33 = scalar_select %p30, %s31, %s32
    %p36 = pneg %p30
    %p37 = scmp.eq.s32.totalorder %s21, 1
    %p38 = por %p36, %p37
    %p39 = scmp.ne.s32.totalorder %s31, %s34
    %p40 = scmp.eq.s32.totalorder %s21, 0
    %p41 = por %p39, %p40
    %p42 = scmp.ne.s32.totalorder %s31, %s34
    %p43 = scmp.eq.s32.totalorder %s26, 1
    %p44 = por %p42, %p43
    %p45 = scmp.ne.s32.totalorder %s34, %s35
    %p46 = scmp.eq.s32.totalorder %s26, 0
    %p47 = por %p45, %p46
    %p48 = scmp.ne.s32.totalorder %s34, %s35
    %p49 = scmp.eq.s32.totalorder %s27, 1
    %p50 = por %p48, %p49
    %p52 = scmp.ne.s32.totalorder %s35, %s51
    %p53 = scmp.eq.s32.totalorder %s27, 0
    %p54 = por %p52, %p53
    %s55 = ssub.s32 %s21, %s28
    %p56 = scmp.eq.s32.totalorder %s55, 0
    %s58 = sadd.s32 %s57, 1
    %s59 = scalar_select %p56, %s57, %s58
    %p62 = pneg %p56
    %p63 = scmp.eq.s32.totalorder %s21, 1
    %p64 = por %p62, %p63
    %p65 = scmp.ne.s32.totalorder %s57, %s60
    %p66 = scmp.eq.s32.totalorder %s21, 0
    %p67 = por %p65, %p66
    %p68 = scmp.ne.s32.totalorder %s57, %s60
    %p69 = scmp.eq.s32.totalorder %s26, 1
    %p70 = por %p68, %p69
    %p71 = scmp.ne.s32.totalorder %s60, %s61
    %p72 = scmp.eq.s32.totalorder %s26, 0
    %p73 = por %p71, %p72
    %p74 = scmp.ne.s32.totalorder %s60, %s61
    %p75 = scmp.eq.s32.totalorder %s27, 1
    %p76 = por %p74, %p75
    %p78 = scmp.ne.s32.totalorder %s61, %s77
    %p79 = scmp.eq.s32.totalorder %s27, 0
    %p80 = por %p78, %p79
    %s81 = ssub.s32 %s21, %s28
    %p82 = scmp.eq.s32.totalorder %s81, 0
    %s84 = sadd.s32 %s83, 1
    %s85 = scalar_select %p82, %s83, %s84
    %p88 = pneg %p82
    %p89 = scmp.eq.s32.totalorder %s21, 1
    %p90 = por %p88, %p89
    %p91 = scmp.ne.s32.totalorder %s83, %s86
    %p92 = scmp.eq.s32.totalorder %s21, 0
    %p93 = por %p91, %p92
    %p94 = scmp.ne.s32.totalorder %s83, %s86
    %p95 = scmp.eq.s32.totalorder %s26, 1
    %p96 = por %p94, %p95
    %p97 = scmp.ne.s32.totalorder %s86, %s87
    %p98 = scmp.eq.s32.totalorder %s26, 0
    %p99 = por %p97, %p98
    %p100 = scmp.ne.s32.totalorder %s86, %s87
    %p101 = scmp.eq.s32.totalorder %s27, 1
    %p102 = por %p100, %p101
    %p104 = scmp.ne.s32.totalorder %s87, %s103
    %p105 = scmp.eq.s32.totalorder %s27, 0
    %p106 = por %p104, %p105
    %s107 = ssub.s32 %s21, %s28
    %p108 = scmp.eq.s32.totalorder %s107, 0
    %s110 = sadd.s32 %s109, 1
    %s111 = scalar_select %p108, %s109, %s110
    %p114 = pneg %p108
    %p115 = scmp.eq.s32.totalorder %s21, 1
    %p116 = por %p114, %p115
    %p117 = scmp.ne.s32.totalorder %s109, %s112
    %p118 = scmp.eq.s32.totalorder %s21, 0
    %p119 = por %p117, %p118
    %p120 = scmp.ne.s32.totalorder %s109, %s112
    %p121 = scmp.eq.s32.totalorder %s26, 1
    %p122 = por %p120, %p121
    %p123 = scmp.ne.s32.totalorder %s112, %s113
    %p124 = scmp.eq.s32.totalorder %s26, 0
    %p125 = por %p123, %p124
    %p126 = scmp.ne.s32.totalorder %s112, %s113
    %p127 = scmp.eq.s32.totalorder %s27, 1
    %p128 = por %p126, %p127
    %p130 = scmp.ne.s32.totalorder %s113, %s129
    %p131 = scmp.eq.s32.totalorder %s27, 0
    %p132 = por %p130, %p131
    %s134 = sadd.s32 %s133, 1
    %p137 = scmp.eq.s32.totalorder %s21, 1
    %p138 = scmp.ne.s32.totalorder %s133, %s135
    %p139 = scmp.eq.s32.totalorder %s21, 0
    %p140 = por %p138, %p139
    %p141 = scmp.ne.s32.totalorder %s133, %s135
    %p142 = scmp.eq.s32.totalorder %s26, 1
    %p143 = por %p141, %p142
    %p144 = scmp.ne.s32.totalorder %s135, %s136
    %p145 = scmp.eq.s32.totalorder %s26, 0
    %p146 = por %p144, %p145
    %p147 = scmp.ne.s32.totalorder %s135, %s136
    %p148 = scmp.eq.s32.totalorder %s27, 1
    %p149 = por %p147, %p148
    %p151 = scmp.ne.s32.totalorder %s136, %s150
    %p152 = scmp.eq.s32.totalorder %s27, 0
    %p153 = por %p151, %p152
    %s155 = sadd.s32 %s154, 1
    %p158 = scmp.eq.s32.totalorder %s21, 1
    %p159 = scmp.ne.s32.totalorder %s154, %s156
    %p160 = scmp.eq.s32.totalorder %s21, 0
    %p161 = por %p159, %p160
    %p162 = scmp.ne.s32.totalorder %s154, %s156
    %p163 = scmp.eq.s32.totalorder %s26, 1
    %p164 = por %p162, %p163
    %p165 = scmp.ne.s32.totalorder %s156, %s157
    %p166 = scmp.eq.s32.totalorder %s26, 0
    %p167 = por %p165, %p166
    %p168 = scmp.ne.s32.totalorder %s156, %s157
    %p169 = scmp.eq.s32.totalorder %s27, 1
    %p170 = por %p168, %p169
    %p172 = scmp.ne.s32.totalorder %s157, %s171
    %p173 = scmp.eq.s32.totalorder %s27, 0
    %p174 = por %p172, %p173
    %s176 = sadd.s32 %s175, 1
    %p179 = scmp.eq.s32.totalorder %s21, 1
    %p180 = scmp.ne.s32.totalorder %s175, %s177
    %p181 = scmp.eq.s32.totalorder %s21, 0
    %p182 = por %p180, %p181
    %p183 = scmp.ne.s32.totalorder %s175, %s177
    %p184 = scmp.eq.s32.totalorder %s26, 1
    %p185 = por %p183, %p184
    %p186 = scmp.ne.s32.totalorder %s177, %s178
    %p187 = scmp.eq.s32.totalorder %s26, 0
    %p188 = por %p186, %p187
    %p189 = scmp.ne.s32.totalorder %s177, %s178
    %p190 = scmp.eq.s32.totalorder %s27, 1
    %p191 = por %p189, %p190
    %p193 = scmp.ne.s32.totalorder %s178, %s192
    %p194 = scmp.eq.s32.totalorder %s27, 0
    %p195 = por %p193, %p194
    %s197 = sadd.s32 %s196, 1
    %p200 = scmp.eq.s32.totalorder %s21, 1
    %p201 = scmp.ne.s32.totalorder %s196, %s198
    %p202 = scmp.eq.s32.totalorder %s21, 0
    %p203 = por %p201, %p202
    %p204 = scmp.ne.s32.totalorder %s196, %s198
    %p205 = scmp.eq.s32.totalorder %s26, 1
    %p206 = por %p204, %p205
    %p207 = scmp.ne.s32.totalorder %s198, %s199
    %p208 = scmp.eq.s32.totalorder %s26, 0
    %p209 = por %p207, %p208
    %p210 = scmp.ne.s32.totalorder %s198, %s199
    %p211 = scmp.eq.s32.totalorder %s27, 1
    %p212 = por %p210, %p211
    %p214 = scmp.ne.s32.totalorder %s199, %s213
    %p215 = scmp.eq.s32.totalorder %s27, 0
    %p216 = por %p214, %p215
    %s218 = sadd.s32 %s217, 1
    %p221 = scmp.eq.s32.totalorder %s21, 1
    %p222 = scmp.ne.s32.totalorder %s217, %s219
    %p223 = scmp.eq.s32.totalorder %s21, 0
    %p224 = por %p222, %p223
    %p225 = scmp.ne.s32.totalorder %s217, %s219
    %p226 = scmp.eq.s32.totalorder %s26, 1
    %p227 = por %p225, %p226
    %p228 = scmp.ne.s32.totalorder %s219, %s220
    %p229 = scmp.eq.s32.totalorder %s26, 0
    %p230 = por %p228, %p229
    %p231 = scmp.ne.s32.totalorder %s219, %s220
    %p232 = scmp.eq.s32.totalorder %s27, 1
    %p233 = por %p231, %p232
    %p235 = scmp.ne.s32.totalorder %s220, %s234
    %p236 = scmp.eq.s32.totalorder %s27, 0
    %p237 = por %p235, %p236
    %s239 = sadd.s32 %s238, 1
    %p242 = scmp.eq.s32.totalorder %s21, 1
    %p243 = scmp.ne.s32.totalorder %s238, %s240
    %p244 = scmp.eq.s32.totalorder %s21, 0
    %p245 = por %p243, %p244
    %p246 = scmp.ne.s32.totalorder %s238, %s240
    %p247 = scmp.eq.s32.totalorder %s26, 1
    %p248 = por %p246, %p247
    %p249 = scmp.ne.s32.totalorder %s240, %s241
    %p250 = scmp.eq.s32.totalorder %s26, 0
    %p251 = por %p249, %p250
    %p252 = scmp.ne.s32.totalorder %s240, %s241
    %p253 = scmp.eq.s32.totalorder %s27, 1
    %p254 = por %p252, %p253
    %p256 = scmp.ne.s32.totalorder %s241, %s255
    %p257 = scmp.eq.s32.totalorder %s27, 0
    %p258 = por %p256, %p257
    %s260 = sadd.s32 %s259, 1
    %p263 = scmp.eq.s32.totalorder %s21, 1
    %p264 = scmp.ne.s32.totalorder %s259, %s261
    %p265 = scmp.eq.s32.totalorder %s21, 0
    %p266 = por %p264, %p265
    %p267 = scmp.ne.s32.totalorder %s259, %s261
    %p268 = scmp.eq.s32.totalorder %s26, 1
    %p269 = por %p267, %p268
    %p270 = scmp.ne.s32.totalorder %s261, %s262
    %p271 = scmp.eq.s32.totalorder %s26, 0
    %p272 = por %p270, %p271
    %p273 = scmp.ne.s32.totalorder %s261, %s262
    %p274 = scmp.eq.s32.totalorder %s27, 1
    %p275 = por %p273, %p274
    %p277 = scmp.ne.s32.totalorder %s262, %s276
    %p278 = scmp.eq.s32.totalorder %s27, 0
    %p279 = por %p277, %p278
    %s281 = sadd.s32 %s280, 1
    %p284 = scmp.eq.s32.totalorder %s21, 1
    %p285 = scmp.ne.s32.totalorder %s280, %s282
    %p286 = scmp.eq.s32.totalorder %s21, 0
    %p287 = por %p285, %p286
    %p288 = scmp.ne.s32.totalorder %s280, %s282
    %p289 = scmp.eq.s32.totalorder %s26, 1
    %p290 = por %p288, %p289
    %p291 = scmp.ne.s32.totalorder %s282, %s283
    %p292 = scmp.eq.s32.totalorder %s26, 0
    %p293 = por %p291, %p292
    %p294 = scmp.ne.s32.totalorder %s282, %s283
    %p295 = scmp.eq.s32.totalorder %s27, 1
    %p296 = por %p294, %p295
    %p298 = scmp.ne.s32.totalorder %s283, %s297
    %p299 = scmp.eq.s32.totalorder %s27, 0
    %p300 = por %p298, %p299
    %s302 = sadd.s32 %s301, 1
    %p305 = scmp.eq.s32.totalorder %s21, 1
    %p306 = scmp.ne.s32.totalorder %s301, %s303
    %p307 = scmp.eq.s32.totalorder %s21, 0
    %p308 = por %p306, %p307
    %p309 = scmp.ne.s32.totalorder %s301, %s303
    %p310 = scmp.eq.s32.totalorder %s26, 1
    %p311 = por %p309, %p310
    %p312 = scmp.ne.s32.totalorder %s303, %s304
    %p313 = scmp.eq.s32.totalorder %s26, 0
    %p314 = por %p312, %p313
    %p315 = scmp.ne.s32.totalorder %s303, %s304
    %p316 = scmp.eq.s32.totalorder %s27, 1
    %p317 = por %p315, %p316
    %p319 = scmp.ne.s32.totalorder %s304, %s318
    %p320 = scmp.eq.s32.totalorder %s27, 0
    %p321 = por %p319, %p320
    %s323 = sadd.s32 %s322, 1
    %p326 = scmp.eq.s32.totalorder %s21, 1
    %p327 = scmp.ne.s32.totalorder %s322, %s324
    %p328 = scmp.eq.s32.totalorder %s21, 0
    %p329 = por %p327, %p328
    %p330 = scmp.ne.s32.totalorder %s322, %s324
    %p331 = scmp.eq.s32.totalorder %s26, 1
    %p332 = por %p330, %p331
    %p333 = scmp.ne.s32.totalorder %s324, %s325
    %p334 = scmp.eq.s32.totalorder %s26, 0
    %p335 = por %p333, %p334
    %p336 = scmp.ne.s32.totalorder %s324, %s325
    %p337 = scmp.eq.s32.totalorder %s27, 1
    %p338 = por %p336, %p337
    %p340 = scmp.ne.s32.totalorder %s325, %s339
    %p341 = scmp.eq.s32.totalorder %s27, 0
    %p342 = por %p340, %p341
    %s344 = sadd.s32 %s343, 1
    %p347 = scmp.eq.s32.totalorder %s21, 1
    %p348 = scmp.ne.s32.totalorder %s343, %s345
    %p349 = scmp.eq.s32.totalorder %s21, 0
    %p350 = por %p348, %p349
    %p351 = scmp.ne.s32.totalorder %s343, %s345
    %p352 = scmp.eq.s32.totalorder %s26, 1
    %p353 = por %p351, %p352
    %p354 = scmp.ne.s32.totalorder %s345, %s346
    %p355 = scmp.eq.s32.totalorder %s26, 0
    %p356 = por %p354, %p355
    %p357 = scmp.ne.s32.totalorder %s345, %s346
    %p358 = scmp.eq.s32.totalorder %s27, 1
    %p359 = por %p357, %p358
    %p361 = scmp.ne.s32.totalorder %s346, %s360
    %p362 = scmp.eq.s32.totalorder %s27, 0
    %p363 = por %p361, %p362
    %s364 = ssub.s32 %s21, %s28
    %p365 = scmp.eq.s32.totalorder %s364, 0
    %s367 = sadd.s32 %s366, 1
    %s368 = scalar_select %p365, %s366, %s367
    %p371 = pneg %p365
    %p372 = scmp.eq.s32.totalorder %s21, 1
    %p373 = por %p371, %p372
    %p374 = scmp.ne.s32.totalorder %s366, %s369
    %p375 = scmp.eq.s32.totalorder %s21, 0
    %p376 = por %p374, %p375
    %p377 = scmp.ne.s32.totalorder %s366, %s369
    %p378 = scmp.eq.s32.totalorder %s26, 1
    %p379 = por %p377, %p378
    %p380 = scmp.ne.s32.totalorder %s369, %s370
    %p381 = scmp.eq.s32.totalorder %s26, 0
    %p382 = por %p380, %p381
    %p383 = scmp.ne.s32.totalorder %s369, %s370
    %p384 = scmp.eq.s32.totalorder %s27, 1
    %p385 = por %p383, %p384
    %p387 = scmp.ne.s32.totalorder %s370, %s386
    %p388 = scmp.eq.s32.totalorder %s27, 0
    %p389 = por %p387, %p388
    %p390 = scmp.le.s32.totalorder 1, %s21
    %p391 = scmp.lt.s32.totalorder %s21, 3
    %p392 = pnand %p390, %p391
    %p393 = pneg %p392
    // Predicated region
    $region9: #{_fpn_forward.1} parent=5 // pred_check
      _
    $region10: #{_fpn_forward.1} parent=5 // pred_check_branch
      %395 = sbr.rel (%p392) target = $region12
    $region11: #{_fpn_forward.1} parent=5 // pred_region
      %s396 = ssub.s32 %s21, 1
      // Predicated region
      $region13: #{_fpn_forward.1} parent=11 // pred_check
        %p397 = pneg %p146
      $region14: #{_fpn_forward.1} parent=11 // pred_check_branch
        %399 = sbr.rel (%p397) target = $region16
      $region15: #{_fpn_forward.1} parent=11 // pred_region
        _
      $region16: #{_fpn_forward.1} parent=11 // pred_fallthru
        _
      // Predicated region
      $region17: #{_fpn_forward.1} parent=11 // pred_check
        %p400 = pneg %p167
      $region18: #{_fpn_forward.1} parent=11 // pred_check_branch
        %402 = sbr.rel (%p400) target = $region20
      $region19: #{_fpn_forward.1} parent=11 // pred_region
        _
      $region20: #{_fpn_forward.1} parent=11 // pred_fallthru
        _
      // Predicated region
      $region21: #{_fpn_forward.1} parent=11 // pred_check
        %p403 = pneg %p188
      $region22: #{_fpn_forward.1} parent=11 // pred_check_branch
        %405 = sbr.rel (%p403) target = $region24
      $region23: #{_fpn_forward.1} parent=11 // pred_region
        _
      $region24: #{_fpn_forward.1} parent=11 // pred_fallthru
        _
      // Predicated region
      $region25: #{_fpn_forward.1} parent=11 // pred_check
        %p406 = pneg %p209
      $region26: #{_fpn_forward.1} parent=11 // pred_check_branch
        %408 = sbr.rel (%p406) target = $region28
      $region27: #{_fpn_forward.1} parent=11 // pred_region
        _
      $region28: #{_fpn_forward.1} parent=11 // pred_fallthru
        _
      // Predicated region
      $region29: #{_fpn_forward.1} parent=11 // pred_check
        %p409 = pneg %p230
      $region30: #{_fpn_forward.1} parent=11 // pred_check_branch
        %411 = sbr.rel (%p409) target = $region32
      $region31: #{_fpn_forward.1} parent=11 // pred_region
        _
      $region32: #{_fpn_forward.1} parent=11 // pred_fallthru
        _
      // Predicated region
      $region33: #{_fpn_forward.1} parent=11 // pred_check
        %p412 = pneg %p251
      $region34: #{_fpn_forward.1} parent=11 // pred_check_branch
        %414 = sbr.rel (%p412) target = $region36
      $region35: #{_fpn_forward.1} parent=11 // pred_region
        _
      $region36: #{_fpn_forward.1} parent=11 // pred_fallthru
        _
      // Predicated region
      $region37: #{_fpn_forward.1} parent=11 // pred_check
        %p415 = pneg %p272
      $region38: #{_fpn_forward.1} parent=11 // pred_check_branch
        %417 = sbr.rel (%p415) target = $region40
      $region39: #{_fpn_forward.1} parent=11 // pred_region
        _
      $region40: #{_fpn_forward.1} parent=11 // pred_fallthru
        _
      // Predicated region
      $region41: #{_fpn_forward.1} parent=11 // pred_check
        %p418 = pneg %p293
      $region42: #{_fpn_forward.1} parent=11 // pred_check_branch
        %420 = sbr.rel (%p418) target = $region44
      $region43: #{_fpn_forward.1} parent=11 // pred_region
        _
      $region44: #{_fpn_forward.1} parent=11 // pred_fallthru
        _
      // Predicated region
      $region45: #{_fpn_forward.1} parent=11 // pred_check
        %p421 = pneg %p314
      $region46: #{_fpn_forward.1} parent=11 // pred_check_branch
        %423 = sbr.rel (%p421) target = $region48
      $region47: #{_fpn_forward.1} parent=11 // pred_region
        _
      $region48: #{_fpn_forward.1} parent=11 // pred_fallthru
        _
      // Predicated region
      $region49: #{_fpn_forward.1} parent=11 // pred_check
        %p424 = pneg %p335
      $region50: #{_fpn_forward.1} parent=11 // pred_check_branch
        %426 = sbr.rel (%p424) target = $region52
      $region51: #{_fpn_forward.1} parent=11 // pred_region
        _
      $region52: #{_fpn_forward.1} parent=11 // pred_fallthru
        _
      // Predicated region
      $region53: #{_fpn_forward.1} parent=11 // pred_check
        %p427 = pneg %p356
      $region54: #{_fpn_forward.1} parent=11 // pred_check_branch
        %429 = sbr.rel (%p427) target = $region56
      $region55: #{_fpn_forward.1} parent=11 // pred_region
        _
      $region56: #{_fpn_forward.1} parent=11 // pred_fallthru
        _
    $region12: #{_fpn_forward.1} parent=5 // pred_fallthru
      _
    %p430 = scmp.lt.s32.totalorder %s21, 2
    // Predicated region
    $region57: #{_fpn_forward.1} parent=5 // pred_check
      %p431 = pneg %p430
    $region58: #{_fpn_forward.1} parent=5 // pred_check_branch
      %433 = sbr.rel (%p431) target = $region60
    $region59: #{_fpn_forward.1} parent=5 // pred_region
      // Predicated region
      $region61: #{_fpn_forward.1} parent=59 // pred_check
        %p434 = pneg %p41
      $region62: #{_fpn_forward.1} parent=59 // pred_check_branch
        %436 = sbr.rel (%p434) target = $region64
      $region63: #{_fpn_forward.1} parent=59 // pred_region
        %p437 = scmp.lt.s32.totalorder %s21, 1
        %s438 = scalar_select %p437, %s21, 1
        %s439 = smul.addr %s438, 64
        %s440 = smul.addr %s439, 8
        %s441 = scalar_lea.vmem %s0, %s440
      $region64: #{_fpn_forward.1} parent=59 // pred_fallthru
        _
      // Predicated region
      $region65: #{_fpn_forward.1} parent=59 // pred_check
        %p442 = pneg %p67
      $region66: #{_fpn_forward.1} parent=59 // pred_check_branch
        %444 = sbr.rel (%p442) target = $region68
      $region67: #{_fpn_forward.1} parent=59 // pred_region
        %p445 = scmp.lt.s32.totalorder %s21, 1
        %s446 = scalar_select %p445, %s21, 1
        %s447 = smul.addr %s446, 32
        %s448 = smul.addr %s447, 8
        %s449 = scalar_lea.vmem %s1, %s448
      $region68: #{_fpn_forward.1} parent=59 // pred_fallthru
        _
      // Predicated region
      $region69: #{_fpn_forward.1} parent=59 // pred_check
        %p450 = pneg %p93
      $region70: #{_fpn_forward.1} parent=59 // pred_check_branch
        %452 = sbr.rel (%p450) target = $region72
      $region71: #{_fpn_forward.1} parent=59 // pred_region
        %p453 = scmp.lt.s32.totalorder %s21, 1
        %s454 = scalar_select %p453, %s21, 1
        %s455 = smul.addr %s454, 32
        %s456 = smul.addr %s455, 8
        %s457 = scalar_lea.vmem %s2, %s456
      $region72: #{_fpn_forward.1} parent=59 // pred_fallthru
        _
      // Predicated region
      $region73: #{_fpn_forward.1} parent=59 // pred_check
        %p458 = pneg %p119
      $region74: #{_fpn_forward.1} parent=59 // pred_check_branch
        %460 = sbr.rel (%p458) target = $region76
      $region75: #{_fpn_forward.1} parent=59 // pred_region
        %p461 = scmp.lt.s32.totalorder %s21, 1
        %s462 = scalar_select %p461, %s21, 1
        %s463 = smul.addr %s462, 64
        %s464 = smul.addr %s463, 8
        %s465 = scalar_lea.vmem %s3, %s464
      $region76: #{_fpn_forward.1} parent=59 // pred_fallthru
        _
    $region60: #{_fpn_forward.1} parent=5 // pred_fallthru
      _
    %p466 = scmp.le.s32.totalorder 1, %s21
    %p467 = scmp.lt.s32.totalorder %s21, 3
    %p468 = pnand %p466, %p467
    %p469 = pneg %p468
    // Predicated region
    $region77: #{_fpn_forward.1} parent=5 // pred_check
      _
    $region78: #{_fpn_forward.1} parent=5 // pred_check_branch
      %471 = sbr.rel (%p468) target = $region80
    $region79: #{_fpn_forward.1} parent=5 // pred_region
      %s472 = ssub.s32 %s21, 1
      %p473 = scmp.lt.s32.totalorder %s26, 1
      %s474 = scalar_select %p473, %s26, 1
      %s475 = smul.addr %s474, 64
      %s476 = smul.addr %s475, 8
      %s477 = scalar_lea.vmem %s0, %s476
      %p478 = pneg %p47
      %p479 = pneg %p44
      %p480 = scmp.lt.s32.totalorder %s26, 1
      %s481 = scalar_select %p480, %s26, 1
      %s482 = smul.addr %s481, 32
      %s483 = smul.addr %s482, 8
      %s484 = scalar_lea.vmem %s1, %s483
      %p485 = pneg %p73
      %p486 = pneg %p70
      %p487 = scmp.lt.s32.totalorder %s26, 1
      %s488 = scalar_select %p487, %s26, 1
      %s489 = smul.addr %s488, 32
      %s490 = smul.addr %s489, 8
      %s491 = scalar_lea.vmem %s2, %s490
      %p492 = pneg %p99
      %p493 = pneg %p96
      %p494 = scmp.lt.s32.totalorder %s26, 1
      %s495 = scalar_select %p494, %s26, 1
      %s496 = smul.addr %s495, 64
      %s497 = smul.addr %s496, 8
      %s498 = scalar_lea.vmem %s3, %s497
      %p499 = pneg %p125
      %p500 = pneg %p122
      %p501 = pneg %p146
      %p502 = pneg %p143
      %p503 = pneg %p167
      %p504 = pneg %p164
      %p505 = pneg %p188
      %p506 = pneg %p185
      %p507 = pneg %p209
      %p508 = pneg %p206
      %p509 = pneg %p230
      %p510 = pneg %p227
      %p511 = pneg %p251
      %p512 = pneg %p248
      %p513 = pneg %p272
      %p514 = pneg %p269
      %p515 = pneg %p293
      %p516 = pneg %p290
      %p517 = pneg %p314
      %p518 = pneg %p311
      %p519 = pneg %p335
      %p520 = pneg %p332
      %p521 = pneg %p356
      %p522 = pneg %p353
      %p523 = pneg %p382
      %p524 = pneg %p379
      %p525 = scmp.lt.s32.totalorder %s26, 1
      %s526 = scalar_select %p525, %s26, 1
      %s527 = smul.addr %s526, 128
      %s528 = smul.addr %s527, 8
      %s529 = scalar_lea.vmem %s15, %s528
      %p530 = scmp.lt.s32.totalorder %s26, 1
      %s531 = scalar_select %p530, %s26, 1
      %s532 = smul.addr %s531, 64
      %s533 = smul.addr %s532, 8
      %s534 = scalar_lea.vmem %s0, %s533
      %p535 = scmp.lt.s32.totalorder %s26, 1
      %s536 = scalar_select %p535, %s26, 1
      %s537 = smul.addr %s536, 32
      %s538 = smul.addr %s537, 8
      %s539 = scalar_lea.vmem %s1, %s538
      %p540 = scmp.lt.s32.totalorder %s26, 1
      %s541 = scalar_select %p540, %s26, 1
      %s542 = smul.addr %s541, 32
      %s543 = smul.addr %s542, 8
      %s544 = scalar_lea.vmem %s2, %s543
      %p545 = scmp.lt.s32.totalorder %s26, 1
      %s546 = scalar_select %p545, %s26, 1
      %s547 = smul.addr %s546, 64
      %s548 = smul.addr %s547, 8
      %s549 = scalar_lea.vmem %s3, %s548
      %p550 = scmp.lt.s32.totalorder %s26, 1
      %s551 = scalar_select %p550, %s26, 1
      %s552 = smul.addr %s551, 128
      %s553 = smul.addr %s552, 8
      %s554 = scalar_lea.vmem %s15, %s553
      %v555 = vld [vmem:[%s534] sm:$0xff]
      %v556 = vld [vmem:[%s534 + $0x8] sm:$0xff]
      %v557 = vld [vmem:[%s534 + $0x10] sm:$0xff]
      %v558 = vld [vmem:[%s534 + $0x18] sm:$0xff]
      %v559 = vld [vmem:[%s534 + $0x20] sm:$0xff]
      %v560 = vld [vmem:[%s534 + $0x28] sm:$0xff]
      %v561 = vld [vmem:[%s534 + $0x30] sm:$0xff]
      %v562 = vld [vmem:[%s534 + $0x38] sm:$0xff]
      %v563 = vld [vmem:[%s534 + $0x40] sm:$0xff]
      %v564 = vld [vmem:[%s534 + $0x48] sm:$0xff]
      %v565 = vld [vmem:[%s534 + $0x50] sm:$0xff]
      %v566 = vld [vmem:[%s534 + $0x58] sm:$0xff]
      %v567 = vld [vmem:[%s534 + $0x60] sm:$0xff]
      %v568 = vld [vmem:[%s534 + $0x68] sm:$0xff]
      %v569 = vld [vmem:[%s534 + $0x70] sm:$0xff]
      %v570 = vld [vmem:[%s534 + $0x78] sm:$0xff]
      %v571 = vld [vmem:[%s534 + $0x80] sm:$0xff]
      %v572 = vld [vmem:[%s534 + $0x88] sm:$0xff]
      %v573 = vld [vmem:[%s534 + $0x90] sm:$0xff]
      %v574 = vld [vmem:[%s534 + $0x98] sm:$0xff]
      %v575 = vld [vmem:[%s534 + $0xa0] sm:$0xff]
      %v576 = vld [vmem:[%s534 + $0xa8] sm:$0xff]
      %v577 = vld [vmem:[%s534 + $0xb0] sm:$0xff]
      %v578 = vld [vmem:[%s534 + $0xb8] sm:$0xff]
      %v579 = vld [vmem:[%s534 + $0xc0] sm:$0xff]
      %v580 = vld [vmem:[%s534 + $0xc8] sm:$0xff]
      %v581 = vld [vmem:[%s534 + $0xd0] sm:$0xff]
      %v582 = vld [vmem:[%s534 + $0xd8] sm:$0xff]
      %v583 = vld [vmem:[%s534 + $0xe0] sm:$0xff]
      %v584 = vld [vmem:[%s534 + $0xe8] sm:$0xff]
      %v585 = vld [vmem:[%s534 + $0xf0] sm:$0xff]
      %v586 = vld [vmem:[%s534 + $0xf8] sm:$0xff]
      %v587 = vld [vmem:[%s534 + $0x100] sm:$0xff]
      %v588 = vld [vmem:[%s534 + $0x108] sm:$0xff]
      %v589 = vld [vmem:[%s534 + $0x110] sm:$0xff]
      %v590 = vld [vmem:[%s534 + $0x118] sm:$0xff]
      %v591 = vld [vmem:[%s534 + $0x120] sm:$0xff]
      %v592 = vld [vmem:[%s534 + $0x128] sm:$0xff]
      %v593 = vld [vmem:[%s534 + $0x130] sm:$0xff]
      %v594 = vld [vmem:[%s534 + $0x138] sm:$0xff]
      %v595 = vld [vmem:[%s534 + $0x140] sm:$0xff]
      %v596 = vld [vmem:[%s534 + $0x148] sm:$0xff]
      %v597 = vld [vmem:[%s534 + $0x150] sm:$0xff]
      %v598 = vld [vmem:[%s534 + $0x158] sm:$0xff]
      %v599 = vld [vmem:[%s534 + $0x160] sm:$0xff]
      %v600 = vld [vmem:[%s534 + $0x168] sm:$0xff]
      %v601 = vld [vmem:[%s534 + $0x170] sm:$0xff]
      %v602 = vld [vmem:[%s534 + $0x178] sm:$0xff]
      %v603 = vld [vmem:[%s534 + $0x180] sm:$0xff]
      %v604 = vld [vmem:[%s534 + $0x188] sm:$0xff]
      %v605 = vld [vmem:[%s534 + $0x190] sm:$0xff]
      %v606 = vld [vmem:[%s534 + $0x198] sm:$0xff]
      %v607 = vld [vmem:[%s534 + $0x1a0] sm:$0xff]
      %v608 = vld [vmem:[%s534 + $0x1a8] sm:$0xff]
      %v609 = vld [vmem:[%s534 + $0x1b0] sm:$0xff]
      %v610 = vld [vmem:[%s534 + $0x1b8] sm:$0xff]
      %v611 = vld [vmem:[%s534 + $0x1c0] sm:$0xff]
      %v612 = vld [vmem:[%s534 + $0x1c8] sm:$0xff]
      %v613 = vld [vmem:[%s534 + $0x1d0] sm:$0xff]
      %v614 = vld [vmem:[%s534 + $0x1d8] sm:$0xff]
      %v615 = vld [vmem:[%s534 + $0x1e0] sm:$0xff]
      %v616 = vld [vmem:[%s534 + $0x1e8] sm:$0xff]
      %v617 = vld [vmem:[%s534 + $0x1f0] sm:$0xff]
      %v618 = vld [vmem:[%s534 + $0x1f8] sm:$0xff]
      %v619 = vld [vmem:[%s4] sm:$0xff]
      %v620 = vld [vmem:[%s4 + $0x8] sm:$0xff]
      %v621 = vld [vmem:[%s4 + $0x10] sm:$0xff]
      %v622 = vld [vmem:[%s4 + $0x18] sm:$0xff]
      %v623 = vld [vmem:[%s4 + $0x20] sm:$0xff]
      %v624 = vld [vmem:[%s4 + $0x28] sm:$0xff]
      %v625 = vld [vmem:[%s4 + $0x30] sm:$0xff]
      %v626 = vld [vmem:[%s4 + $0x38] sm:$0xff]
      %v627 = vld [vmem:[%s4 + $0x40] sm:$0xff]
      %v628 = vld [vmem:[%s4 + $0x48] sm:$0xff]
      %v629 = vld [vmem:[%s4 + $0x50] sm:$0xff]
      %v630 = vld [vmem:[%s4 + $0x58] sm:$0xff]
      %v631 = vld [vmem:[%s4 + $0x60] sm:$0xff]
      %v632 = vld [vmem:[%s4 + $0x68] sm:$0xff]
      %v633 = vld [vmem:[%s4 + $0x70] sm:$0xff]
      %v634 = vld [vmem:[%s4 + $0x78] sm:$0xff]
      %v635 = vld [vmem:[%s4 + $0x80] sm:$0xff]
      %v636 = vld [vmem:[%s4 + $0x88] sm:$0xff]
      %v637 = vld [vmem:[%s4 + $0x90] sm:$0xff]
      %v638 = vld [vmem:[%s4 + $0x98] sm:$0xff]
      %v639 = vld [vmem:[%s4 + $0xa0] sm:$0xff]
      %v640 = vld [vmem:[%s4 + $0xa8] sm:$0xff]
      %v641 = vld [vmem:[%s4 + $0xb0] sm:$0xff]
      %v642 = vld [vmem:[%s4 + $0xb8] sm:$0xff]
      %v643 = vld [vmem:[%s4 + $0xc0] sm:$0xff]
      %v644 = vld [vmem:[%s4 + $0xc8] sm:$0xff]
      %v645 = vld [vmem:[%s4 + $0xd0] sm:$0xff]
      %v646 = vld [vmem:[%s4 + $0xd8] sm:$0xff]
      %v647 = vld [vmem:[%s4 + $0xe0] sm:$0xff]
      %v648 = vld [vmem:[%s4 + $0xe8] sm:$0xff]
      %v649 = vld [vmem:[%s4 + $0xf0] sm:$0xff]
      %v650 = vld [vmem:[%s4 + $0xf8] sm:$0xff]
      %v651 = vld [vmem:[%s4 + $0x100] sm:$0xff]
      %v652 = vld [vmem:[%s4 + $0x108] sm:$0xff]
      %v653 = vld [vmem:[%s4 + $0x110] sm:$0xff]
      %v654 = vld [vmem:[%s4 + $0x118] sm:$0xff]
      %v655 = vld [vmem:[%s4 + $0x120] sm:$0xff]
      %v656 = vld [vmem:[%s4 + $0x128] sm:$0xff]
      %v657 = vld [vmem:[%s4 + $0x130] sm:$0xff]
      %v658 = vld [vmem:[%s4 + $0x138] sm:$0xff]
      %v659 = vld [vmem:[%s4 + $0x140] sm:$0xff]
      %v660 = vld [vmem:[%s4 + $0x148] sm:$0xff]
      %v661 = vld [vmem:[%s4 + $0x150] sm:$0xff]
      %v662 = vld [vmem:[%s4 + $0x158] sm:$0xff]
      %v663 = vld [vmem:[%s4 + $0x160] sm:$0xff]
      %v664 = vld [vmem:[%s4 + $0x168] sm:$0xff]
      %v665 = vld [vmem:[%s4 + $0x170] sm:$0xff]
      %v666 = vld [vmem:[%s4 + $0x178] sm:$0xff]
      %v667 = vld [vmem:[%s4 + $0x180] sm:$0xff]
      %v668 = vld [vmem:[%s4 + $0x188] sm:$0xff]
      %v669 = vld [vmem:[%s4 + $0x190] sm:$0xff]
      %v670 = vld [vmem:[%s4 + $0x198] sm:$0xff]
      %v671 = vld [vmem:[%s4 + $0x1a0] sm:$0xff]
      %v672 = vld [vmem:[%s4 + $0x1a8] sm:$0xff]
      %v673 = vld [vmem:[%s4 + $0x1b0] sm:$0xff]
      %v674 = vld [vmem:[%s4 + $0x1b8] sm:$0xff]
      %v675 = vld [vmem:[%s4 + $0x1c0] sm:$0xff]
      %v676 = vld [vmem:[%s4 + $0x1c8] sm:$0xff]
      %v677 = vld [vmem:[%s4 + $0x1d0] sm:$0xff]
      %v678 = vld [vmem:[%s4 + $0x1d8] sm:$0xff]
      %v679 = vld [vmem:[%s4 + $0x1e0] sm:$0xff]
      %v680 = vld [vmem:[%s4 + $0x1e8] sm:$0xff]
      %v681 = vld [vmem:[%s4 + $0x1f0] sm:$0xff]
      %v682 = vld [vmem:[%s4 + $0x1f8] sm:$0xff]
      %v683 = vld [vmem:[%s5] sm:$0x1]
      %v685 = vlaneseq
      %v686 = vshrl.u32 %v685, 7
      %v687 = vsub.s32 0, %v686
      %v688 = vrot.slane %v683, %v687
      %690 = vxpose.xlu0.b32.start [1/16] %v555, 128
      %691 = vxpose.xlu0.b32.cont [2/16] %v556, 128
      %692 = vxpose.xlu0.b32.cont [3/16] %v557, 128
      %693 = vxpose.xlu0.b32.cont [4/16] %v558, 128
      %694 = vxpose.xlu0.b32.cont [5/16] %v559, 128
      %695 = vxpose.xlu0.b32.cont [6/16] %v560, 128
      %696 = vxpose.xlu0.b32.cont [7/16] %v561, 128
      %697 = vxpose.xlu0.b32.cont [8/16] %v562, 128
      %698 = vxpose.xlu0.b32.cont [9/16] %v563, 128
      %699 = vxpose.xlu0.b32.cont [10/16] %v564, 128
      %700 = vxpose.xlu0.b32.cont [11/16] %v565, 128
      %701 = vxpose.xlu0.b32.cont [12/16] %v566, 128
      %702 = vxpose.xlu0.b32.cont [13/16] %v567, 128
      %703 = vxpose.xlu0.b32.cont [14/16] %v568, 128
      %704 = vxpose.xlu0.b32.cont [15/16] %v569, 128
      %705 = vxpose.xlu0.b32.end [16/16] %v570, 128
      %v706 = vpop.trf.xlu0
      %v707 = vpop.trf.xlu0
      %v708 = vpop.trf.xlu0
      %v709 = vpop.trf.xlu0
      %v710 = vpop.trf.xlu0
      %v711 = vpop.trf.xlu0
      %v712 = vpop.trf.xlu0
      %v713 = vpop.trf.xlu0
      %v714 = vpop.trf.xlu0
      %v715 = vpop.trf.xlu0
      %v716 = vpop.trf.xlu0
      %v717 = vpop.trf.xlu0
      %v718 = vpop.trf.xlu0
      %v719 = vpop.trf.xlu0
      %v720 = vpop.trf.xlu0
      %v721 = vpop.trf.xlu0
      %722 = vxpose.xlu0.b32.start [1/16] %v571, 128
      %723 = vxpose.xlu0.b32.cont [2/16] %v572, 128
      %724 = vxpose.xlu0.b32.cont [3/16] %v573, 128
      %725 = vxpose.xlu0.b32.cont [4/16] %v574, 128
      %726 = vxpose.xlu0.b32.cont [5/16] %v575, 128
      %727 = vxpose.xlu0.b32.cont [6/16] %v576, 128
      %728 = vxpose.xlu0.b32.cont [7/16] %v577, 128
      %729 = vxpose.xlu0.b32.cont [8/16] %v578, 128
      %730 = vxpose.xlu0.b32.cont [9/16] %v579, 128
      %731 = vxpose.xlu0.b32.cont [10/16] %v580, 128
      %732 = vxpose.xlu0.b32.cont [11/16] %v581, 128
      %733 = vxpose.xlu0.b32.cont [12/16] %v582, 128
      %734 = vxpose.xlu0.b32.cont [13/16] %v583, 128
      %735 = vxpose.xlu0.b32.cont [14/16] %v584, 128
      %736 = vxpose.xlu0.b32.cont [15/16] %v585, 128
      %737 = vxpose.xlu0.b32.end [16/16] %v586, 128
      %v738 = vpop.trf.xlu0
      %v739 = vpop.trf.xlu0
      %v740 = vpop.trf.xlu0
      %v741 = vpop.trf.xlu0
      %v742 = vpop.trf.xlu0
      %v743 = vpop.trf.xlu0
      %v744 = vpop.trf.xlu0
      %v745 = vpop.trf.xlu0
      %v746 = vpop.trf.xlu0
      %v747 = vpop.trf.xlu0
      %v748 = vpop.trf.xlu0
      %v749 = vpop.trf.xlu0
      %v750 = vpop.trf.xlu0
      %v751 = vpop.trf.xlu0
      %v752 = vpop.trf.xlu0
      %v753 = vpop.trf.xlu0
      %754 = vxpose.xlu0.b32.start [1/16] %v587, 128
      %755 = vxpose.xlu0.b32.cont [2/16] %v588, 128
      %756 = vxpose.xlu0.b32.cont [3/16] %v589, 128
      %757 = vxpose.xlu0.b32.cont [4/16] %v590, 128
      %758 = vxpose.xlu0.b32.cont [5/16] %v591, 128
      %759 = vxpose.xlu0.b32.cont [6/16] %v592, 128
      %760 = vxpose.xlu0.b32.cont [7/16] %v593, 128
      %761 = vxpose.xlu0.b32.cont [8/16] %v594, 128
      %762 = vxpose.xlu0.b32.cont [9/16] %v595, 128
      %763 = vxpose.xlu0.b32.cont [10/16] %v596, 128
      %764 = vxpose.xlu0.b32.cont [11/16] %v597, 128
      %765 = vxpose.xlu0.b32.cont [12/16] %v598, 128
      %766 = vxpose.xlu0.b32.cont [13/16] %v599, 128
      %767 = vxpose.xlu0.b32.cont [14/16] %v600, 128
      %768 = vxpose.xlu0.b32.cont [15/16] %v601, 128
      %769 = vxpose.xlu0.b32.end [16/16] %v602, 128
      %v770 = vpop.trf.xlu0
      %v771 = vpop.trf.xlu0
      %v772 = vpop.trf.xlu0
      %v773 = vpop.trf.xlu0
      %v774 = vpop.trf.xlu0
      %v775 = vpop.trf.xlu0
      %v776 = vpop.trf.xlu0
      %v777 = vpop.trf.xlu0
      %v778 = vpop.trf.xlu0
      %v779 = vpop.trf.xlu0
      %v780 = vpop.trf.xlu0
      %v781 = vpop.trf.xlu0
      %v782 = vpop.trf.xlu0
      %v783 = vpop.trf.xlu0
      %v784 = vpop.trf.xlu0
      %v785 = vpop.trf.xlu0
      %786 = vxpose.xlu0.b32.start [1/16] %v603, 128
      %787 = vxpose.xlu0.b32.cont [2/16] %v604, 128
      %788 = vxpose.xlu0.b32.cont [3/16] %v605, 128
      %789 = vxpose.xlu0.b32.cont [4/16] %v606, 128
      %790 = vxpose.xlu0.b32.cont [5/16] %v607, 128
      %791 = vxpose.xlu0.b32.cont [6/16] %v608, 128
      %792 = vxpose.xlu0.b32.cont [7/16] %v609, 128
      %793 = vxpose.xlu0.b32.cont [8/16] %v610, 128
      %794 = vxpose.xlu0.b32.cont [9/16] %v611, 128
      %795 = vxpose.xlu0.b32.cont [10/16] %v612, 128
      %796 = vxpose.xlu0.b32.cont [11/16] %v613, 128
      %797 = vxpose.xlu0.b32.cont [12/16] %v614, 128
      %798 = vxpose.xlu0.b32.cont [13/16] %v615, 128
      %799 = vxpose.xlu0.b32.cont [14/16] %v616, 128
      %800 = vxpose.xlu0.b32.cont [15/16] %v617, 128
      %801 = vxpose.xlu0.b32.end [16/16] %v618, 128
      %v802 = vpop.trf.xlu0
      %v803 = vpop.trf.xlu0
      %v804 = vpop.trf.xlu0
      %v805 = vpop.trf.xlu0
      %v806 = vpop.trf.xlu0
      %v807 = vpop.trf.xlu0
      %v808 = vpop.trf.xlu0
      %v809 = vpop.trf.xlu0
      %v810 = vpop.trf.xlu0
      %v811 = vpop.trf.xlu0
      %v812 = vpop.trf.xlu0
      %v813 = vpop.trf.xlu0
      %v814 = vpop.trf.xlu0
      %v815 = vpop.trf.xlu0
      %v816 = vpop.trf.xlu0
      %v817 = vpop.trf.xlu0
      %818 = vmatprep.subr.mxu0 0.0
      %819 = vmatpush1.msra.mxu0 %v619
      %820 = vmatprep.subr.mxu0 0.0
      %821 = vmatpush1.msra.mxu0 %v620
      %822 = vmatprep.subr.mxu0 0.0
      %823 = vmatpush1.msra.mxu0 %v621
      %824 = vmatprep.subr.mxu0 0.0
      %825 = vmatpush1.msra.mxu0 %v622
      %826 = vmatprep.subr.mxu0 0.0
      %827 = vmatpush1.msra.mxu0 %v623
      %828 = vmatprep.subr.mxu0 0.0
      %829 = vmatpush1.msra.mxu0 %v624
      %830 = vmatprep.subr.mxu0 0.0
      %831 = vmatpush1.msra.mxu0 %v625
      %832 = vmatprep.subr.mxu0 0.0
      %833 = vmatpush1.msra.mxu0 %v626
      %834 = vmatprep.subr.mxu0 0.0
      %835 = vmatpush1.msra.mxu0 %v627
      %836 = vmatprep.subr.mxu0 0.0
      %837 = vmatpush1.msra.mxu0 %v628
      %838 = vmatprep.subr.mxu0 0.0
      %839 = vmatpush1.msra.mxu0 %v629
      %840 = vmatprep.subr.mxu0 0.0
      %841 = vmatpush1.msra.mxu0 %v630
      %842 = vmatprep.subr.mxu0 0.0
      %843 = vmatpush1.msra.mxu0 %v631
      %844 = vmatprep.subr.mxu0 0.0
      %845 = vmatpush1.msra.mxu0 %v632
      %846 = vmatprep.subr.mxu0 0.0
      %847 = vmatpush1.msra.mxu0 %v633
      %848 = vmatprep.subr.mxu0 0.0
      %849 = vmatpush1.msra.mxu0 %v634
      %850 = vmatprep.subr.mxu0 0.0
      %851 = vmatpush1.msra.mxu0 %v635
      %852 = vmatprep.subr.mxu0 0.0
      %853 = vmatpush1.msra.mxu0 %v636
      %854 = vmatprep.subr.mxu0 0.0
      %855 = vmatpush1.msra.mxu0 %v637
      %856 = vmatprep.subr.mxu0 0.0
      %857 = vmatpush1.msra.mxu0 %v638
      %858 = vmatprep.subr.mxu0 0.0
      %859 = vmatpush1.msra.mxu0 %v639
      %860 = vmatprep.subr.mxu0 0.0
      %861 = vmatpush1.msra.mxu0 %v640
      %862 = vmatprep.subr.mxu0 0.0
      %863 = vmatpush1.msra.mxu0 %v641
      %864 = vmatprep.subr.mxu0 0.0
      %865 = vmatpush1.msra.mxu0 %v642
      %866 = vmatprep.subr.mxu0 0.0
      %867 = vmatpush1.msra.mxu0 %v643
      %868 = vmatprep.subr.mxu0 0.0
      %869 = vmatpush1.msra.mxu0 %v644
      %870 = vmatprep.subr.mxu0 0.0
      %871 = vmatpush1.msra.mxu0 %v645
      %872 = vmatprep.subr.mxu0 0.0
      %873 = vmatpush1.msra.mxu0 %v646
      %874 = vmatprep.subr.mxu0 0.0
      %875 = vmatpush1.msra.mxu0 %v647
      %876 = vmatprep.subr.mxu0 0.0
      %877 = vmatpush1.msra.mxu0 %v648
      %878 = vmatprep.subr.mxu0 0.0
      %879 = vmatpush1.msra.mxu0 %v649
      %880 = vmatprep.subr.mxu0 0.0
      %881 = vmatpush1.msra.mxu0 %v650
      %882 = vmatprep.mubr.f32.mxu0 %v738
      %883 = vmatmul.mubr.f32.gmra.mrb[0].mxu0 %v706
      %v884 = vpop.f32.mrb[0].mxu0
      %v885 = vadd.f32 %v688, %v884
      %v886 = vpop.f32.mrb[0].mxu0
      %887 = vmatprep.mubr.f32.mxu0 %v739
      %888 = vmatmul.mubr.f32.gmra.mrb[0].mxu0 %v707
      %v889 = vpop.f32.mrb[0].mxu0
      %v890 = vadd.f32 %v688, %v889
      %v891 = vpop.f32.mrb[0].mxu0
      %892 = vdwg.mxu0
      %893 = vmatprep.subr.mxu0 0.0
      %894 = vmatpush1.msra.mxu0 %v651
      %895 = vmatprep.subr.mxu0 0.0
      %896 = vmatpush1.msra.mxu0 %v652
      %897 = vmatprep.subr.mxu0 0.0
      %898 = vmatpush1.msra.mxu0 %v653
      %899 = vmatprep.subr.mxu0 0.0
      %900 = vmatpush1.msra.mxu0 %v654
      %901 = vmatprep.subr.mxu0 0.0
      %902 = vmatpush1.msra.mxu0 %v655
      %903 = vmatprep.subr.mxu0 0.0
      %904 = vmatpush1.msra.mxu0 %v656
      %905 = vmatprep.subr.mxu0 0.0
      %906 = vmatpush1.msra.mxu0 %v657
      %907 = vmatprep.subr.mxu0 0.0
      %908 = vmatpush1.msra.mxu0 %v658
      %909 = vmatprep.subr.mxu0 0.0
      %910 = vmatpush1.msra.mxu0 %v659
      %911 = vmatprep.subr.mxu0 0.0
      %912 = vmatpush1.msra.mxu0 %v660
      %913 = vmatprep.subr.mxu0 0.0
      %914 = vmatpush1.msra.mxu0 %v661
      %915 = vmatprep.subr.mxu0 0.0
      %916 = vmatpush1.msra.mxu0 %v662
      %917 = vmatprep.subr.mxu0 0.0
      %918 = vmatpush1.msra.mxu0 %v663
      %919 = vmatprep.subr.mxu0 0.0
      %920 = vmatpush1.msra.mxu0 %v664
      %921 = vmatprep.subr.mxu0 0.0
      %922 = vmatpush1.msra.mxu0 %v665
      %923 = vmatprep.subr.mxu0 0.0
      %924 = vmatpush1.msra.mxu0 %v666
      %925 = vmatprep.subr.mxu0 0.0
      %926 = vmatpush1.msra.mxu0 %v667
      %927 = vmatprep.subr.mxu0 0.0
      %928 = vmatpush1.msra.mxu0 %v668
      %929 = vmatprep.subr.mxu0 0.0
      %930 = vmatpush1.msra.mxu0 %v669
      %931 = vmatprep.subr.mxu0 0.0
      %932 = vmatpush1.msra.mxu0 %v670
      %933 = vmatprep.subr.mxu0 0.0
      %934 = vmatpush1.msra.mxu0 %v671
      %935 = vmatprep.subr.mxu0 0.0
      %936 = vmatpush1.msra.mxu0 %v672
      %937 = vmatprep.subr.mxu0 0.0
      %938 = vmatpush1.msra.mxu0 %v673
      %939 = vmatprep.subr.mxu0 0.0
      %940 = vmatpush1.msra.mxu0 %v674
      %941 = vmatprep.subr.mxu0 0.0
      %942 = vmatpush1.msra.mxu0 %v675
      %943 = vmatprep.subr.mxu0 0.0
      %944 = vmatpush1.msra.mxu0 %v676
      %945 = vmatprep.subr.mxu0 0.0
      %946 = vmatpush1.msra.mxu0 %v677
      %947 = vmatprep.subr.mxu0 0.0
      %948 = vmatpush1.msra.mxu0 %v678
      %949 = vmatprep.subr.mxu0 0.0
      %950 = vmatpush1.msra.mxu0 %v679
      %951 = vmatprep.subr.mxu0 0.0
      %952 = vmatpush1.msra.mxu0 %v680
      %953 = vmatprep.subr.mxu0 0.0
      %954 = vmatpush1.msra.mxu0 %v681
      %955 = vmatprep.subr.mxu0 0.0
      %956 = vmatpush1.msra.mxu0 %v682
      %957 = vmatprep.mubr.f32.mxu0 %v802
      %958 = vmatmul.mubr.f32.gmra.mrb[0].mxu0 %v770
      %v959 = vpop.f32.mrb[0].mxu0
      %v960 = vadd.f32 %v885, %v959
      %v961 = vpop.f32.mrb[0].mxu0
      %962 = vmatprep.mubr.f32.mxu0 %v803
      %963 = vmatmul.mubr.f32.gmra.mrb[0].mxu0 %v771
      %v964 = vpop.f32.mrb[0].mxu0
      %v965 = vadd.f32 %v890, %v964
      %v966 = vpop.f32.mrb[0].mxu0
      %967 = vdwg.mxu0
      %v968 = vld [vmem:[%s539] sm:$0xff]
      %v969 = vld [vmem:[%s539 + $0x8] sm:$0xff]
      %v970 = vld [vmem:[%s539 + $0x10] sm:$0xff]
      %v971 = vld [vmem:[%s539 + $0x18] sm:$0xff]
      %v972 = vld [vmem:[%s539 + $0x20] sm:$0xff]
      %v973 = vld [vmem:[%s539 + $0x28] sm:$0xff]
      %v974 = vld [vmem:[%s539 + $0x30] sm:$0xff]
      %v975 = vld [vmem:[%s539 + $0x38] sm:$0xff]
      %v976 = vld [vmem:[%s539 + $0x40] sm:$0xff]
      %v977 = vld [vmem:[%s539 + $0x48] sm:$0xff]
      %v978 = vld [vmem:[%s539 + $0x50] sm:$0xff]
      %v979 = vld [vmem:[%s539 + $0x58] sm:$0xff]
      %v980 = vld [vmem:[%s539 + $0x60] sm:$0xff]
      %v981 = vld [vmem:[%s539 + $0x68] sm:$0xff]
      %v982 = vld [vmem:[%s539 + $0x70] sm:$0xff]
      %v983 = vld [vmem:[%s539 + $0x78] sm:$0xff]
      %v984 = vld [vmem:[%s539 + $0x80] sm:$0xff]
      %v985 = vld [vmem:[%s539 + $0x88] sm:$0xff]
      %v986 = vld [vmem:[%s539 + $0x90] sm:$0xff]
      %v987 = vld [vmem:[%s539 + $0x98] sm:$0xff]
      %v988 = vld [vmem:[%s539 + $0xa0] sm:$0xff]
      %v989 = vld [vmem:[%s539 + $0xa8] sm:$0xff]
      %v990 = vld [vmem:[%s539 + $0xb0] sm:$0xff]
      %v991 = vld [vmem:[%s539 + $0xb8] sm:$0xff]
      %v992 = vld [vmem:[%s539 + $0xc0] sm:$0xff]
      %v993 = vld [vmem:[%s539 + $0xc8] sm:$0xff]
      %v994 = vld [vmem:[%s539 + $0xd0] sm:$0xff]
      %v995 = vld [vmem:[%s539 + $0xd8] sm:$0xff]
      %v996 = vld [vmem:[%s539 + $0xe0] sm:$0xff]
      %v997 = vld [vmem:[%s539 + $0xe8] sm:$0xff]
      %v998 = vld [vmem:[%s539 + $0xf0] sm:$0xff]
      %v999 = vld [vmem:[%s539 + $0xf8] sm:$0xff]
      %v1000 = vld [vmem:[%s6] sm:$0xff]
      %v1001 = vld [vmem:[%s6 + $0x8] sm:$0xff]
      %v1002 = vld [vmem:[%s6 + $0x10] sm:$0xff]
      %v1003 = vld [vmem:[%s6 + $0x18] sm:$0xff]
      %v1004 = vld [vmem:[%s6 + $0x20] sm:$0xff]
      %v1005 = vld [vmem:[%s6 + $0x28] sm:$0xff]
      %v1006 = vld [vmem:[%s6 + $0x30] sm:$0xff]
      %v1007 = vld [vmem:[%s6 + $0x38] sm:$0xff]
      %v1008 = vld [vmem:[%s6 + $0x40] sm:$0xff]
      %v1009 = vld [vmem:[%s6 + $0x48] sm:$0xff]
      %v1010 = vld [vmem:[%s6 + $0x50] sm:$0xff]
      %v1011 = vld [vmem:[%s6 + $0x58] sm:$0xff]
      %v1012 = vld [vmem:[%s6 + $0x60] sm:$0xff]
      %v1013 = vld [vmem:[%s6 + $0x68] sm:$0xff]
      %v1014 = vld [vmem:[%s6 + $0x70] sm:$0xff]
      %v1015 = vld [vmem:[%s6 + $0x78] sm:$0xff]
      %v1016 = vld [vmem:[%s6 + $0x80] sm:$0xff]
      %v1017 = vld [vmem:[%s6 + $0x88] sm:$0xff]
      %v1018 = vld [vmem:[%s6 + $0x90] sm:$0xff]
      %v1019 = vld [vmem:[%s6 + $0x98] sm:$0xff]
      %v1020 = vld [vmem:[%s6 + $0xa0] sm:$0xff]
      %v1021 = vld [vmem:[%s6 + $0xa8] sm:$0xff]
      %v1022 = vld [vmem:[%s6 + $0xb0] sm:$0xff]
      %v1023 = vld [vmem:[%s6 + $0xb8] sm:$0xff]
      %v1024 = vld [vmem:[%s6 + $0xc0] sm:$0xff]
      %v1025 = vld [vmem:[%s6 + $0xc8] sm:$0xff]
      %v1026 = vld [vmem:[%s6 + $0xd0] sm:$0xff]
      %v1027 = vld [vmem:[%s6 + $0xd8] sm:$0xff]
      %v1028 = vld [vmem:[%s6 + $0xe0] sm:$0xff]
      %v1029 = vld [vmem:[%s6 + $0xe8] sm:$0xff]
      %v1030 = vld [vmem:[%s6 + $0xf0] sm:$0xff]
      %v1031 = vld [vmem:[%s6 + $0xf8] sm:$0xff]
      %v1032 = vld [vmem:[%s7] sm:$0x1]
      %v1034 = vlaneseq
      %v1035 = vshrl.u32 %v1034, 7
      %v1036 = vsub.s32 0, %v1035
      %v1037 = vrot.slane %v1032, %v1036
      %1039 = vxpose.xlu0.b32.start [1/16] %v968, 128
      %1040 = vxpose.xlu0.b32.cont [2/16] %v969, 128
      %1041 = vxpose.xlu0.b32.cont [3/16] %v970, 128
      %1042 = vxpose.xlu0.b32.cont [4/16] %v971, 128
      %1043 = vxpose.xlu0.b32.cont [5/16] %v972, 128
      %1044 = vxpose.xlu0.b32.cont [6/16] %v973, 128
      %1045 = vxpose.xlu0.b32.cont [7/16] %v974, 128
      %1046 = vxpose.xlu0.b32.cont [8/16] %v975, 128
      %1047 = vxpose.xlu0.b32.cont [9/16] %v976, 128
      %1048 = vxpose.xlu0.b32.cont [10/16] %v977, 128
      %1049 = vxpose.xlu0.b32.cont [11/16] %v978, 128
      %1050 = vxpose.xlu0.b32.cont [12/16] %v979, 128
      %1051 = vxpose.xlu0.b32.cont [13/16] %v980, 128
      %1052 = vxpose.xlu0.b32.cont [14/16] %v981, 128
      %1053 = vxpose.xlu0.b32.cont [15/16] %v982, 128
      %1054 = vxpose.xlu0.b32.end [16/16] %v983, 128
      %v1055 = vpop.trf.xlu0
      %v1056 = vpop.trf.xlu0
      %v1057 = vpop.trf.xlu0
      %v1058 = vpop.trf.xlu0
      %v1059 = vpop.trf.xlu0
      %v1060 = vpop.trf.xlu0
      %v1061 = vpop.trf.xlu0
      %v1062 = vpop.trf.xlu0
      %v1063 = vpop.trf.xlu0
      %v1064 = vpop.trf.xlu0
      %v1065 = vpop.trf.xlu0
      %v1066 = vpop.trf.xlu0
      %v1067 = vpop.trf.xlu0
      %v1068 = vpop.trf.xlu0
      %v1069 = vpop.trf.xlu0
      %v1070 = vpop.trf.xlu0
      %1071 = vxpose.xlu0.b32.start [1/16] %v984, 128
      %1072 = vxpose.xlu0.b32.cont [2/16] %v985, 128
      %1073 = vxpose.xlu0.b32.cont [3/16] %v986, 128
      %1074 = vxpose.xlu0.b32.cont [4/16] %v987, 128
      %1075 = vxpose.xlu0.b32.cont [5/16] %v988, 128
      %1076 = vxpose.xlu0.b32.cont [6/16] %v989, 128
      %1077 = vxpose.xlu0.b32.cont [7/16] %v990, 128
      %1078 = vxpose.xlu0.b32.cont [8/16] %v991, 128
      %1079 = vxpose.xlu0.b32.cont [9/16] %v992, 128
      %1080 = vxpose.xlu0.b32.cont [10/16] %v993, 128
      %1081 = vxpose.xlu0.b32.cont [11/16] %v994, 128
      %1082 = vxpose.xlu0.b32.cont [12/16] %v995, 128
      %1083 = vxpose.xlu0.b32.cont [13/16] %v996, 128
      %1084 = vxpose.xlu0.b32.cont [14/16] %v997, 128
      %1085 = vxpose.xlu0.b32.cont [15/16] %v998, 128
      %1086 = vxpose.xlu0.b32.end [16/16] %v999, 128
      %v1087 = vpop.trf.xlu0
      %v1088 = vpop.trf.xlu0
      %v1089 = vpop.trf.xlu0
      %v1090 = vpop.trf.xlu0
      %v1091 = vpop.trf.xlu0
      %v1092 = vpop.trf.xlu0
      %v1093 = vpop.trf.xlu0
      %v1094 = vpop.trf.xlu0
      %v1095 = vpop.trf.xlu0
      %v1096 = vpop.trf.xlu0
      %v1097 = vpop.trf.xlu0
      %v1098 = vpop.trf.xlu0
      %v1099 = vpop.trf.xlu0
      %v1100 = vpop.trf.xlu0
      %v1101 = vpop.trf.xlu0
      %v1102 = vpop.trf.xlu0
      %1103 = vmatprep.subr.mxu0 0.0
      %1104 = vmatpush1.msra.mxu0 %v1000
      %1105 = vmatprep.subr.mxu0 0.0
      %1106 = vmatpush1.msra.mxu0 %v1001
      %1107 = vmatprep.subr.mxu0 0.0
      %1108 = vmatpush1.msra.mxu0 %v1002
      %1109 = vmatprep.subr.mxu0 0.0
      %1110 = vmatpush1.msra.mxu0 %v1003
      %1111 = vmatprep.subr.mxu0 0.0
      %1112 = vmatpush1.msra.mxu0 %v1004
      %1113 = vmatprep.subr.mxu0 0.0
      %1114 = vmatpush1.msra.mxu0 %v1005
      %1115 = vmatprep.subr.mxu0 0.0
      %1116 = vmatpush1.msra.mxu0 %v1006
      %1117 = vmatprep.subr.mxu0 0.0
      %1118 = vmatpush1.msra.mxu0 %v1007
      %1119 = vmatprep.subr.mxu0 0.0
      %1120 = vmatpush1.msra.mxu0 %v1008
      %1121 = vmatprep.subr.mxu0 0.0
      %1122 = vmatpush1.msra.mxu0 %v1009
      %1123 = vmatprep.subr.mxu0 0.0
      %1124 = vmatpush1.msra.mxu0 %v1010
      %1125 = vmatprep.subr.mxu0 0.0
      %1126 = vmatpush1.msra.mxu0 %v1011
      %1127 = vmatprep.subr.mxu0 0.0
      %1128 = vmatpush1.msra.mxu0 %v1012
      %1129 = vmatprep.subr.mxu0 0.0
      %1130 = vmatpush1.msra.mxu0 %v1013
      %1131 = vmatprep.subr.mxu0 0.0
      %1132 = vmatpush1.msra.mxu0 %v1014
      %1133 = vmatprep.subr.mxu0 0.0
      %1134 = vmatpush1.msra.mxu0 %v1015
      %1135 = vmatprep.subr.mxu0 0.0
      %1136 = vmatpush1.msra.mxu0 %v1016
      %1137 = vmatprep.subr.mxu0 0.0
      %1138 = vmatpush1.msra.mxu0 %v1017
      %1139 = vmatprep.subr.mxu0 0.0
      %1140 = vmatpush1.msra.mxu0 %v1018
      %1141 = vmatprep.subr.mxu0 0.0
      %1142 = vmatpush1.msra.mxu0 %v1019
      %1143 = vmatprep.subr.mxu0 0.0
      %1144 = vmatpush1.msra.mxu0 %v1020
      %1145 = vmatprep.subr.mxu0 0.0
      %1146 = vmatpush1.msra.mxu0 %v1021
      %1147 = vmatprep.subr.mxu0 0.0
      %1148 = vmatpush1.msra.mxu0 %v1022
      %1149 = vmatprep.subr.mxu0 0.0
      %1150 = vmatpush1.msra.mxu0 %v1023
      %1151 = vmatprep.subr.mxu0 0.0
      %1152 = vmatpush1.msra.mxu0 %v1024
      %1153 = vmatprep.subr.mxu0 0.0
      %1154 = vmatpush1.msra.mxu0 %v1025
      %1155 = vmatprep.subr.mxu0 0.0
      %1156 = vmatpush1.msra.mxu0 %v1026
      %1157 = vmatprep.subr.mxu0 0.0
      %1158 = vmatpush1.msra.mxu0 %v1027
      %1159 = vmatprep.subr.mxu0 0.0
      %1160 = vmatpush1.msra.mxu0 %v1028
      %1161 = vmatprep.subr.mxu0 0.0
      %1162 = vmatpush1.msra.mxu0 %v1029
      %1163 = vmatprep.subr.mxu0 0.0
      %1164 = vmatpush1.msra.mxu0 %v1030
      %1165 = vmatprep.subr.mxu0 0.0
      %1166 = vmatpush1.msra.mxu0 %v1031
      %1167 = vmatprep.mubr.f32.mxu0 %v1087
      %1168 = vmatmul.mubr.f32.gmra.mrb[0].mxu0 %v1055
      %v1169 = vpop.f32.mrb[0].mxu0
      %v1170 = vadd.f32 %v1037, %v1169
      %v1171 = vpop.f32.mrb[0].mxu0
      %1172 = vmatprep.mubr.f32.mxu0 %v1088
      %1173 = vmatmul.mubr.f32.gmra.mrb[0].mxu0 %v1056
      %v1174 = vpop.f32.mrb[0].mxu0
      %v1175 = vadd.f32 %v1037, %v1174
      %v1176 = vpop.f32.mrb[0].mxu0
      %1177 = vmatprep.mubr.f32.mxu0 %v1089
      %1178 = vmatmul.mubr.f32.gmra.mrb[0].mxu0 %v1057
      %v1179 = vpop.f32.mrb[0].mxu0
      %v1180 = vadd.f32 %v1037, %v1179
      %v1181 = vpop.f32.mrb[0].mxu0
      %1182 = vmatprep.mubr.f32.mxu0 %v1090
      %1183 = vmatmul.mubr.f32.gmra.mrb[0].mxu0 %v1058
      %v1184 = vpop.f32.mrb[0].mxu0
      %v1185 = vadd.f32 %v1037, %v1184
      %v1186 = vpop.f32.mrb[0].mxu0
      %1187 = vmatprep.mubr.f32.mxu0 %v1091
      %1188 = vmatmul.mubr.f32.gmra.mrb[0].mxu0 %v1059
      %v1189 = vpop.f32.mrb[0].mxu0
      %v1190 = vadd.f32 %v1037, %v1189
      %v1191 = vpop.f32.mrb[0].mxu0
      %1192 = vmatprep.mubr.f32.mxu0 %v1092
      %1193 = vmatmul.mubr.f32.gmra.mrb[0].mxu0 %v1060
      %v1194 = vpop.f32.mrb[0].mxu0
      %v1195 = vadd.f32 %v1037, %v1194
      %v1196 = vpop.f32.mrb[0].mxu0
      %1197 = vmatprep.mubr.f32.mxu0 %v1093
      %1198 = vmatmul.mubr.f32.gmra.mrb[0].mxu0 %v1061
      %v1199 = vpop.f32.mrb[0].mxu0
      %v1200 = vadd.f32 %v1037, %v1199
      %v1201 = vpop.f32.mrb[0].mxu0
      %1202 = vmatprep.mubr.f32.mxu0 %v1094
      %1203 = vmatmul.mubr.f32.gmra.mrb[0].mxu0 %v1062
      %v1204 = vpop.f32.mrb[0].mxu0
      %v1205 = vadd.f32 %v1037, %v1204
      %v1206 = vpop.f32.mrb[0].mxu0
      %1207 = vdwg.mxu0
      %v1208 = vld [vmem:[%s12] sm:$0xff]
      %v1209 = vld [vmem:[%s12 + $0x8] sm:$0xff]
      %v1210 = vld [vmem:[%s12 + $0x10] sm:$0xff]
      %v1211 = vld [vmem:[%s12 + $0x18] sm:$0xff]
      %v1212 = vld [vmem:[%s12 + $0x20] sm:$0xff]
      %v1213 = vld [vmem:[%s12 + $0x28] sm:$0xff]
      %v1214 = vld [vmem:[%s12 + $0x30] sm:$0xff]
      %v1215 = vld [vmem:[%s12 + $0x38] sm:$0xff]
      %vm1216 = vcmask 130048
      %v1218 = vsel %vm1216, %v1208, 0
      %v1221 = vsel %vm1216, %v1209, 0
      %v1224 = vsel %vm1216, %v1210, 0
      %v1227 = vsel %vm1216, %v1211, 0
      %v1230 = vsel %vm1216, %v1212, 0
      %v1233 = vsel %vm1216, %v1213, 0
      %v1236 = vsel %vm1216, %v1214, 0
      %v1239 = vsel %vm1216, %v1215, 0
      %1241 = vmatprep.subr.mxu0 0.0
      %1242 = vmatpush1.msra.mxu0 %v960
      %1243 = vmatprep.subr.mxu0 0.0
      %1244 = vmatpush1.msra.mxu0 %v965
      %1245 = vmatprep.subr.mxu0 0.0
      %1246 = vmatpush1.msra.mxu0 0.0
      %1247 = vmatprep.subr.mxu0 0.0
      %1248 = vmatpush1.msra.mxu0 0.0
      %1249 = vmatprep.subr.mxu0 0.0
      %1250 = vmatpush1.msra.mxu0 0.0
      %1251 = vmatprep.subr.mxu0 0.0
      %1252 = vmatpush1.msra.mxu0 0.0
      %1253 = vmatprep.subr.mxu0 0.0
      %1254 = vmatpush1.msra.mxu0 0.0
      %1255 = vmatprep.subr.mxu0 0.0
      %1256 = vmatpush1.msra.mxu0 0.0
      %1257 = vmatprep.subr.mxu0 0.0
      %1258 = vmatpush1.msra.mxu0 0.0
      %1259 = vmatprep.subr.mxu0 0.0
      %1260 = vmatpush1.msra.mxu0 0.0
      %1261 = vmatprep.subr.mxu0 0.0
      %1262 = vmatpush1.msra.mxu0 0.0
      %1263 = vmatprep.subr.mxu0 0.0
      %1264 = vmatpush1.msra.mxu0 0.0
      %1265 = vmatprep.subr.mxu0 0.0
      %1266 = vmatpush1.msra.mxu0 0.0
      %1267 = vmatprep.subr.mxu0 0.0
      %1268 = vmatpush1.msra.mxu0 0.0
      %1269 = vmatprep.subr.mxu0 0.0
      %1270 = vmatpush1.msra.mxu0 0.0
      %1271 = vmatprep.subr.mxu0 0.0
      %1272 = vmatpush1.msra.mxu0 0.0
      %1273 = vmatprep.subr.mxu0 0.0
      %1274 = vmatpush1.msra.mxu0 0.0
      %1275 = vmatprep.subr.mxu0 0.0
      %1276 = vmatpush1.msra.mxu0 0.0
      %1277 = vmatprep.subr.mxu0 0.0
      %1278 = vmatpush1.msra.mxu0 0.0
      %1279 = vmatprep.subr.mxu0 0.0
      %1280 = vmatpush1.msra.mxu0 0.0
      %1281 = vmatprep.subr.mxu0 0.0
      %1282 = vmatpush1.msra.mxu0 0.0
      %1283 = vmatprep.subr.mxu0 0.0
      %1284 = vmatpush1.msra.mxu0 0.0
      %1285 = vmatprep.subr.mxu0 0.0
      %1286 = vmatpush1.msra.mxu0 0.0
      %1287 = vmatprep.subr.mxu0 0.0
      %1288 = vmatpush1.msra.mxu0 0.0
      %1289 = vmatprep.subr.mxu0 0.0
      %1290 = vmatpush1.msra.mxu0 0.0
      %1291 = vmatprep.subr.mxu0 0.0
      %1292 = vmatpush1.msra.mxu0 0.0
      %1293 = vmatprep.subr.mxu0 0.0
      %1294 = vmatpush1.msra.mxu0 0.0
      %1295 = vmatprep.subr.mxu0 0.0
      %1296 = vmatpush1.msra.mxu0 0.0
      %1297 = vmatprep.subr.mxu0 0.0
      %1298 = vmatpush1.msra.mxu0 0.0
      %1299 = vmatprep.subr.mxu0 0.0
      %1300 = vmatpush1.msra.mxu0 0.0
      %1301 = vmatprep.subr.mxu0 0.0
      %1302 = vmatpush1.msra.mxu0 0.0
      %1303 = vmatprep.subr.mxu0 0.0
      %1304 = vmatpush1.msra.mxu0 0.0
      %1305 = vmatprep.mubr.f32.mxu0 0.0
      %1306 = vmatmul.mubr.f32.gmra.mrb[0].mxu0 %v1218
      %v1307 = vpop.f32.mrb[0].mxu0
      %v1308 = vadd.f32 %v1170, %v1307
      %v1309 = vpop.f32.mrb[0].mxu0
      %1310 = vmatprep.mubr.f32.mxu0 0.0
      %1311 = vmatmul.mubr.f32.gmra.mrb[0].mxu0 %v1221
      %v1312 = vpop.f32.mrb[0].mxu0
      %v1313 = vadd.f32 %v1175, %v1312
      %v1314 = vpop.f32.mrb[0].mxu0
      %1315 = vmatprep.mubr.f32.mxu0 0.0
      %1316 = vmatmul.mubr.f32.gmra.mrb[0].mxu0 %v1224
      %v1317 = vpop.f32.mrb[0].mxu0
      %v1318 = vadd.f32 %v1180, %v1317
      %v1319 = vpop.f32.mrb[0].mxu0
      %1320 = vmatprep.mubr.f32.mxu0 0.0
      %1321 = vmatmul.mubr.f32.gmra.mrb[0].mxu0 %v1227
      %v1322 = vpop.f32.mrb[0].mxu0
      %v1323 = vadd.f32 %v1185, %v1322
      %v1324 = vpop.f32.mrb[0].mxu0
      %1325 = vmatprep.mubr.f32.mxu0 0.0
      %1326 = vmatmul.mubr.f32.gmra.mrb[0].mxu0 %v1230
      %v1327 = vpop.f32.mrb[0].mxu0
      %v1328 = vadd.f32 %v1190, %v1327
      %v1329 = vpop.f32.mrb[0].mxu0
      %1330 = vmatprep.mubr.f32.mxu0 0.0
      %1331 = vmatmul.mubr.f32.gmra.mrb[0].mxu0 %v1233
      %v1332 = vpop.f32.mrb[0].mxu0
      %v1333 = vadd.f32 %v1195, %v1332
      %v1334 = vpop.f32.mrb[0].mxu0
      %1335 = vmatprep.mubr.f32.mxu0 0.0
      %1336 = vmatmul.mubr.f32.gmra.mrb[0].mxu0 %v1236
      %v1337 = vpop.f32.mrb[0].mxu0
      %v1338 = vadd.f32 %v1200, %v1337
      %v1339 = vpop.f32.mrb[0].mxu0
      %1340 = vmatprep.mubr.f32.mxu0 0.0
      %1341 = vmatmul.mubr.f32.gmra.mrb[0].mxu0 %v1239
      %v1342 = vpop.f32.mrb[0].mxu0
      %v1343 = vadd.f32 %v1205, %v1342
      %v1344 = vpop.f32.mrb[0].mxu0
      %1345 = vdwg.mxu0
      %v1346 = vld [vmem:[%s544] sm:$0xff]
      %v1347 = vld [vmem:[%s544 + $0x8] sm:$0xff]
      %v1348 = vld [vmem:[%s544 + $0x10] sm:$0xff]
      %v1349 = vld [vmem:[%s544 + $0x18] sm:$0xff]
      %v1350 = vld [vmem:[%s544 + $0x20] sm:$0xff]
      %v1351 = vld [vmem:[%s544 + $0x28] sm:$0xff]
      %v1352 = vld [vmem:[%s544 + $0x30] sm:$0xff]
      %v1353 = vld [vmem:[%s544 + $0x38] sm:$0xff]
      %v1354 = vld [vmem:[%s544 + $0x40] sm:$0xff]
      %v1355 = vld [vmem:[%s544 + $0x48] sm:$0xff]
      %v1356 = vld [vmem:[%s544 + $0x50] sm:$0xff]
      %v1357 = vld [vmem:[%s544 + $0x58] sm:$0xff]
      %v1358 = vld [vmem:[%s544 + $0x60] sm:$0xff]
      %v1359 = vld [vmem:[%s544 + $0x68] sm:$0xff]
      %v1360 = vld [vmem:[%s544 + $0x70] sm:$0xff]
      %v1361 = vld [vmem:[%s544 + $0x78] sm:$0xff]
      %v1362 = vld [vmem:[%s544 + $0x80] sm:$0xff]
      %v1363 = vld [vmem:[%s544 + $0x88] sm:$0xff]
      %v1364 = vld [vmem:[%s544 + $0x90] sm:$0xff]
      %v1365 = vld [vmem:[%s544 + $0x98] sm:$0xff]
      %v1366 = vld [vmem:[%s544 + $0xa0] sm:$0xff]
      %v1367 = vld [vmem:[%s544 + $0xa8] sm:$0xff]
      %v1368 = vld [vmem:[%s544 + $0xb0] sm:$0xff]
      %v1369 = vld [vmem:[%s544 + $0xb8] sm:$0xff]
      %v1370 = vld [vmem:[%s544 + $0xc0] sm:$0xff]
      %v1371 = vld [vmem:[%s544 + $0xc8] sm:$0xff]
      %v1372 = vld [vmem:[%s544 + $0xd0] sm:$0xff]
      %v1373 = vld [vmem:[%s544 + $0xd8] sm:$0xff]
      %v1374 = vld [vmem:[%s544 + $0xe0] sm:$0xff]
      %v1375 = vld [vmem:[%s544 + $0xe8] sm:$0xff]
      %v1376 = vld [vmem:[%s544 + $0xf0] sm:$0xff]
      %v1377 = vld [vmem:[%s544 + $0xf8] sm:$0xff]
      %v1378 = vld [vmem:[%s8] sm:$0xff]
      %v1379 = vld [vmem:[%s8 + $0x8] sm:$0xff]
      %v1380 = vld [vmem:[%s8 + $0x10] sm:$0xff]
      %v1381 = vld [vmem:[%s8 + $0x18] sm:$0xff]
      %v1382 = vld [vmem:[%s8 + $0x20] sm:$0xff]
      %v1383 = vld [vmem:[%s8 + $0x28] sm:$0xff]
      %v1384 = vld [vmem:[%s8 + $0x30] sm:$0xff]
      %v1385 = vld [vmem:[%s8 + $0x38] sm:$0xff]
      %v1386 = vld [vmem:[%s8 + $0x40] sm:$0xff]
      %v1387 = vld [vmem:[%s8 + $0x48] sm:$0xff]
      %v1388 = vld [vmem:[%s8 + $0x50] sm:$0xff]
      %v1389 = vld [vmem:[%s8 + $0x58] sm:$0xff]
      %v1390 = vld [vmem:[%s8 + $0x60] sm:$0xff]
      %v1391 = vld [vmem:[%s8 + $0x68] sm:$0xff]
      %v1392 = vld [vmem:[%s8 + $0x70] sm:$0xff]
      %v1393 = vld [vmem:[%s8 + $0x78] sm:$0xff]
      %v1394 = vld [vmem:[%s9] sm:$0x1]
      %v1396 = vlaneseq
      %v1397 = vshrl.u32 %v1396, 7
      %v1398 = vsub.s32 0, %v1397
      %v1399 = vrot.slane %v1394, %v1398
      %1401 = vxpose.xlu0.b32.start [1/16] %v1346, 128
      %1402 = vxpose.xlu0.b32.cont [2/16] %v1348, 128
      %1403 = vxpose.xlu0.b32.cont [3/16] %v1350, 128
      %1404 = vxpose.xlu0.b32.cont [4/16] %v1352, 128
      %1405 = vxpose.xlu0.b32.cont [5/16] %v1354, 128
      %1406 = vxpose.xlu0.b32.cont [6/16] %v1356, 128
      %1407 = vxpose.xlu0.b32.cont [7/16] %v1358, 128
      %1408 = vxpose.xlu0.b32.cont [8/16] %v1360, 128
      %1409 = vxpose.xlu0.b32.cont [9/16] %v1362, 128
      %1410 = vxpose.xlu0.b32.cont [10/16] %v1364, 128
      %1411 = vxpose.xlu0.b32.cont [11/16] %v1366, 128
      %1412 = vxpose.xlu0.b32.cont [12/16] %v1368, 128
      %1413 = vxpose.xlu0.b32.cont [13/16] %v1370, 128
      %1414 = vxpose.xlu0.b32.cont [14/16] %v1372, 128
      %1415 = vxpose.xlu0.b32.cont [15/16] %v1374, 128
      %1416 = vxpose.xlu0.b32.end [16/16] %v1376, 128
      %v1417 = vpop.trf.xlu0
      %v1418 = vpop.trf.xlu0
      %v1419 = vpop.trf.xlu0
      %v1420 = vpop.trf.xlu0
      %v1421 = vpop.trf.xlu0
      %v1422 = vpop.trf.xlu0
      %v1423 = vpop.trf.xlu0
      %v1424 = vpop.trf.xlu0
      %v1425 = vpop.trf.xlu0
      %v1426 = vpop.trf.xlu0
      %v1427 = vpop.trf.xlu0
      %v1428 = vpop.trf.xlu0
      %v1429 = vpop.trf.xlu0
      %v1430 = vpop.trf.xlu0
      %v1431 = vpop.trf.xlu0
      %v1432 = vpop.trf.xlu0
      %1433 = vxpose.xlu0.b32.start [1/16] %v1347, 128
      %1434 = vxpose.xlu0.b32.cont [2/16] %v1349, 128
      %1435 = vxpose.xlu0.b32.cont [3/16] %v1351, 128
      %1436 = vxpose.xlu0.b32.cont [4/16] %v1353, 128
      %1437 = vxpose.xlu0.b32.cont [5/16] %v1355, 128
      %1438 = vxpose.xlu0.b32.cont [6/16] %v1357, 128
      %1439 = vxpose.xlu0.b32.cont [7/16] %v1359, 128
      %1440 = vxpose.xlu0.b32.cont [8/16] %v1361, 128
      %1441 = vxpose.xlu0.b32.cont [9/16] %v1363, 128
      %1442 = vxpose.xlu0.b32.cont [10/16] %v1365, 128
      %1443 = vxpose.xlu0.b32.cont [11/16] %v1367, 128
      %1444 = vxpose.xlu0.b32.cont [12/16] %v1369, 128
      %1445 = vxpose.xlu0.b32.cont [13/16] %v1371, 128
      %1446 = vxpose.xlu0.b32.cont [14/16] %v1373, 128
      %1447 = vxpose.xlu0.b32.cont [15/16] %v1375, 128
      %1448 = vxpose.xlu0.b32.end [16/16] %v1377, 128
      %v1449 = vpop.trf.xlu0
      %v1450 = vpop.trf.xlu0
      %v1451 = vpop.trf.xlu0
      %v1452 = vpop.trf.xlu0
      %v1453 = vpop.trf.xlu0
      %v1454 = vpop.trf.xlu0
      %v1455 = vpop.trf.xlu0
      %v1456 = vpop.trf.xlu0
      %v1457 = vpop.trf.xlu0
      %v1458 = vpop.trf.xlu0
      %v1459 = vpop.trf.xlu0
      %v1460 = vpop.trf.xlu0
      %v1461 = vpop.trf.xlu0
      %v1462 = vpop.trf.xlu0
      %v1463 = vpop.trf.xlu0
      %v1464 = vpop.trf.xlu0
      %1465 = vmatprep.subr.mxu0 0.0
      %1466 = vmatpush1.msra.mxu0 %v1378
      %1467 = vmatprep.subr.mxu0 0.0
      %1468 = vmatpush1.msra.mxu0 %v1379
      %1469 = vmatprep.subr.mxu0 0.0
      %1470 = vmatpush1.msra.mxu0 %v1380
      %1471 = vmatprep.subr.mxu0 0.0
      %1472 = vmatpush1.msra.mxu0 %v1381
      %1473 = vmatprep.subr.mxu0 0.0
      %1474 = vmatpush1.msra.mxu0 %v1382
      %1475 = vmatprep.subr.mxu0 0.0
      %1476 = vmatpush1.msra.mxu0 %v1383
      %1477 = vmatprep.subr.mxu0 0.0
      %1478 = vmatpush1.msra.mxu0 %v1384
      %1479 = vmatprep.subr.mxu0 0.0
      %1480 = vmatpush1.msra.mxu0 %v1385
      %1481 = vmatprep.subr.mxu0 0.0
      %1482 = vmatpush1.msra.mxu0 %v1386
      %1483 = vmatprep.subr.mxu0 0.0
      %1484 = vmatpush1.msra.mxu0 %v1387
      %1485 = vmatprep.subr.mxu0 0.0
      %1486 = vmatpush1.msra.mxu0 %v1388
      %1487 = vmatprep.subr.mxu0 0.0
      %1488 = vmatpush1.msra.mxu0 %v1389
      %1489 = vmatprep.subr.mxu0 0.0
      %1490 = vmatpush1.msra.mxu0 %v1390
      %1491 = vmatprep.subr.mxu0 0.0
      %1492 = vmatpush1.msra.mxu0 %v1391
      %1493 = vmatprep.subr.mxu0 0.0
      %1494 = vmatpush1.msra.mxu0 %v1392
      %1495 = vmatprep.subr.mxu0 0.0
      %1496 = vmatpush1.msra.mxu0 %v1393
      %1497 = vmatprep.subr.mxu0 0.0
      %1498 = vmatpush1.msra.mxu0 0.0
      %1499 = vmatprep.subr.mxu0 0.0
      %1500 = vmatpush1.msra.mxu0 0.0
      %1501 = vmatprep.subr.mxu0 0.0
      %1502 = vmatpush1.msra.mxu0 0.0
      %1503 = vmatprep.subr.mxu0 0.0
      %1504 = vmatpush1.msra.mxu0 0.0
      %1505 = vmatprep.subr.mxu0 0.0
      %1506 = vmatpush1.msra.mxu0 0.0
      %1507 = vmatprep.subr.mxu0 0.0
      %1508 = vmatpush1.msra.mxu0 0.0
      %1509 = vmatprep.subr.mxu0 0.0
      %1510 = vmatpush1.msra.mxu0 0.0
      %1511 = vmatprep.subr.mxu0 0.0
      %1512 = vmatpush1.msra.mxu0 0.0
      %1513 = vmatprep.subr.mxu0 0.0
      %1514 = vmatpush1.msra.mxu0 0.0
      %1515 = vmatprep.subr.mxu0 0.0
      %1516 = vmatpush1.msra.mxu0 0.0
      %1517 = vmatprep.subr.mxu0 0.0
      %1518 = vmatpush1.msra.mxu0 0.0
      %1519 = vmatprep.subr.mxu0 0.0
      %1520 = vmatpush1.msra.mxu0 0.0
      %1521 = vmatprep.subr.mxu0 0.0
      %1522 = vmatpush1.msra.mxu0 0.0
      %1523 = vmatprep.subr.mxu0 0.0
      %1524 = vmatpush1.msra.mxu0 0.0
      %1525 = vmatprep.subr.mxu0 0.0
      %1526 = vmatpush1.msra.mxu0 0.0
      %1527 = vmatprep.subr.mxu0 0.0
      %1528 = vmatpush1.msra.mxu0 0.0
      %1529 = vmatprep.mubr.f32.mxu0 0.0
      %1530 = vmatmul.mubr.f32.gmra.mrb[0].mxu0 %v1417
      %v1531 = vpop.f32.mrb[0].mxu0
      %v1532 = vadd.f32 %v1399, %v1531
      %v1533 = vpop.f32.mrb[0].mxu0
      %1534 = vmatprep.mubr.f32.mxu0 0.0
      %1535 = vmatmul.mubr.f32.gmra.mrb[0].mxu0 %v1418
      %v1536 = vpop.f32.mrb[0].mxu0
      %v1537 = vadd.f32 %v1399, %v1536
      %v1538 = vpop.f32.mrb[0].mxu0
      %1539 = vmatprep.mubr.f32.mxu0 0.0
      %1540 = vmatmul.mubr.f32.gmra.mrb[0].mxu0 %v1419
      %v1541 = vpop.f32.mrb[0].mxu0
      %v1542 = vadd.f32 %v1399, %v1541
      %v1543 = vpop.f32.mrb[0].mxu0
      %1544 = vmatprep.mubr.f32.mxu0 0.0
      %1545 = vmatmul.mubr.f32.gmra.mrb[0].mxu0 %v1420
      %v1546 = vpop.f32.mrb[0].mxu0
      %v1547 = vadd.f32 %v1399, %v1546
      %v1548 = vpop.f32.mrb[0].mxu0
      %1549 = vmatprep.mubr.f32.mxu0 0.0
      %1550 = vmatmul.mubr.f32.gmra.mrb[0].mxu0 %v1421
      %v1551 = vpop.f32.mrb[0].mxu0
      %v1552 = vadd.f32 %v1399, %v1551
      %v1553 = vpop.f32.mrb[0].mxu0
      %1554 = vmatprep.mubr.f32.mxu0 0.0
      %1555 = vmatmul.mubr.f32.gmra.mrb[0].mxu0 %v1422
      %v1556 = vpop.f32.mrb[0].mxu0
      %v1557 = vadd.f32 %v1399, %v1556
      %v1558 = vpop.f32.mrb[0].mxu0
      %1559 = vmatprep.mubr.f32.mxu0 0.0
      %1560 = vmatmul.mubr.f32.gmra.mrb[0].mxu0 %v1423
      %v1561 = vpop.f32.mrb[0].mxu0
      %v1562 = vadd.f32 %v1399, %v1561
      %v1563 = vpop.f32.mrb[0].mxu0
      %1564 = vmatprep.mubr.f32.mxu0 0.0
      %1565 = vmatmul.mubr.f32.gmra.mrb[0].mxu0 %v1424
      %v1566 = vpop.f32.mrb[0].mxu0
      %v1567 = vadd.f32 %v1399, %v1566
      %v1568 = vpop.f32.mrb[0].mxu0
      %1569 = vmatprep.mubr.f32.mxu0 0.0
      %1570 = vmatmul.mubr.f32.gmra.mrb[0].mxu0 %v1425
      %v1571 = vpop.f32.mrb[0].mxu0
      %v1572 = vadd.f32 %v1399, %v1571
      %v1573 = vpop.f32.mrb[0].mxu0
      %1574 = vmatprep.mubr.f32.mxu0 0.0
      %1575 = vmatmul.mubr.f32.gmra.mrb[0].mxu0 %v1426
      %v1576 = vpop.f32.mrb[0].mxu0
      %v1577 = vadd.f32 %v1399, %v1576
      %v1578 = vpop.f32.mrb[0].mxu0
      %1579 = vmatprep.mubr.f32.mxu0 0.0
      %1580 = vmatmul.mubr.f32.gmra.mrb[0].mxu0 %v1427
      %v1581 = vpop.f32.mrb[0].mxu0
      %v1582 = vadd.f32 %v1399, %v1581
      %v1583 = vpop.f32.mrb[0].mxu0
      %1584 = vmatprep.mubr.f32.mxu0 0.0
      %1585 = vmatmul.mubr.f32.gmra.mrb[0].mxu0 %v1428
      %v1586 = vpop.f32.mrb[0].mxu0
      %v1587 = vadd.f32 %v1399, %v1586
      %v1588 = vpop.f32.mrb[0].mxu0
      %1589 = vmatprep.mubr.f32.mxu0 0.0
      %1590 = vmatmul.mubr.f32.gmra.mrb[0].mxu0 %v1429
      %v1591 = vpop.f32.mrb[0].mxu0
      %v1592 = vadd.f32 %v1399, %v1591
      %v1593 = vpop.f32.mrb[0].mxu0
      %1594 = vmatprep.mubr.f32.mxu0 0.0
      %1595 = vmatmul.mubr.f32.gmra.mrb[0].mxu0 %v1430
      %v1596 = vpop.f32.mrb[0].mxu0
      %v1597 = vadd.f32 %v1399, %v1596
      %v1598 = vpop.f32.mrb[0].mxu0
      %1599 = vmatprep.mubr.f32.mxu0 0.0
      %1600 = vmatmul.mubr.f32.gmra.mrb[0].mxu0 %v1431
      %v1601 = vpop.f32.mrb[0].mxu0
      %v1602 = vadd.f32 %v1399, %v1601
      %v1603 = vpop.f32.mrb[0].mxu0
      %1604 = vmatprep.mubr.f32.mxu0 0.0
      %1605 = vmatmul.mubr.f32.gmra.mrb[0].mxu0 %v1432
      %v1606 = vpop.f32.mrb[0].mxu0
      %v1607 = vadd.f32 %v1399, %v1606
      %v1608 = vpop.f32.mrb[0].mxu0
      %1609 = vmatprep.mubr.f32.mxu0 0.0
      %1610 = vmatmul.mubr.f32.gmra.mrb[0].mxu0 %v1449
      %v1611 = vpop.f32.mrb[0].mxu0
      %v1612 = vadd.f32 %v1399, %v1611
      %v1613 = vpop.f32.mrb[0].mxu0
      %1614 = vmatprep.mubr.f32.mxu0 0.0
      %1615 = vmatmul.mubr.f32.gmra.mrb[0].mxu0 %v1450
      %v1616 = vpop.f32.mrb[0].mxu0
      %v1617 = vadd.f32 %v1399, %v1616
      %v1618 = vpop.f32.mrb[0].mxu0
      %1619 = vmatprep.mubr.f32.mxu0 0.0
      %1620 = vmatmul.mubr.f32.gmra.mrb[0].mxu0 %v1451
      %v1621 = vpop.f32.mrb[0].mxu0
      %v1622 = vadd.f32 %v1399, %v1621
      %v1623 = vpop.f32.mrb[0].mxu0
      %1624 = vmatprep.mubr.f32.mxu0 0.0
      %1625 = vmatmul.mubr.f32.gmra.mrb[0].mxu0 %v1452
      %v1626 = vpop.f32.mrb[0].mxu0
      %v1627 = vadd.f32 %v1399, %v1626
      %v1628 = vpop.f32.mrb[0].mxu0
      %1629 = vmatprep.mubr.f32.mxu0 0.0
      %1630 = vmatmul.mubr.f32.gmra.mrb[0].mxu0 %v1453
      %v1631 = vpop.f32.mrb[0].mxu0
      %v1632 = vadd.f32 %v1399, %v1631
      %v1633 = vpop.f32.mrb[0].mxu0
      %1634 = vmatprep.mubr.f32.mxu0 0.0
      %1635 = vmatmul.mubr.f32.gmra.mrb[0].mxu0 %v1454
      %v1636 = vpop.f32.mrb[0].mxu0
      %v1637 = vadd.f32 %v1399, %v1636
      %v1638 = vpop.f32.mrb[0].mxu0
      %1639 = vmatprep.mubr.f32.mxu0 0.0
      %1640 = vmatmul.mubr.f32.gmra.mrb[0].mxu0 %v1455
      %v1641 = vpop.f32.mrb[0].mxu0
      %v1642 = vadd.f32 %v1399, %v1641
      %v1643 = vpop.f32.mrb[0].mxu0
      %1644 = vmatprep.mubr.f32.mxu0 0.0
      %1645 = vmatmul.mubr.f32.gmra.mrb[0].mxu0 %v1456
      %v1646 = vpop.f32.mrb[0].mxu0
      %v1647 = vadd.f32 %v1399, %v1646
      %v1648 = vpop.f32.mrb[0].mxu0
      %1649 = vmatprep.mubr.f32.mxu0 0.0
      %1650 = vmatmul.mubr.f32.gmra.mrb[0].mxu0 %v1457
      %v1651 = vpop.f32.mrb[0].mxu0
      %v1652 = vadd.f32 %v1399, %v1651
      %v1653 = vpop.f32.mrb[0].mxu0
      %1654 = vmatprep.mubr.f32.mxu0 0.0
      %1655 = vmatmul.mubr.f32.gmra.mrb[0].mxu0 %v1458
      %v1656 = vpop.f32.mrb[0].mxu0
      %v1657 = vadd.f32 %v1399, %v1656
      %v1658 = vpop.f32.mrb[0].mxu0
      %1659 = vmatprep.mubr.f32.mxu0 0.0
      %1660 = vmatmul.mubr.f32.gmra.mrb[0].mxu0 %v1459
      %v1661 = vpop.f32.mrb[0].mxu0
      %v1662 = vadd.f32 %v1399, %v1661
      %v1663 = vpop.f32.mrb[0].mxu0
      %1664 = vmatprep.mubr.f32.mxu0 0.0
      %1665 = vmatmul.mubr.f32.gmra.mrb[0].mxu0 %v1460
      %v1666 = vpop.f32.mrb[0].mxu0
      %v1667 = vadd.f32 %v1399, %v1666
      %v1668 = vpop.f32.mrb[0].mxu0
      %1669 = vmatprep.mubr.f32.mxu0 0.0
      %1670 = vmatmul.mubr.f32.gmra.mrb[0].mxu0 %v1461
      %v1671 = vpop.f32.mrb[0].mxu0
      %v1672 = vadd.f32 %v1399, %v1671
      %v1673 = vpop.f32.mrb[0].mxu0
      %1674 = vmatprep.mubr.f32.mxu0 0.0
      %1675 = vmatmul.mubr.f32.gmra.mrb[0].mxu0 %v1462
      %v1676 = vpop.f32.mrb[0].mxu0
      %v1677 = vadd.f32 %v1399, %v1676
      %v1678 = vpop.f32.mrb[0].mxu0
      %1679 = vmatprep.mubr.f32.mxu0 0.0
      %1680 = vmatmul.mubr.f32.gmra.mrb[0].mxu0 %v1463
      %v1681 = vpop.f32.mrb[0].mxu0
      %v1682 = vadd.f32 %v1399, %v1681
      %v1683 = vpop.f32.mrb[0].mxu0
      %1684 = vmatprep.mubr.f32.mxu0 0.0
      %1685 = vmatmul.mubr.f32.gmra.mrb[0].mxu0 %v1464
      %v1686 = vpop.f32.mrb[0].mxu0
      %v1687 = vadd.f32 %v1399, %v1686
      %v1688 = vpop.f32.mrb[0].mxu0
      %1689 = vdwg.mxu0
      %v1690 = vld [vmem:[%s13] sm:$0xff]
      %v1691 = vld [vmem:[%s13 + $0x8] sm:$0xff]
      %vm1692 = vcmask 64512
      %v1694 = vsel %vm1692, %v1690, 0
      %v1697 = vsel %vm1692, %v1691, 0
      %1699 = vmatprep.subr.mxu0 0.0
      %1700 = vmatpush1.msra.mxu0 %v1308
      %1701 = vmatprep.subr.mxu0 0.0
      %1702 = vmatpush1.msra.mxu0 0.0
      %1703 = vmatprep.subr.mxu0 0.0
      %1704 = vmatpush1.msra.mxu0 0.0
      %1705 = vmatprep.subr.mxu0 0.0
      %1706 = vmatpush1.msra.mxu0 0.0
      %1707 = vmatprep.subr.mxu0 0.0
      %1708 = vmatpush1.msra.mxu0 0.0
      %1709 = vmatprep.subr.mxu0 0.0
      %1710 = vmatpush1.msra.mxu0 0.0
      %1711 = vmatprep.subr.mxu0 0.0
      %1712 = vmatpush1.msra.mxu0 0.0
      %1713 = vmatprep.subr.mxu0 0.0
      %1714 = vmatpush1.msra.mxu0 0.0
      %1715 = vmatprep.subr.mxu0 0.0
      %1716 = vmatpush1.msra.mxu0 0.0
      %1717 = vmatprep.subr.mxu0 0.0
      %1718 = vmatpush1.msra.mxu0 0.0
      %1719 = vmatprep.subr.mxu0 0.0
      %1720 = vmatpush1.msra.mxu0 0.0
      %1721 = vmatprep.subr.mxu0 0.0
      %1722 = vmatpush1.msra.mxu0 0.0
      %1723 = vmatprep.subr.mxu0 0.0
      %1724 = vmatpush1.msra.mxu0 0.0
      %1725 = vmatprep.subr.mxu0 0.0
      %1726 = vmatpush1.msra.mxu0 0.0
      %1727 = vmatprep.subr.mxu0 0.0
      %1728 = vmatpush1.msra.mxu0 0.0
      %1729 = vmatprep.subr.mxu0 0.0
      %1730 = vmatpush1.msra.mxu0 0.0
      %1731 = vmatprep.subr.mxu0 0.0
      %1732 = vmatpush1.msra.mxu0 0.0
      %1733 = vmatprep.subr.mxu0 0.0
      %1734 = vmatpush1.msra.mxu0 0.0
      %1735 = vmatprep.subr.mxu0 0.0
      %1736 = vmatpush1.msra.mxu0 0.0
      %1737 = vmatprep.subr.mxu0 0.0
      %1738 = vmatpush1.msra.mxu0 0.0
      %1739 = vmatprep.subr.mxu0 0.0
      %1740 = vmatpush1.msra.mxu0 0.0
      %1741 = vmatprep.subr.mxu0 0.0
      %1742 = vmatpush1.msra.mxu0 0.0
      %1743 = vmatprep.subr.mxu0 0.0
      %1744 = vmatpush1.msra.mxu0 0.0
      %1745 = vmatprep.subr.mxu0 0.0
      %1746 = vmatpush1.msra.mxu0 0.0
      %1747 = vmatprep.subr.mxu0 0.0
      %1748 = vmatpush1.msra.mxu0 0.0
      %1749 = vmatprep.subr.mxu0 0.0
      %1750 = vmatpush1.msra.mxu0 0.0
      %1751 = vmatprep.subr.mxu0 0.0
      %1752 = vmatpush1.msra.mxu0 0.0
      %1753 = vmatprep.subr.mxu0 0.0
      %1754 = vmatpush1.msra.mxu0 0.0
      %1755 = vmatprep.subr.mxu0 0.0
      %1756 = vmatpush1.msra.mxu0 0.0
      %1757 = vmatprep.subr.mxu0 0.0
      %1758 = vmatpush1.msra.mxu0 0.0
      %1759 = vmatprep.subr.mxu0 0.0
      %1760 = vmatpush1.msra.mxu0 0.0
      %1761 = vmatprep.subr.mxu0 0.0
      %1762 = vmatpush1.msra.mxu0 0.0
      %1763 = vmatprep.mubr.f32.mxu0 0.0
      %1764 = vmatmul.mubr.f32.gmra.mrb[0].mxu0 %v1694
      %v1765 = vpop.f32.mrb[0].mxu0
      %v1766 = vadd.f32 0.0, %v1765
      %v1767 = vpop.f32.mrb[0].mxu0
      %1768 = vmatprep.mubr.f32.mxu0 0.0
      %1769 = vmatmul.mubr.f32.gmra.mrb[0].mxu0 %v1697
      %v1770 = vpop.f32.mrb[0].mxu0
      %v1771 = vadd.f32 0.0, %v1770
      %v1772 = vpop.f32.mrb[0].mxu0
      %1773 = vdwg.mxu0
      %1774 = vmatprep.subr.mxu0 0.0
      %1775 = vmatpush1.msra.mxu0 %v1313
      %1776 = vmatprep.subr.mxu0 0.0
      %1777 = vmatpush1.msra.mxu0 0.0
      %1778 = vmatprep.subr.mxu0 0.0
      %1779 = vmatpush1.msra.mxu0 0.0
      %1780 = vmatprep.subr.mxu0 0.0
      %1781 = vmatpush1.msra.mxu0 0.0
      %1782 = vmatprep.subr.mxu0 0.0
      %1783 = vmatpush1.msra.mxu0 0.0
      %1784 = vmatprep.subr.mxu0 0.0
      %1785 = vmatpush1.msra.mxu0 0.0
      %1786 = vmatprep.subr.mxu0 0.0
      %1787 = vmatpush1.msra.mxu0 0.0
      %1788 = vmatprep.subr.mxu0 0.0
      %1789 = vmatpush1.msra.mxu0 0.0
      %1790 = vmatprep.subr.mxu0 0.0
      %1791 = vmatpush1.msra.mxu0 0.0
      %1792 = vmatprep.subr.mxu0 0.0
      %1793 = vmatpush1.msra.mxu0 0.0
      %1794 = vmatprep.subr.mxu0 0.0
      %1795 = vmatpush1.msra.mxu0 0.0
      %1796 = vmatprep.subr.mxu0 0.0
      %1797 = vmatpush1.msra.mxu0 0.0
      %1798 = vmatprep.subr.mxu0 0.0
      %1799 = vmatpush1.msra.mxu0 0.0
      %1800 = vmatprep.subr.mxu0 0.0
      %1801 = vmatpush1.msra.mxu0 0.0
      %1802 = vmatprep.subr.mxu0 0.0
      %1803 = vmatpush1.msra.mxu0 0.0
      %1804 = vmatprep.subr.mxu0 0.0
      %1805 = vmatpush1.msra.mxu0 0.0
      %1806 = vmatprep.subr.mxu0 0.0
      %1807 = vmatpush1.msra.mxu0 0.0
      %1808 = vmatprep.subr.mxu0 0.0
      %1809 = vmatpush1.msra.mxu0 0.0
      %1810 = vmatprep.subr.mxu0 0.0
      %1811 = vmatpush1.msra.mxu0 0.0
      %1812 = vmatprep.subr.mxu0 0.0
      %1813 = vmatpush1.msra.mxu0 0.0
      %1814 = vmatprep.subr.mxu0 0.0
      %1815 = vmatpush1.msra.mxu0 0.0
      %1816 = vmatprep.subr.mxu0 0.0
      %1817 = vmatpush1.msra.mxu0 0.0
      %1818 = vmatprep.subr.mxu0 0.0
      %1819 = vmatpush1.msra.mxu0 0.0
      %1820 = vmatprep.subr.mxu0 0.0
      %1821 = vmatpush1.msra.mxu0 0.0
      %1822 = vmatprep.subr.mxu0 0.0
      %1823 = vmatpush1.msra.mxu0 0.0
      %1824 = vmatprep.subr.mxu0 0.0
      %1825 = vmatpush1.msra.mxu0 0.0
      %1826 = vmatprep.subr.mxu0 0.0
      %1827 = vmatpush1.msra.mxu0 0.0
      %1828 = vmatprep.subr.mxu0 0.0
      %1829 = vmatpush1.msra.mxu0 0.0
      %1830 = vmatprep.subr.mxu0 0.0
      %1831 = vmatpush1.msra.mxu0 0.0
      %1832 = vmatprep.subr.mxu0 0.0
      %1833 = vmatpush1.msra.mxu0 0.0
      %1834 = vmatprep.subr.mxu0 0.0
      %1835 = vmatpush1.msra.mxu0 0.0
      %1836 = vmatprep.subr.mxu0 0.0
      %1837 = vmatpush1.msra.mxu0 0.0
      %1838 = vmatprep.mubr.f32.mxu0 0.0
      %1839 = vmatmul.mubr.f32.gmra.mrb[0].mxu0 %v1694
      %v1840 = vpop.f32.mrb[0].mxu0
      %v1841 = vadd.f32 0.0, %v1840
      %v1842 = vpop.f32.mrb[0].mxu0
      %1843 = vmatprep.mubr.f32.mxu0 0.0
      %1844 = vmatmul.mubr.f32.gmra.mrb[0].mxu0 %v1697
      %v1845 = vpop.f32.mrb[0].mxu0
      %v1846 = vadd.f32 0.0, %v1845
      %v1847 = vpop.f32.mrb[0].mxu0
      %1848 = vdwg.mxu0
      %1849 = vmatprep.subr.mxu0 0.0
      %1850 = vmatpush1.msra.mxu0 %v1318
      %1851 = vmatprep.subr.mxu0 0.0
      %1852 = vmatpush1.msra.mxu0 0.0
      %1853 = vmatprep.subr.mxu0 0.0
      %1854 = vmatpush1.msra.mxu0 0.0
      %1855 = vmatprep.subr.mxu0 0.0
      %1856 = vmatpush1.msra.mxu0 0.0
      %1857 = vmatprep.subr.mxu0 0.0
      %1858 = vmatpush1.msra.mxu0 0.0
      %1859 = vmatprep.subr.mxu0 0.0
      %1860 = vmatpush1.msra.mxu0 0.0
      %1861 = vmatprep.subr.mxu0 0.0
      %1862 = vmatpush1.msra.mxu0 0.0
      %1863 = vmatprep.subr.mxu0 0.0
      %1864 = vmatpush1.msra.mxu0 0.0
      %1865 = vmatprep.subr.mxu0 0.0
      %1866 = vmatpush1.msra.mxu0 0.0
      %1867 = vmatprep.subr.mxu0 0.0
      %1868 = vmatpush1.msra.mxu0 0.0
      %1869 = vmatprep.subr.mxu0 0.0
      %1870 = vmatpush1.msra.mxu0 0.0
      %1871 = vmatprep.subr.mxu0 0.0
      %1872 = vmatpush1.msra.mxu0 0.0
      %1873 = vmatprep.subr.mxu0 0.0
      %1874 = vmatpush1.msra.mxu0 0.0
      %1875 = vmatprep.subr.mxu0 0.0
      %1876 = vmatpush1.msra.mxu0 0.0
      %1877 = vmatprep.subr.mxu0 0.0
      %1878 = vmatpush1.msra.mxu0 0.0
      %1879 = vmatprep.subr.mxu0 0.0
      %1880 = vmatpush1.msra.mxu0 0.0
      %1881 = vmatprep.subr.mxu0 0.0
      %1882 = vmatpush1.msra.mxu0 0.0
      %1883 = vmatprep.subr.mxu0 0.0
      %1884 = vmatpush1.msra.mxu0 0.0
      %1885 = vmatprep.subr.mxu0 0.0
      %1886 = vmatpush1.msra.mxu0 0.0
      %1887 = vmatprep.subr.mxu0 0.0
      %1888 = vmatpush1.msra.mxu0 0.0
      %1889 = vmatprep.subr.mxu0 0.0
      %1890 = vmatpush1.msra.mxu0 0.0
      %1891 = vmatprep.subr.mxu0 0.0
      %1892 = vmatpush1.msra.mxu0 0.0
      %1893 = vmatprep.subr.mxu0 0.0
      %1894 = vmatpush1.msra.mxu0 0.0
      %1895 = vmatprep.subr.mxu0 0.0
      %1896 = vmatpush1.msra.mxu0 0.0
      %1897 = vmatprep.subr.mxu0 0.0
      %1898 = vmatpush1.msra.mxu0 0.0
      %1899 = vmatprep.subr.mxu0 0.0
      %1900 = vmatpush1.msra.mxu0 0.0
      %1901 = vmatprep.subr.mxu0 0.0
      %1902 = vmatpush1.msra.mxu0 0.0
      %1903 = vmatprep.subr.mxu0 0.0
      %1904 = vmatpush1.msra.mxu0 0.0
      %1905 = vmatprep.subr.mxu0 0.0
      %1906 = vmatpush1.msra.mxu0 0.0
      %1907 = vmatprep.subr.mxu0 0.0
      %1908 = vmatpush1.msra.mxu0 0.0
      %1909 = vmatprep.subr.mxu0 0.0
      %1910 = vmatpush1.msra.mxu0 0.0
      %1911 = vmatprep.subr.mxu0 0.0
      %1912 = vmatpush1.msra.mxu0 0.0
      %1913 = vmatprep.mubr.f32.mxu0 0.0
      %1914 = vmatmul.mubr.f32.gmra.mrb[0].mxu0 %v1694
      %v1915 = vpop.f32.mrb[0].mxu0
      %v1916 = vadd.f32 0.0, %v1915
      %v1917 = vpop.f32.mrb[0].mxu0
      %1918 = vmatprep.mubr.f32.mxu0 0.0
      %1919 = vmatmul.mubr.f32.gmra.mrb[0].mxu0 %v1697
      %v1920 = vpop.f32.mrb[0].mxu0
      %v1921 = vadd.f32 0.0, %v1920
      %v1922 = vpop.f32.mrb[0].mxu0
      %1923 = vdwg.mxu0
      %1924 = vmatprep.subr.mxu0 0.0
      %1925 = vmatpush1.msra.mxu0 %v1323
      %1926 = vmatprep.subr.mxu0 0.0
      %1927 = vmatpush1.msra.mxu0 0.0
      %1928 = vmatprep.subr.mxu0 0.0
      %1929 = vmatpush1.msra.mxu0 0.0
      %1930 = vmatprep.subr.mxu0 0.0
      %1931 = vmatpush1.msra.mxu0 0.0
      %1932 = vmatprep.subr.mxu0 0.0
      %1933 = vmatpush1.msra.mxu0 0.0
      %1934 = vmatprep.subr.mxu0 0.0
      %1935 = vmatpush1.msra.mxu0 0.0
      %1936 = vmatprep.subr.mxu0 0.0
      %1937 = vmatpush1.msra.mxu0 0.0
      %1938 = vmatprep.subr.mxu0 0.0
      %1939 = vmatpush1.msra.mxu0 0.0
      %1940 = vmatprep.subr.mxu0 0.0
      %1941 = vmatpush1.msra.mxu0 0.0
      %1942 = vmatprep.subr.mxu0 0.0
      %1943 = vmatpush1.msra.mxu0 0.0
      %1944 = vmatprep.subr.mxu0 0.0
      %1945 = vmatpush1.msra.mxu0 0.0
      %1946 = vmatprep.subr.mxu0 0.0
      %1947 = vmatpush1.msra.mxu0 0.0
      %1948 = vmatprep.subr.mxu0 0.0
      %1949 = vmatpush1.msra.mxu0 0.0
      %1950 = vmatprep.subr.mxu0 0.0
      %1951 = vmatpush1.msra.mxu0 0.0
      %1952 = vmatprep.subr.mxu0 0.0
      %1953 = vmatpush1.msra.mxu0 0.0
      %1954 = vmatprep.subr.mxu0 0.0
      %1955 = vmatpush1.msra.mxu0 0.0
      %1956 = vmatprep.subr.mxu0 0.0
      %1957 = vmatpush1.msra.mxu0 0.0
      %1958 = vmatprep.subr.mxu0 0.0
      %1959 = vmatpush1.msra.mxu0 0.0
      %1960 = vmatprep.subr.mxu0 0.0
      %1961 = vmatpush1.msra.mxu0 0.0
      %1962 = vmatprep.subr.mxu0 0.0
      %1963 = vmatpush1.msra.mxu0 0.0
      %1964 = vmatprep.subr.mxu0 0.0
      %1965 = vmatpush1.msra.mxu0 0.0
      %1966 = vmatprep.subr.mxu0 0.0
      %1967 = vmatpush1.msra.mxu0 0.0
      %1968 = vmatprep.subr.mxu0 0.0
      %1969 = vmatpush1.msra.mxu0 0.0
      %1970 = vmatprep.subr.mxu0 0.0
      %1971 = vmatpush1.msra.mxu0 0.0
      %1972 = vmatprep.subr.mxu0 0.0
      %1973 = vmatpush1.msra.mxu0 0.0
      %1974 = vmatprep.subr.mxu0 0.0
      %1975 = vmatpush1.msra.mxu0 0.0
      %1976 = vmatprep.subr.mxu0 0.0
      %1977 = vmatpush1.msra.mxu0 0.0
      %1978 = vmatprep.subr.mxu0 0.0
      %1979 = vmatpush1.msra.mxu0 0.0
      %1980 = vmatprep.subr.mxu0 0.0
      %1981 = vmatpush1.msra.mxu0 0.0
      %1982 = vmatprep.subr.mxu0 0.0
      %1983 = vmatpush1.msra.mxu0 0.0
      %1984 = vmatprep.subr.mxu0 0.0
      %1985 = vmatpush1.msra.mxu0 0.0
      %1986 = vmatprep.subr.mxu0 0.0
      %1987 = vmatpush1.msra.mxu0 0.0
      %1988 = vmatprep.mubr.f32.mxu0 0.0
      %1989 = vmatmul.mubr.f32.gmra.mrb[0].mxu0 %v1694
      %v1990 = vpop.f32.mrb[0].mxu0
      %v1991 = vadd.f32 0.0, %v1990
      %v1992 = vpop.f32.mrb[0].mxu0
      %1993 = vmatprep.mubr.f32.mxu0 0.0
      %1994 = vmatmul.mubr.f32.gmra.mrb[0].mxu0 %v1697
      %v1995 = vpop.f32.mrb[0].mxu0
      %v1996 = vadd.f32 0.0, %v1995
      %v1997 = vpop.f32.mrb[0].mxu0
      %1998 = vdwg.mxu0
      %1999 = vmatprep.subr.mxu0 0.0
      %2000 = vmatpush1.msra.mxu0 %v1328
      %2001 = vmatprep.subr.mxu0 0.0
      %2002 = vmatpush1.msra.mxu0 0.0
      %2003 = vmatprep.subr.mxu0 0.0
      %2004 = vmatpush1.msra.mxu0 0.0
      %2005 = vmatprep.subr.mxu0 0.0
      %2006 = vmatpush1.msra.mxu0 0.0
      %2007 = vmatprep.subr.mxu0 0.0
      %2008 = vmatpush1.msra.mxu0 0.0
      %2009 = vmatprep.subr.mxu0 0.0
      %2010 = vmatpush1.msra.mxu0 0.0
      %2011 = vmatprep.subr.mxu0 0.0
      %2012 = vmatpush1.msra.mxu0 0.0
      %2013 = vmatprep.subr.mxu0 0.0
      %2014 = vmatpush1.msra.mxu0 0.0
      %2015 = vmatprep.subr.mxu0 0.0
      %2016 = vmatpush1.msra.mxu0 0.0
      %2017 = vmatprep.subr.mxu0 0.0
      %2018 = vmatpush1.msra.mxu0 0.0
      %2019 = vmatprep.subr.mxu0 0.0
      %2020 = vmatpush1.msra.mxu0 0.0
      %2021 = vmatprep.subr.mxu0 0.0
      %2022 = vmatpush1.msra.mxu0 0.0
      %2023 = vmatprep.subr.mxu0 0.0
      %2024 = vmatpush1.msra.mxu0 0.0
      %2025 = vmatprep.subr.mxu0 0.0
      %2026 = vmatpush1.msra.mxu0 0.0
      %2027 = vmatprep.subr.mxu0 0.0
      %2028 = vmatpush1.msra.mxu0 0.0
      %2029 = vmatprep.subr.mxu0 0.0
      %2030 = vmatpush1.msra.mxu0 0.0
      %2031 = vmatprep.subr.mxu0 0.0
      %2032 = vmatpush1.msra.mxu0 0.0
      %2033 = vmatprep.subr.mxu0 0.0
      %2034 = vmatpush1.msra.mxu0 0.0
      %2035 = vmatprep.subr.mxu0 0.0
      %2036 = vmatpush1.msra.mxu0 0.0
      %2037 = vmatprep.subr.mxu0 0.0
      %2038 = vmatpush1.msra.mxu0 0.0
      %2039 = vmatprep.subr.mxu0 0.0
      %2040 = vmatpush1.msra.mxu0 0.0
      %2041 = vmatprep.subr.mxu0 0.0
      %2042 = vmatpush1.msra.mxu0 0.0
      %2043 = vmatprep.subr.mxu0 0.0
      %2044 = vmatpush1.msra.mxu0 0.0
      %2045 = vmatprep.subr.mxu0 0.0
      %2046 = vmatpush1.msra.mxu0 0.0
      %2047 = vmatprep.subr.mxu0 0.0
      %2048 = vmatpush1.msra.mxu0 0.0
      %2049 = vmatprep.subr.mxu0 0.0
      %2050 = vmatpush1.msra.mxu0 0.0
      %2051 = vmatprep.subr.mxu0 0.0
      %2052 = vmatpush1.msra.mxu0 0.0
      %2053 = vmatprep.subr.mxu0 0.0
      %2054 = vmatpush1.msra.mxu0 0.0
      %2055 = vmatprep.subr.mxu0 0.0
      %2056 = vmatpush1.msra.mxu0 0.0
      %2057 = vmatprep.subr.mxu0 0.0
      %2058 = vmatpush1.msra.mxu0 0.0
      %2059 = vmatprep.subr.mxu0 0.0
      %2060 = vmatpush1.msra.mxu0 0.0
      %2061 = vmatprep.subr.mxu0 0.0
      %2062 = vmatpush1.msra.mxu0 0.0
      %2063 = vmatprep.mubr.f32.mxu0 0.0
      %2064 = vmatmul.mubr.f32.gmra.mrb[0].mxu0 %v1694
      %v2065 = vpop.f32.mrb[0].mxu0
      %v2066 = vadd.f32 0.0, %v2065
      %v2067 = vpop.f32.mrb[0].mxu0
      %2068 = vmatprep.mubr.f32.mxu0 0.0
      %2069 = vmatmul.mubr.f32.gmra.mrb[0].mxu0 %v1697
      %v2070 = vpop.f32.mrb[0].mxu0
      %v2071 = vadd.f32 0.0, %v2070
      %v2072 = vpop.f32.mrb[0].mxu0
      %2073 = vdwg.mxu0
      %2074 = vmatprep.subr.mxu0 0.0
      %2075 = vmatpush1.msra.mxu0 %v1333
      %2076 = vmatprep.subr.mxu0 0.0
      %2077 = vmatpush1.msra.mxu0 0.0
      %2078 = vmatprep.subr.mxu0 0.0
      %2079 = vmatpush1.msra.mxu0 0.0
      %2080 = vmatprep.subr.mxu0 0.0
      %2081 = vmatpush1.msra.mxu0 0.0
      %2082 = vmatprep.subr.mxu0 0.0
      %2083 = vmatpush1.msra.mxu0 0.0
      %2084 = vmatprep.subr.mxu0 0.0
      %2085 = vmatpush1.msra.mxu0 0.0
      %2086 = vmatprep.subr.mxu0 0.0
      %2087 = vmatpush1.msra.mxu0 0.0
      %2088 = vmatprep.subr.mxu0 0.0
      %2089 = vmatpush1.msra.mxu0 0.0
      %2090 = vmatprep.subr.mxu0 0.0
      %2091 = vmatpush1.msra.mxu0 0.0
      %2092 = vmatprep.subr.mxu0 0.0
      %2093 = vmatpush1.msra.mxu0 0.0
      %2094 = vmatprep.subr.mxu0 0.0
      %2095 = vmatpush1.msra.mxu0 0.0
      %2096 = vmatprep.subr.mxu0 0.0
      %2097 = vmatpush1.msra.mxu0 0.0
      %2098 = vmatprep.subr.mxu0 0.0
      %2099 = vmatpush1.msra.mxu0 0.0
      %2100 = vmatprep.subr.mxu0 0.0
      %2101 = vmatpush1.msra.mxu0 0.0
      %2102 = vmatprep.subr.mxu0 0.0
      %2103 = vmatpush1.msra.mxu0 0.0
      %2104 = vmatprep.subr.mxu0 0.0
      %2105 = vmatpush1.msra.mxu0 0.0
      %2106 = vmatprep.subr.mxu0 0.0
      %2107 = vmatpush1.msra.mxu0 0.0
      %2108 = vmatprep.subr.mxu0 0.0
      %2109 = vmatpush1.msra.mxu0 0.0
      %2110 = vmatprep.subr.mxu0 0.0
      %2111 = vmatpush1.msra.mxu0 0.0
      %2112 = vmatprep.subr.mxu0 0.0
      %2113 = vmatpush1.msra.mxu0 0.0
      %2114 = vmatprep.subr.mxu0 0.0
      %2115 = vmatpush1.msra.mxu0 0.0
      %2116 = vmatprep.subr.mxu0 0.0
      %2117 = vmatpush1.msra.mxu0 0.0
      %2118 = vmatprep.subr.mxu0 0.0
      %2119 = vmatpush1.msra.mxu0 0.0
      %2120 = vmatprep.subr.mxu0 0.0
      %2121 = vmatpush1.msra.mxu0 0.0
      %2122 = vmatprep.subr.mxu0 0.0
      %2123 = vmatpush1.msra.mxu0 0.0
      %2124 = vmatprep.subr.mxu0 0.0
      %2125 = vmatpush1.msra.mxu0 0.0
      %2126 = vmatprep.subr.mxu0 0.0
      %2127 = vmatpush1.msra.mxu0 0.0
      %2128 = vmatprep.subr.mxu0 0.0
      %2129 = vmatpush1.msra.mxu0 0.0
      %2130 = vmatprep.subr.mxu0 0.0
      %2131 = vmatpush1.msra.mxu0 0.0
      %2132 = vmatprep.subr.mxu0 0.0
      %2133 = vmatpush1.msra.mxu0 0.0
      %2134 = vmatprep.subr.mxu0 0.0
      %2135 = vmatpush1.msra.mxu0 0.0
      %2136 = vmatprep.subr.mxu0 0.0
      %2137 = vmatpush1.msra.mxu0 0.0
      %2138 = vmatprep.mubr.f32.mxu0 0.0
      %2139 = vmatmul.mubr.f32.gmra.mrb[0].mxu0 %v1694
      %v2140 = vpop.f32.mrb[0].mxu0
      %v2141 = vadd.f32 0.0, %v2140
      %v2142 = vpop.f32.mrb[0].mxu0
      %2143 = vmatprep.mubr.f32.mxu0 0.0
      %2144 = vmatmul.mubr.f32.gmra.mrb[0].mxu0 %v1697
      %v2145 = vpop.f32.mrb[0].mxu0
      %v2146 = vadd.f32 0.0, %v2145
      %v2147 = vpop.f32.mrb[0].mxu0
      %2148 = vdwg.mxu0
      %2149 = vmatprep.subr.mxu0 0.0
      %2150 = vmatpush1.msra.mxu0 %v1338
      %2151 = vmatprep.subr.mxu0 0.0
      %2152 = vmatpush1.msra.mxu0 0.0
      %2153 = vmatprep.subr.mxu0 0.0
      %2154 = vmatpush1.msra.mxu0 0.0
      %2155 = vmatprep.subr.mxu0 0.0
      %2156 = vmatpush1.msra.mxu0 0.0
      %2157 = vmatprep.subr.mxu0 0.0
      %2158 = vmatpush1.msra.mxu0 0.0
      %2159 = vmatprep.subr.mxu0 0.0
      %2160 = vmatpush1.msra.mxu0 0.0
      %2161 = vmatprep.subr.mxu0 0.0
      %2162 = vmatpush1.msra.mxu0 0.0
      %2163 = vmatprep.subr.mxu0 0.0
      %2164 = vmatpush1.msra.mxu0 0.0
      %2165 = vmatprep.subr.mxu0 0.0
      %2166 = vmatpush1.msra.mxu0 0.0
      %2167 = vmatprep.subr.mxu0 0.0
      %2168 = vmatpush1.msra.mxu0 0.0
      %2169 = vmatprep.subr.mxu0 0.0
      %2170 = vmatpush1.msra.mxu0 0.0
      %2171 = vmatprep.subr.mxu0 0.0
      %2172 = vmatpush1.msra.mxu0 0.0
      %2173 = vmatprep.subr.mxu0 0.0
      %2174 = vmatpush1.msra.mxu0 0.0
      %2175 = vmatprep.subr.mxu0 0.0
      %2176 = vmatpush1.msra.mxu0 0.0
      %2177 = vmatprep.subr.mxu0 0.0
      %2178 = vmatpush1.msra.mxu0 0.0
      %2179 = vmatprep.subr.mxu0 0.0
      %2180 = vmatpush1.msra.mxu0 0.0
      %2181 = vmatprep.subr.mxu0 0.0
      %2182 = vmatpush1.msra.mxu0 0.0
      %2183 = vmatprep.subr.mxu0 0.0
      %2184 = vmatpush1.msra.mxu0 0.0
      %2185 = vmatprep.subr.mxu0 0.0
      %2186 = vmatpush1.msra.mxu0 0.0
      %2187 = vmatprep.subr.mxu0 0.0
      %2188 = vmatpush1.msra.mxu0 0.0
      %2189 = vmatprep.subr.mxu0 0.0
      %2190 = vmatpush1.msra.mxu0 0.0
      %2191 = vmatprep.subr.mxu0 0.0
      %2192 = vmatpush1.msra.mxu0 0.0
      %2193 = vmatprep.subr.mxu0 0.0
      %2194 = vmatpush1.msra.mxu0 0.0
      %2195 = vmatprep.subr.mxu0 0.0
      %2196 = vmatpush1.msra.mxu0 0.0
      %2197 = vmatprep.subr.mxu0 0.0
      %2198 = vmatpush1.msra.mxu0 0.0
      %2199 = vmatprep.subr.mxu0 0.0
      %2200 = vmatpush1.msra.mxu0 0.0
      %2201 = vmatprep.subr.mxu0 0.0
      %2202 = vmatpush1.msra.mxu0 0.0
      %2203 = vmatprep.subr.mxu0 0.0
      %2204 = vmatpush1.msra.mxu0 0.0
      %2205 = vmatprep.subr.mxu0 0.0
      %2206 = vmatpush1.msra.mxu0 0.0
      %2207 = vmatprep.subr.mxu0 0.0
      %2208 = vmatpush1.msra.mxu0 0.0
      %2209 = vmatprep.subr.mxu0 0.0
      %2210 = vmatpush1.msra.mxu0 0.0
      %2211 = vmatprep.subr.mxu0 0.0
      %2212 = vmatpush1.msra.mxu0 0.0
      %2213 = vmatprep.mubr.f32.mxu0 0.0
      %2214 = vmatmul.mubr.f32.gmra.mrb[0].mxu0 %v1694
      %v2215 = vpop.f32.mrb[0].mxu0
      %v2216 = vadd.f32 0.0, %v2215
      %v2217 = vpop.f32.mrb[0].mxu0
      %2218 = vmatprep.mubr.f32.mxu0 0.0
      %2219 = vmatmul.mubr.f32.gmra.mrb[0].mxu0 %v1697
      %v2220 = vpop.f32.mrb[0].mxu0
      %v2221 = vadd.f32 0.0, %v2220
      %v2222 = vpop.f32.mrb[0].mxu0
      %2223 = vdwg.mxu0
      %2224 = vmatprep.subr.mxu0 0.0
      %2225 = vmatpush1.msra.mxu0 %v1343
      %2226 = vmatprep.subr.mxu0 0.0
      %2227 = vmatpush1.msra.mxu0 0.0
      %2228 = vmatprep.subr.mxu0 0.0
      %2229 = vmatpush1.msra.mxu0 0.0
      %2230 = vmatprep.subr.mxu0 0.0
      %2231 = vmatpush1.msra.mxu0 0.0
      %2232 = vmatprep.subr.mxu0 0.0
      %2233 = vmatpush1.msra.mxu0 0.0
      %2234 = vmatprep.subr.mxu0 0.0
      %2235 = vmatpush1.msra.mxu0 0.0
      %2236 = vmatprep.subr.mxu0 0.0
      %2237 = vmatpush1.msra.mxu0 0.0
      %2238 = vmatprep.subr.mxu0 0.0
      %2239 = vmatpush1.msra.mxu0 0.0
      %2240 = vmatprep.subr.mxu0 0.0
      %2241 = vmatpush1.msra.mxu0 0.0
      %2242 = vmatprep.subr.mxu0 0.0
      %2243 = vmatpush1.msra.mxu0 0.0
      %2244 = vmatprep.subr.mxu0 0.0
      %2245 = vmatpush1.msra.mxu0 0.0
      %2246 = vmatprep.subr.mxu0 0.0
      %2247 = vmatpush1.msra.mxu0 0.0
      %2248 = vmatprep.subr.mxu0 0.0
      %2249 = vmatpush1.msra.mxu0 0.0
      %2250 = vmatprep.subr.mxu0 0.0
      %2251 = vmatpush1.msra.mxu0 0.0
      %2252 = vmatprep.subr.mxu0 0.0
      %2253 = vmatpush1.msra.mxu0 0.0
      %2254 = vmatprep.subr.mxu0 0.0
      %2255 = vmatpush1.msra.mxu0 0.0
      %2256 = vmatprep.subr.mxu0 0.0
      %2257 = vmatpush1.msra.mxu0 0.0
      %2258 = vmatprep.subr.mxu0 0.0
      %2259 = vmatpush1.msra.mxu0 0.0
      %2260 = vmatprep.subr.mxu0 0.0
      %2261 = vmatpush1.msra.mxu0 0.0
      %2262 = vmatprep.subr.mxu0 0.0
      %2263 = vmatpush1.msra.mxu0 0.0
      %2264 = vmatprep.subr.mxu0 0.0
      %2265 = vmatpush1.msra.mxu0 0.0
      %2266 = vmatprep.subr.mxu0 0.0
      %2267 = vmatpush1.msra.mxu0 0.0
      %2268 = vmatprep.subr.mxu0 0.0
      %2269 = vmatpush1.msra.mxu0 0.0
      %2270 = vmatprep.subr.mxu0 0.0
      %2271 = vmatpush1.msra.mxu0 0.0
      %2272 = vmatprep.subr.mxu0 0.0
      %2273 = vmatpush1.msra.mxu0 0.0
      %2274 = vmatprep.subr.mxu0 0.0
      %2275 = vmatpush1.msra.mxu0 0.0
      %2276 = vmatprep.subr.mxu0 0.0
      %2277 = vmatpush1.msra.mxu0 0.0
      %2278 = vmatprep.subr.mxu0 0.0
      %2279 = vmatpush1.msra.mxu0 0.0
      %2280 = vmatprep.subr.mxu0 0.0
      %2281 = vmatpush1.msra.mxu0 0.0
      %2282 = vmatprep.subr.mxu0 0.0
      %2283 = vmatpush1.msra.mxu0 0.0
      %2284 = vmatprep.subr.mxu0 0.0
      %2285 = vmatpush1.msra.mxu0 0.0
      %2286 = vmatprep.subr.mxu0 0.0
      %2287 = vmatpush1.msra.mxu0 0.0
      %2288 = vmatprep.mubr.f32.mxu0 0.0
      %2289 = vmatmul.mubr.f32.gmra.mrb[0].mxu0 %v1694
      %v2290 = vpop.f32.mrb[0].mxu0
      %v2291 = vadd.f32 0.0, %v2290
      %v2292 = vpop.f32.mrb[0].mxu0
      %2293 = vmatprep.mubr.f32.mxu0 0.0
      %2294 = vmatmul.mubr.f32.gmra.mrb[0].mxu0 %v1697
      %v2295 = vpop.f32.mrb[0].mxu0
      %v2296 = vadd.f32 0.0, %v2295
      %v2297 = vpop.f32.mrb[0].mxu0
      %2298 = vdwg.mxu0
      %v2299 = vmul.f32 %v1766, 0.25
      %v2300 = vmul.f32 %v1771, 0.25
      %v2301 = vmul.f32 %v1841, 0.25
      %v2302 = vmul.f32 %v1846, 0.25
      %v2303 = vmul.f32 %v1916, 0.25
      %v2304 = vmul.f32 %v1921, 0.25
      %v2305 = vmul.f32 %v1991, 0.25
      %v2306 = vmul.f32 %v1996, 0.25
      %v2307 = vmul.f32 %v2066, 0.25
      %v2308 = vmul.f32 %v2071, 0.25
      %v2309 = vmul.f32 %v2141, 0.25
      %v2310 = vmul.f32 %v2146, 0.25
      %v2311 = vmul.f32 %v2216, 0.25
      %v2312 = vmul.f32 %v2221, 0.25
      %v2313 = vmul.f32 %v1766, 0.75
      %v2314 = vmul.f32 %v1771, 0.75
      %v2315 = vmul.f32 %v1841, 0.75
      %v2316 = vmul.f32 %v1846, 0.75
      %v2317 = vmul.f32 %v1916, 0.75
      %v2318 = vmul.f32 %v1921, 0.75
      %v2319 = vmul.f32 %v1991, 0.75
      %v2320 = vmul.f32 %v1996, 0.75
      %v2321 = vmul.f32 %v2066, 0.75
      %v2322 = vmul.f32 %v2071, 0.75
      %v2323 = vmul.f32 %v2141, 0.75
      %v2324 = vmul.f32 %v2146, 0.75
      %v2325 = vmul.f32 %v2216, 0.75
      %v2326 = vmul.f32 %v2221, 0.75
      %v2327 = vmul.f32 %v2291, 0.75
      %v2328 = vmul.f32 %v2296, 0.75
      %v2329 = vadd.f32 %v2299, %v2313
      %v2330 = vadd.f32 %v2300, %v2314
      %v2331 = vadd.f32 %v2299, %v2315
      %v2332 = vadd.f32 %v2300, %v2316
      %v2333 = vadd.f32 %v2301, %v2317
      %v2334 = vadd.f32 %v2302, %v2318
      %v2335 = vadd.f32 %v2303, %v2319
      %v2336 = vadd.f32 %v2304, %v2320
      %v2337 = vadd.f32 %v2305, %v2321
      %v2338 = vadd.f32 %v2306, %v2322
      %v2339 = vadd.f32 %v2307, %v2323
      %v2340 = vadd.f32 %v2308, %v2324
      %v2341 = vadd.f32 %v2309, %v2325
      %v2342 = vadd.f32 %v2310, %v2326
      %v2343 = vadd.f32 %v2311, %v2327
      %v2344 = vadd.f32 %v2312, %v2328
      %v2345 = vmul.f32 %v2291, 0.25
      %v2346 = vmul.f32 %v2296, 0.25
      %v2347 = vadd.f32 %v2313, %v2301
      %v2348 = vadd.f32 %v2314, %v2302
      %v2349 = vadd.f32 %v2315, %v2303
      %v2350 = vadd.f32 %v2316, %v2304
      %v2351 = vadd.f32 %v2317, %v2305
      %v2352 = vadd.f32 %v2318, %v2306
      %v2353 = vadd.f32 %v2319, %v2307
      %v2354 = vadd.f32 %v2320, %v2308
      %v2355 = vadd.f32 %v2321, %v2309
      %v2356 = vadd.f32 %v2322, %v2310
      %v2357 = vadd.f32 %v2323, %v2311
      %v2358 = vadd.f32 %v2324, %v2312
      %v2359 = vadd.f32 %v2325, %v2345
      %v2360 = vadd.f32 %v2326, %v2346
      %v2361 = vadd.f32 %v2327, %v2345
      %v2362 = vadd.f32 %v2328, %v2346
      %v2363 = vadd.f32 %v2329, %v1532
      %v2364 = vadd.f32 %v2330, %v1537
      %v2365 = vadd.f32 %v2347, %v1542
      %v2366 = vadd.f32 %v2348, %v1547
      %v2367 = vadd.f32 %v2331, %v1552
      %v2368 = vadd.f32 %v2332, %v1557
      %v2369 = vadd.f32 %v2349, %v1562
      %v2370 = vadd.f32 %v2350, %v1567
      %v2371 = vadd.f32 %v2333, %v1572
      %v2372 = vadd.f32 %v2334, %v1577
      %v2373 = vadd.f32 %v2351, %v1582
      %v2374 = vadd.f32 %v2352, %v1587
      %v2375 = vadd.f32 %v2335, %v1592
      %v2376 = vadd.f32 %v2336, %v1597
      %v2377 = vadd.f32 %v2353, %v1602
      %v2378 = vadd.f32 %v2354, %v1607
      %v2379 = vadd.f32 %v2337, %v1612
      %v2380 = vadd.f32 %v2338, %v1617
      %v2381 = vadd.f32 %v2355, %v1622
      %v2382 = vadd.f32 %v2356, %v1627
      %v2383 = vadd.f32 %v2339, %v1632
      %v2384 = vadd.f32 %v2340, %v1637
      %v2385 = vadd.f32 %v2357, %v1642
      %v2386 = vadd.f32 %v2358, %v1647
      %v2387 = vadd.f32 %v2341, %v1652
      %v2388 = vadd.f32 %v2342, %v1657
      %v2389 = vadd.f32 %v2359, %v1662
      %v2390 = vadd.f32 %v2360, %v1667
      %v2391 = vadd.f32 %v2343, %v1672
      %v2392 = vadd.f32 %v2344, %v1677
      %v2393 = vadd.f32 %v2361, %v1682
      %v2394 = vadd.f32 %v2362, %v1687
      %v2395 = vld [vmem:[%s549] sm:$0xff]
      %v2396 = vld [vmem:[%s549 + $0x8] sm:$0xff]
      %v2397 = vld [vmem:[%s549 + $0x10] sm:$0xff]
      %v2398 = vld [vmem:[%s549 + $0x18] sm:$0xff]
      %v2399 = vld [vmem:[%s549 + $0x20] sm:$0xff]
      %v2400 = vld [vmem:[%s549 + $0x28] sm:$0xff]
      %v2401 = vld [vmem:[%s549 + $0x30] sm:$0xff]
      %v2402 = vld [vmem:[%s549 + $0x38] sm:$0xff]
      %v2403 = vld [vmem:[%s549 + $0x40] sm:$0xff]
      %v2404 = vld [vmem:[%s549 + $0x48] sm:$0xff]
      %v2405 = vld [vmem:[%s549 + $0x50] sm:$0xff]
      %v2406 = vld [vmem:[%s549 + $0x58] sm:$0xff]
      %v2407 = vld [vmem:[%s549 + $0x60] sm:$0xff]
      %v2408 = vld [vmem:[%s549 + $0x68] sm:$0xff]
      %v2409 = vld [vmem:[%s549 + $0x70] sm:$0xff]
      %v2410 = vld [vmem:[%s549 + $0x78] sm:$0xff]
      %v2411 = vld [vmem:[%s549 + $0x80] sm:$0xff]
      %v2412 = vld [vmem:[%s549 + $0x88] sm:$0xff]
      %v2413 = vld [vmem:[%s549 + $0x90] sm:$0xff]
      %v2414 = vld [vmem:[%s549 + $0x98] sm:$0xff]
      %v2415 = vld [vmem:[%s549 + $0xa0] sm:$0xff]
      %v2416 = vld [vmem:[%s549 + $0xa8] sm:$0xff]
      %v2417 = vld [vmem:[%s549 + $0xb0] sm:$0xff]
      %v2418 = vld [vmem:[%s549 + $0xb8] sm:$0xff]
      %v2419 = vld [vmem:[%s549 + $0xc0] sm:$0xff]
      %v2420 = vld [vmem:[%s549 + $0xc8] sm:$0xff]
      %v2421 = vld [vmem:[%s549 + $0xd0] sm:$0xff]
      %v2422 = vld [vmem:[%s549 + $0xd8] sm:$0xff]
      %v2423 = vld [vmem:[%s549 + $0xe0] sm:$0xff]
      %v2424 = vld [vmem:[%s549 + $0xe8] sm:$0xff]
      %v2425 = vld [vmem:[%s549 + $0xf0] sm:$0xff]
      %v2426 = vld [vmem:[%s549 + $0xf8] sm:$0xff]
      %v2427 = vld [vmem:[%s549 + $0x100] sm:$0xff]
      %v2428 = vld [vmem:[%s549 + $0x108] sm:$0xff]
      %v2429 = vld [vmem:[%s549 + $0x110] sm:$0xff]
      %v2430 = vld [vmem:[%s549 + $0x118] sm:$0xff]
      %v2431 = vld [vmem:[%s549 + $0x120] sm:$0xff]
      %v2432 = vld [vmem:[%s549 + $0x128] sm:$0xff]
      %v2433 = vld [vmem:[%s549 + $0x130] sm:$0xff]
      %v2434 = vld [vmem:[%s549 + $0x138] sm:$0xff]
      %v2435 = vld [vmem:[%s549 + $0x140] sm:$0xff]
      %v2436 = vld [vmem:[%s549 + $0x148] sm:$0xff]
      %v2437 = vld [vmem:[%s549 + $0x150] sm:$0xff]
      %v2438 = vld [vmem:[%s549 + $0x158] sm:$0xff]
      %v2439 = vld [vmem:[%s549 + $0x160] sm:$0xff]
      %v2440 = vld [vmem:[%s549 + $0x168] sm:$0xff]
      %v2441 = vld [vmem:[%s549 + $0x170] sm:$0xff]
      %v2442 = vld [vmem:[%s549 + $0x178] sm:$0xff]
      %v2443 = vld [vmem:[%s549 + $0x180] sm:$0xff]
      %v2444 = vld [vmem:[%s549 + $0x188] sm:$0xff]
      %v2445 = vld [vmem:[%s549 + $0x190] sm:$0xff]
      %v2446 = vld [vmem:[%s549 + $0x198] sm:$0xff]
      %v2447 = vld [vmem:[%s549 + $0x1a0] sm:$0xff]
      %v2448 = vld [vmem:[%s549 + $0x1a8] sm:$0xff]
      %v2449 = vld [vmem:[%s549 + $0x1b0] sm:$0xff]
      %v2450 = vld [vmem:[%s549 + $0x1b8] sm:$0xff]
      %v2451 = vld [vmem:[%s549 + $0x1c0] sm:$0xff]
      %v2452 = vld [vmem:[%s549 + $0x1c8] sm:$0xff]
      %v2453 = vld [vmem:[%s549 + $0x1d0] sm:$0xff]
      %v2454 = vld [vmem:[%s549 + $0x1d8] sm:$0xff]
      %v2455 = vld [vmem:[%s549 + $0x1e0] sm:$0xff]
      %v2456 = vld [vmem:[%s549 + $0x1e8] sm:$0xff]
      %v2457 = vld [vmem:[%s549 + $0x1f0] sm:$0xff]
      %v2458 = vld [vmem:[%s549 + $0x1f8] sm:$0xff]
      %v2459 = vld [vmem:[%s10] sm:$0xff]
      %v2460 = vld [vmem:[%s10 + $0x8] sm:$0xff]
      %v2461 = vld [vmem:[%s10 + $0x10] sm:$0xff]
      %v2462 = vld [vmem:[%s10 + $0x18] sm:$0xff]
      %v2463 = vld [vmem:[%s10 + $0x20] sm:$0xff]
      %v2464 = vld [vmem:[%s10 + $0x28] sm:$0xff]
      %v2465 = vld [vmem:[%s10 + $0x30] sm:$0xff]
      %v2466 = vld [vmem:[%s10 + $0x38] sm:$0xff]
      %v2467 = vld [vmem:[%s11] sm:$0x1]
      %v2469 = vlaneseq
      %v2470 = vshrl.u32 %v2469, 7
      %v2471 = vsub.s32 0, %v2470
      %v2472 = vrot.slane %v2467, %v2471
      %2474 = vxpose.xlu0.b32.start [1/16] %v2395, 128
      %2475 = vxpose.xlu0.b32.cont [2/16] %v2403, 128
      %2476 = vxpose.xlu0.b32.cont [3/16] %v2411, 128
      %2477 = vxpose.xlu0.b32.cont [4/16] %v2419, 128
      %2478 = vxpose.xlu0.b32.cont [5/16] %v2427, 128
      %2479 = vxpose.xlu0.b32.cont [6/16] %v2435, 128
      %2480 = vxpose.xlu0.b32.cont [7/16] %v2443, 128
      %2481 = vxpose.xlu0.b32.cont [8/16] %v2451, 128
      %2482 = vxpose.xlu0.b32.cont [9/16] 0.0, 128
      %2483 = vxpose.xlu0.b32.cont [10/16] 0.0, 128
      %2484 = vxpose.xlu0.b32.cont [11/16] 0.0, 128
      %2485 = vxpose.xlu0.b32.cont [12/16] 0.0, 128
      %2486 = vxpose.xlu0.b32.cont [13/16] 0.0, 128
      %2487 = vxpose.xlu0.b32.cont [14/16] 0.0, 128
      %2488 = vxpose.xlu0.b32.cont [15/16] 0.0, 128
      %2489 = vxpose.xlu0.b32.end [16/16] 0.0, 128
      %v2490 = vpop.trf.xlu0
      %v2491 = vpop.trf.xlu0
      %v2492 = vpop.trf.xlu0
      %v2493 = vpop.trf.xlu0
      %v2494 = vpop.trf.xlu0
      %v2495 = vpop.trf.xlu0
      %v2496 = vpop.trf.xlu0
      %v2497 = vpop.trf.xlu0
      %v2498 = vpop.trf.xlu0
      %v2499 = vpop.trf.xlu0
      %v2500 = vpop.trf.xlu0
      %v2501 = vpop.trf.xlu0
      %v2502 = vpop.trf.xlu0
      %v2503 = vpop.trf.xlu0
      %v2504 = vpop.trf.xlu0
      %v2505 = vpop.trf.xlu0
      %2506 = vxpose.xlu0.b32.start [1/16] %v2396, 128
      %2507 = vxpose.xlu0.b32.cont [2/16] %v2404, 128
      %2508 = vxpose.xlu0.b32.cont [3/16] %v2412, 128
      %2509 = vxpose.xlu0.b32.cont [4/16] %v2420, 128
      %2510 = vxpose.xlu0.b32.cont [5/16] %v2428, 128
      %2511 = vxpose.xlu0.b32.cont [6/16] %v2436, 128
      %2512 = vxpose.xlu0.b32.cont [7/16] %v2444, 128
      %2513 = vxpose.xlu0.b32.cont [8/16] %v2452, 128
      %2514 = vxpose.xlu0.b32.cont [9/16] 0.0, 128
      %2515 = vxpose.xlu0.b32.cont [10/16] 0.0, 128
      %2516 = vxpose.xlu0.b32.cont [11/16] 0.0, 128
      %2517 = vxpose.xlu0.b32.cont [12/16] 0.0, 128
      %2518 = vxpose.xlu0.b32.cont [13/16] 0.0, 128
      %2519 = vxpose.xlu0.b32.cont [14/16] 0.0, 128
      %2520 = vxpose.xlu0.b32.cont [15/16] 0.0, 128
      %2521 = vxpose.xlu0.b32.end [16/16] 0.0, 128
      %v2522 = vpop.trf.xlu0
      %v2523 = vpop.trf.xlu0
      %v2524 = vpop.trf.xlu0
      %v2525 = vpop.trf.xlu0
      %v2526 = vpop.trf.xlu0
      %v2527 = vpop.trf.xlu0
      %v2528 = vpop.trf.xlu0
      %v2529 = vpop.trf.xlu0
      %v2530 = vpop.trf.xlu0
      %v2531 = vpop.trf.xlu0
      %v2532 = vpop.trf.xlu0
      %v2533 = vpop.trf.xlu0
      %v2534 = vpop.trf.xlu0
      %v2535 = vpop.trf.xlu0
      %v2536 = vpop.trf.xlu0
      %v2537 = vpop.trf.xlu0
      %2538 = vxpose.xlu0.b32.start [1/16] %v2397, 128
      %2539 = vxpose.xlu0.b32.cont [2/16] %v2405, 128
      %2540 = vxpose.xlu0.b32.cont [3/16] %v2413, 128
      %2541 = vxpose.xlu0.b32.cont [4/16] %v2421, 128
      %2542 = vxpose.xlu0.b32.cont [5/16] %v2429, 128
      %2543 = vxpose.xlu0.b32.cont [6/16] %v2437, 128
      %2544 = vxpose.xlu0.b32.cont [7/16] %v2445, 128
      %2545 = vxpose.xlu0.b32.cont [8/16] %v2453, 128
      %2546 = vxpose.xlu0.b32.cont [9/16] 0.0, 128
      %2547 = vxpose.xlu0.b32.cont [10/16] 0.0, 128
      %2548 = vxpose.xlu0.b32.cont [11/16] 0.0, 128
      %2549 = vxpose.xlu0.b32.cont [12/16] 0.0, 128
      %2550 = vxpose.xlu0.b32.cont [13/16] 0.0, 128
      %2551 = vxpose.xlu0.b32.cont [14/16] 0.0, 128
      %2552 = vxpose.xlu0.b32.cont [15/16] 0.0, 128
      %2553 = vxpose.xlu0.b32.end [16/16] 0.0, 128
      %v2554 = vpop.trf.xlu0
      %v2555 = vpop.trf.xlu0
      %v2556 = vpop.trf.xlu0
      %v2557 = vpop.trf.xlu0
      %v2558 = vpop.trf.xlu0
      %v2559 = vpop.trf.xlu0
      %v2560 = vpop.trf.xlu0
      %v2561 = vpop.trf.xlu0
      %v2562 = vpop.trf.xlu0
      %v2563 = vpop.trf.xlu0
      %v2564 = vpop.trf.xlu0
      %v2565 = vpop.trf.xlu0
      %v2566 = vpop.trf.xlu0
      %v2567 = vpop.trf.xlu0
      %v2568 = vpop.trf.xlu0
      %v2569 = vpop.trf.xlu0
      %2570 = vxpose.xlu0.b32.start [1/16] %v2398, 128
      %2571 = vxpose.xlu0.b32.cont [2/16] %v2406, 128
      %2572 = vxpose.xlu0.b32.cont [3/16] %v2414, 128
      %2573 = vxpose.xlu0.b32.cont [4/16] %v2422, 128
      %2574 = vxpose.xlu0.b32.cont [5/16] %v2430, 128
      %2575 = vxpose.xlu0.b32.cont [6/16] %v2438, 128
      %2576 = vxpose.xlu0.b32.cont [7/16] %v2446, 128
      %2577 = vxpose.xlu0.b32.cont [8/16] %v2454, 128
      %2578 = vxpose.xlu0.b32.cont [9/16] 0.0, 128
      %2579 = vxpose.xlu0.b32.cont [10/16] 0.0, 128
      %2580 = vxpose.xlu0.b32.cont [11/16] 0.0, 128
      %2581 = vxpose.xlu0.b32.cont [12/16] 0.0, 128
      %2582 = vxpose.xlu0.b32.cont [13/16] 0.0, 128
      %2583 = vxpose.xlu0.b32.cont [14/16] 0.0, 128
      %2584 = vxpose.xlu0.b32.cont [15/16] 0.0, 128
      %2585 = vxpose.xlu0.b32.end [16/16] 0.0, 128
      %v2586 = vpop.trf.xlu0
      %v2587 = vpop.trf.xlu0
      %v2588 = vpop.trf.xlu0
      %v2589 = vpop.trf.xlu0
      %v2590 = vpop.trf.xlu0
      %v2591 = vpop.trf.xlu0
      %v2592 = vpop.trf.xlu0
      %v2593 = vpop.trf.xlu0
      %v2594 = vpop.trf.xlu0
      %v2595 = vpop.trf.xlu0
      %v2596 = vpop.trf.xlu0
      %v2597 = vpop.trf.xlu0
      %v2598 = vpop.trf.xlu0
      %v2599 = vpop.trf.xlu0
      %v2600 = vpop.trf.xlu0
      %v2601 = vpop.trf.xlu0
      %2602 = vxpose.xlu0.b32.start [1/16] %v2399, 128
      %2603 = vxpose.xlu0.b32.cont [2/16] %v2407, 128
      %2604 = vxpose.xlu0.b32.cont [3/16] %v2415, 128
      %2605 = vxpose.xlu0.b32.cont [4/16] %v2423, 128
      %2606 = vxpose.xlu0.b32.cont [5/16] %v2431, 128
      %2607 = vxpose.xlu0.b32.cont [6/16] %v2439, 128
      %2608 = vxpose.xlu0.b32.cont [7/16] %v2447, 128
      %2609 = vxpose.xlu0.b32.cont [8/16] %v2455, 128
      %2610 = vxpose.xlu0.b32.cont [9/16] 0.0, 128
      %2611 = vxpose.xlu0.b32.cont [10/16] 0.0, 128
      %2612 = vxpose.xlu0.b32.cont [11/16] 0.0, 128
      %2613 = vxpose.xlu0.b32.cont [12/16] 0.0, 128
      %2614 = vxpose.xlu0.b32.cont [13/16] 0.0, 128
      %2615 = vxpose.xlu0.b32.cont [14/16] 0.0, 128
      %2616 = vxpose.xlu0.b32.cont [15/16] 0.0, 128
      %2617 = vxpose.xlu0.b32.end [16/16] 0.0, 128
      %v2618 = vpop.trf.xlu0
      %v2619 = vpop.trf.xlu0
      %v2620 = vpop.trf.xlu0
      %v2621 = vpop.trf.xlu0
      %v2622 = vpop.trf.xlu0
      %v2623 = vpop.trf.xlu0
      %v2624 = vpop.trf.xlu0
      %v2625 = vpop.trf.xlu0
      %v2626 = vpop.trf.xlu0
      %v2627 = vpop.trf.xlu0
      %v2628 = vpop.trf.xlu0
      %v2629 = vpop.trf.xlu0
      %v2630 = vpop.trf.xlu0
      %v2631 = vpop.trf.xlu0
      %v2632 = vpop.trf.xlu0
      %v2633 = vpop.trf.xlu0
      %2634 = vxpose.xlu0.b32.start [1/16] %v2400, 128
      %2635 = vxpose.xlu0.b32.cont [2/16] %v2408, 128
      %2636 = vxpose.xlu0.b32.cont [3/16] %v2416, 128
      %2637 = vxpose.xlu0.b32.cont [4/16] %v2424, 128
      %2638 = vxpose.xlu0.b32.cont [5/16] %v2432, 128
      %2639 = vxpose.xlu0.b32.cont [6/16] %v2440, 128
      %2640 = vxpose.xlu0.b32.cont [7/16] %v2448, 128
      %2641 = vxpose.xlu0.b32.cont [8/16] %v2456, 128
      %2642 = vxpose.xlu0.b32.cont [9/16] 0.0, 128
      %2643 = vxpose.xlu0.b32.cont [10/16] 0.0, 128
      %2644 = vxpose.xlu0.b32.cont [11/16] 0.0, 128
      %2645 = vxpose.xlu0.b32.cont [12/16] 0.0, 128
      %2646 = vxpose.xlu0.b32.cont [13/16] 0.0, 128
      %2647 = vxpose.xlu0.b32.cont [14/16] 0.0, 128
      %2648 = vxpose.xlu0.b32.cont [15/16] 0.0, 128
      %2649 = vxpose.xlu0.b32.end [16/16] 0.0, 128
      %v2650 = vpop.trf.xlu0
      %v2651 = vpop.trf.xlu0
      %v2652 = vpop.trf.xlu0
      %v2653 = vpop.trf.xlu0
      %v2654 = vpop.trf.xlu0
      %v2655 = vpop.trf.xlu0
      %v2656 = vpop.trf.xlu0
      %v2657 = vpop.trf.xlu0
      %v2658 = vpop.trf.xlu0
      %v2659 = vpop.trf.xlu0
      %v2660 = vpop.trf.xlu0
      %v2661 = vpop.trf.xlu0
      %v2662 = vpop.trf.xlu0
      %v2663 = vpop.trf.xlu0
      %v2664 = vpop.trf.xlu0
      %v2665 = vpop.trf.xlu0
      %2666 = vxpose.xlu0.b32.start [1/16] %v2401, 128
      %2667 = vxpose.xlu0.b32.cont [2/16] %v2409, 128
      %2668 = vxpose.xlu0.b32.cont [3/16] %v2417, 128
      %2669 = vxpose.xlu0.b32.cont [4/16] %v2425, 128
      %2670 = vxpose.xlu0.b32.cont [5/16] %v2433, 128
      %2671 = vxpose.xlu0.b32.cont [6/16] %v2441, 128
      %2672 = vxpose.xlu0.b32.cont [7/16] %v2449, 128
      %2673 = vxpose.xlu0.b32.cont [8/16] %v2457, 128
      %2674 = vxpose.xlu0.b32.cont [9/16] 0.0, 128
      %2675 = vxpose.xlu0.b32.cont [10/16] 0.0, 128
      %2676 = vxpose.xlu0.b32.cont [11/16] 0.0, 128
      %2677 = vxpose.xlu0.b32.cont [12/16] 0.0, 128
      %2678 = vxpose.xlu0.b32.cont [13/16] 0.0, 128
      %2679 = vxpose.xlu0.b32.cont [14/16] 0.0, 128
      %2680 = vxpose.xlu0.b32.cont [15/16] 0.0, 128
      %2681 = vxpose.xlu0.b32.end [16/16] 0.0, 128
      %v2682 = vpop.trf.xlu0
      %v2683 = vpop.trf.xlu0
      %v2684 = vpop.trf.xlu0
      %v2685 = vpop.trf.xlu0
      %v2686 = vpop.trf.xlu0
      %v2687 = vpop.trf.xlu0
      %v2688 = vpop.trf.xlu0
      %v2689 = vpop.trf.xlu0
      %v2690 = vpop.trf.xlu0
      %v2691 = vpop.trf.xlu0
      %v2692 = vpop.trf.xlu0
      %v2693 = vpop.trf.xlu0
      %v2694 = vpop.trf.xlu0
      %v2695 = vpop.trf.xlu0
      %v2696 = vpop.trf.xlu0
      %v2697 = vpop.trf.xlu0
      %2698 = vxpose.xlu0.b32.start [1/16] %v2402, 128
      %2699 = vxpose.xlu0.b32.cont [2/16] %v2410, 128
      %2700 = vxpose.xlu0.b32.cont [3/16] %v2418, 128
      %2701 = vxpose.xlu0.b32.cont [4/16] %v2426, 128
      %2702 = vxpose.xlu0.b32.cont [5/16] %v2434, 128
      %2703 = vxpose.xlu0.b32.cont [6/16] %v2442, 128
      %2704 = vxpose.xlu0.b32.cont [7/16] %v2450, 128
      %2705 = vxpose.xlu0.b32.cont [8/16] %v2458, 128
      %2706 = vxpose.xlu0.b32.cont [9/16] 0.0, 128
      %2707 = vxpose.xlu0.b32.cont [10/16] 0.0, 128
      %2708 = vxpose.xlu0.b32.cont [11/16] 0.0, 128
      %2709 = vxpose.xlu0.b32.cont [12/16] 0.0, 128
      %2710 = vxpose.xlu0.b32.cont [13/16] 0.0, 128
      %2711 = vxpose.xlu0.b32.cont [14/16] 0.0, 128
      %2712 = vxpose.xlu0.b32.cont [15/16] 0.0, 128
      %2713 = vxpose.xlu0.b32.end [16/16] 0.0, 128
      %v2714 = vpop.trf.xlu0
      %v2715 = vpop.trf.xlu0
      %v2716 = vpop.trf.xlu0
      %v2717 = vpop.trf.xlu0
      %v2718 = vpop.trf.xlu0
      %v2719 = vpop.trf.xlu0
      %v2720 = vpop.trf.xlu0
      %v2721 = vpop.trf.xlu0
      %v2722 = vpop.trf.xlu0
      %v2723 = vpop.trf.xlu0
      %v2724 = vpop.trf.xlu0
      %v2725 = vpop.trf.xlu0
      %v2726 = vpop.trf.xlu0
      %v2727 = vpop.trf.xlu0
      %v2728 = vpop.trf.xlu0
      %v2729 = vpop.trf.xlu0
      %vm2730 = vcmask 523264
      %v2732 = vsel %vm2730, %v2490, 0
      %v2735 = vsel %vm2730, %v2491, 0
      %v2738 = vsel %vm2730, %v2492, 0
      %v2741 = vsel %vm2730, %v2493, 0
      %v2744 = vsel %vm2730, %v2494, 0
      %v2747 = vsel %vm2730, %v2495, 0
      %v2750 = vsel %vm2730, %v2496, 0
      %v2753 = vsel %vm2730, %v2497, 0
      %v2756 = vsel %vm2730, %v2498, 0
      %v2759 = vsel %vm2730, %v2499, 0
      %v2762 = vsel %vm2730, %v2500, 0
      %v2765 = vsel %vm2730, %v2501, 0
      %v2768 = vsel %vm2730, %v2502, 0
      %v2771 = vsel %vm2730, %v2503, 0
      %v2774 = vsel %vm2730, %v2504, 0
      %v2777 = vsel %vm2730, %v2505, 0
      %v2780 = vsel %vm2730, %v2522, 0
      %v2783 = vsel %vm2730, %v2523, 0
      %v2786 = vsel %vm2730, %v2524, 0
      %v2789 = vsel %vm2730, %v2525, 0
      %v2792 = vsel %vm2730, %v2526, 0
      %v2795 = vsel %vm2730, %v2527, 0
      %v2798 = vsel %vm2730, %v2528, 0
      %v2801 = vsel %vm2730, %v2529, 0
      %v2804 = vsel %vm2730, %v2530, 0
      %v2807 = vsel %vm2730, %v2531, 0
      %v2810 = vsel %vm2730, %v2532, 0
      %v2813 = vsel %vm2730, %v2533, 0
      %v2816 = vsel %vm2730, %v2534, 0
      %v2819 = vsel %vm2730, %v2535, 0
      %v2822 = vsel %vm2730, %v2536, 0
      %v2825 = vsel %vm2730, %v2537, 0
      %v2828 = vsel %vm2730, %v2554, 0
      %v2831 = vsel %vm2730, %v2555, 0
      %v2834 = vsel %vm2730, %v2556, 0
      %v2837 = vsel %vm2730, %v2557, 0
      %v2840 = vsel %vm2730, %v2558, 0
      %v2843 = vsel %vm2730, %v2559, 0
      %v2846 = vsel %vm2730, %v2560, 0
      %v2849 = vsel %vm2730, %v2561, 0
      %v2852 = vsel %vm2730, %v2562, 0
      %v2855 = vsel %vm2730, %v2563, 0
      %v2858 = vsel %vm2730, %v2564, 0
      %v2861 = vsel %vm2730, %v2565, 0
      %v2864 = vsel %vm2730, %v2566, 0
      %v2867 = vsel %vm2730, %v2567, 0
      %v2870 = vsel %vm2730, %v2568, 0
      %v2873 = vsel %vm2730, %v2569, 0
      %v2876 = vsel %vm2730, %v2586, 0
      %v2879 = vsel %vm2730, %v2587, 0
      %v2882 = vsel %vm2730, %v2588, 0
      %v2885 = vsel %vm2730, %v2589, 0
      %v2888 = vsel %vm2730, %v2590, 0
      %v2891 = vsel %vm2730, %v2591, 0
      %v2894 = vsel %vm2730, %v2592, 0
      %v2897 = vsel %vm2730, %v2593, 0
      %v2900 = vsel %vm2730, %v2594, 0
      %v2903 = vsel %vm2730, %v2595, 0
      %v2906 = vsel %vm2730, %v2596, 0
      %v2909 = vsel %vm2730, %v2597, 0
      %v2912 = vsel %vm2730, %v2598, 0
      %v2915 = vsel %vm2730, %v2599, 0
      %v2918 = vsel %vm2730, %v2600, 0
      %v2921 = vsel %vm2730, %v2601, 0
      %v2924 = vsel %vm2730, %v2618, 0
      %v2927 = vsel %vm2730, %v2619, 0
      %v2930 = vsel %vm2730, %v2620, 0
      %v2933 = vsel %vm2730, %v2621, 0
      %v2936 = vsel %vm2730, %v2622, 0
      %v2939 = vsel %vm2730, %v2623, 0
      %v2942 = vsel %vm2730, %v2624, 0
      %v2945 = vsel %vm2730, %v2625, 0
      %v2948 = vsel %vm2730, %v2626, 0
      %v2951 = vsel %vm2730, %v2627, 0
      %v2954 = vsel %vm2730, %v2628, 0
      %v2957 = vsel %vm2730, %v2629, 0
      %v2960 = vsel %vm2730, %v2630, 0
      %v2963 = vsel %vm2730, %v2631, 0
      %v2966 = vsel %vm2730, %v2632, 0
      %v2969 = vsel %vm2730, %v2633, 0
      %v2972 = vsel %vm2730, %v2650, 0
      %v2975 = vsel %vm2730, %v2651, 0
      %v2978 = vsel %vm2730, %v2652, 0
      %v2981 = vsel %vm2730, %v2653, 0
      %v2984 = vsel %vm2730, %v2654, 0
      %v2987 = vsel %vm2730, %v2655, 0
      %v2990 = vsel %vm2730, %v2656, 0
      %v2993 = vsel %vm2730, %v2657, 0
      %v2996 = vsel %vm2730, %v2658, 0
      %v2999 = vsel %vm2730, %v2659, 0
      %v3002 = vsel %vm2730, %v2660, 0
      %v3005 = vsel %vm2730, %v2661, 0
      %v3008 = vsel %vm2730, %v2662, 0
      %v3011 = vsel %vm2730, %v2663, 0
      %v3014 = vsel %vm2730, %v2664, 0
      %v3017 = vsel %vm2730, %v2665, 0
      %v3020 = vsel %vm2730, %v2682, 0
      %v3023 = vsel %vm2730, %v2683, 0
      %v3026 = vsel %vm2730, %v2684, 0
      %v3029 = vsel %vm2730, %v2685, 0
      %v3032 = vsel %vm2730, %v2686, 0
      %v3035 = vsel %vm2730, %v2687, 0
      %v3038 = vsel %vm2730, %v2688, 0
      %v3041 = vsel %vm2730, %v2689, 0
      %v3044 = vsel %vm2730, %v2690, 0
      %v3047 = vsel %vm2730, %v2691, 0
      %v3050 = vsel %vm2730, %v2692, 0
      %v3053 = vsel %vm2730, %v2693, 0
      %v3056 = vsel %vm2730, %v2694, 0
      %v3059 = vsel %vm2730, %v2695, 0
      %v3062 = vsel %vm2730, %v2696, 0
      %v3065 = vsel %vm2730, %v2697, 0
      %v3068 = vsel %vm2730, %v2714, 0
      %v3071 = vsel %vm2730, %v2715, 0
      %v3074 = vsel %vm2730, %v2716, 0
      %v3077 = vsel %vm2730, %v2717, 0
      %v3080 = vsel %vm2730, %v2718, 0
      %v3083 = vsel %vm2730, %v2719, 0
      %v3086 = vsel %vm2730, %v2720, 0
      %v3089 = vsel %vm2730, %v2721, 0
      %v3092 = vsel %vm2730, %v2722, 0
      %v3095 = vsel %vm2730, %v2723, 0
      %v3098 = vsel %vm2730, %v2724, 0
      %v3101 = vsel %vm2730, %v2725, 0
      %v3104 = vsel %vm2730, %v2726, 0
      %v3107 = vsel %vm2730, %v2727, 0
      %v3110 = vsel %vm2730, %v2728, 0
      %v3113 = vsel %vm2730, %v2729, 0
      %3115 = vmatprep.subr.mxu0 0.0
      %3116 = vmatpush1.msra.mxu0 %v2459
      %3117 = vmatprep.subr.mxu0 0.0
      %3118 = vmatpush1.msra.mxu0 %v2460
      %3119 = vmatprep.subr.mxu0 0.0
      %3120 = vmatpush1.msra.mxu0 %v2461
      %3121 = vmatprep.subr.mxu0 0.0
      %3122 = vmatpush1.msra.mxu0 %v2462
      %3123 = vmatprep.subr.mxu0 0.0
      %3124 = vmatpush1.msra.mxu0 %v2463
      %3125 = vmatprep.subr.mxu0 0.0
      %3126 = vmatpush1.msra.mxu0 %v2464
      %3127 = vmatprep.subr.mxu0 0.0
      %3128 = vmatpush1.msra.mxu0 %v2465
      %3129 = vmatprep.subr.mxu0 0.0
      %3130 = vmatpush1.msra.mxu0 %v2466
      %3131 = vmatprep.subr.mxu0 0.0
      %3132 = vmatpush1.msra.mxu0 0.0
      %3133 = vmatprep.subr.mxu0 0.0
      %3134 = vmatpush1.msra.mxu0 0.0
      %3135 = vmatprep.subr.mxu0 0.0
      %3136 = vmatpush1.msra.mxu0 0.0
      %3137 = vmatprep.subr.mxu0 0.0
      %3138 = vmatpush1.msra.mxu0 0.0
      %3139 = vmatprep.subr.mxu0 0.0
      %3140 = vmatpush1.msra.mxu0 0.0
      %3141 = vmatprep.subr.mxu0 0.0
      %3142 = vmatpush1.msra.mxu0 0.0
      %3143 = vmatprep.subr.mxu0 0.0
      %3144 = vmatpush1.msra.mxu0 0.0
      %3145 = vmatprep.subr.mxu0 0.0
      %3146 = vmatpush1.msra.mxu0 0.0
      %3147 = vmatprep.subr.mxu0 0.0
      %3148 = vmatpush1.msra.mxu0 0.0
      %3149 = vmatprep.subr.mxu0 0.0
      %3150 = vmatpush1.msra.mxu0 0.0
      %3151 = vmatprep.subr.mxu0 0.0
      %3152 = vmatpush1.msra.mxu0 0.0
      %3153 = vmatprep.subr.mxu0 0.0
      %3154 = vmatpush1.msra.mxu0 0.0
      %3155 = vmatprep.subr.mxu0 0.0
      %3156 = vmatpush1.msra.mxu0 0.0
      %3157 = vmatprep.subr.mxu0 0.0
      %3158 = vmatpush1.msra.mxu0 0.0
      %3159 = vmatprep.subr.mxu0 0.0
      %3160 = vmatpush1.msra.mxu0 0.0
      %3161 = vmatprep.subr.mxu0 0.0
      %3162 = vmatpush1.msra.mxu0 0.0
      %3163 = vmatprep.subr.mxu0 0.0
      %3164 = vmatpush1.msra.mxu0 0.0
      %3165 = vmatprep.subr.mxu0 0.0
      %3166 = vmatpush1.msra.mxu0 0.0
      %3167 = vmatprep.subr.mxu0 0.0
      %3168 = vmatpush1.msra.mxu0 0.0
      %3169 = vmatprep.subr.mxu0 0.0
      %3170 = vmatpush1.msra.mxu0 0.0
      %3171 = vmatprep.subr.mxu0 0.0
      %3172 = vmatpush1.msra.mxu0 0.0
      %3173 = vmatprep.subr.mxu0 0.0
      %3174 = vmatpush1.msra.mxu0 0.0
      %3175 = vmatprep.subr.mxu0 0.0
      %3176 = vmatpush1.msra.mxu0 0.0
      %3177 = vmatprep.subr.mxu0 0.0
      %3178 = vmatpush1.msra.mxu0 0.0
      %3179 = vmatprep.mubr.f32.mxu0 0.0
      %3180 = vmatmul.mubr.f32.gmra.mrb[0].mxu0 %v2732
      %v3181 = vpop.f32.mrb[0].mxu0
      %v3182 = vadd.f32 %v2472, %v3181
      %v3183 = vpop.f32.mrb[0].mxu0
      %3184 = vmatprep.mubr.f32.mxu0 0.0
      %3185 = vmatmul.mubr.f32.gmra.mrb[0].mxu0 %v2735
      %v3186 = vpop.f32.mrb[0].mxu0
      %v3187 = vadd.f32 %v2472, %v3186
      %v3188 = vpop.f32.mrb[0].mxu0
      %3189 = vmatprep.mubr.f32.mxu0 0.0
      %3190 = vmatmul.mubr.f32.gmra.mrb[0].mxu0 %v2738
      %v3191 = vpop.f32.mrb[0].mxu0
      %v3192 = vadd.f32 %v2472, %v3191
      %v3193 = vpop.f32.mrb[0].mxu0
      %3194 = vmatprep.mubr.f32.mxu0 0.0
      %3195 = vmatmul.mubr.f32.gmra.mrb[0].mxu0 %v2741
      %v3196 = vpop.f32.mrb[0].mxu0
      %v3197 = vadd.f32 %v2472, %v3196
      %v3198 = vpop.f32.mrb[0].mxu0
      %3199 = vmatprep.mubr.f32.mxu0 0.0
      %3200 = vmatmul.mubr.f32.gmra.mrb[0].mxu0 %v2744
      %v3201 = vpop.f32.mrb[0].mxu0
      %v3202 = vadd.f32 %v2472, %v3201
      %v3203 = vpop.f32.mrb[0].mxu0
      %3204 = vmatprep.mubr.f32.mxu0 0.0
      %3205 = vmatmul.mubr.f32.gmra.mrb[0].mxu0 %v2747
      %v3206 = vpop.f32.mrb[0].mxu0
      %v3207 = vadd.f32 %v2472, %v3206
      %v3208 = vpop.f32.mrb[0].mxu0
      %3209 = vmatprep.mubr.f32.mxu0 0.0
      %3210 = vmatmul.mubr.f32.gmra.mrb[0].mxu0 %v2750
      %v3211 = vpop.f32.mrb[0].mxu0
      %v3212 = vadd.f32 %v2472, %v3211
      %v3213 = vpop.f32.mrb[0].mxu0
      %3214 = vmatprep.mubr.f32.mxu0 0.0
      %3215 = vmatmul.mubr.f32.gmra.mrb[0].mxu0 %v2753
      %v3216 = vpop.f32.mrb[0].mxu0
      %v3217 = vadd.f32 %v2472, %v3216
      %v3218 = vpop.f32.mrb[0].mxu0
      %3219 = vmatprep.mubr.f32.mxu0 0.0
      %3220 = vmatmul.mubr.f32.gmra.mrb[0].mxu0 %v2756
      %v3221 = vpop.f32.mrb[0].mxu0
      %v3222 = vadd.f32 %v2472, %v3221
      %v3223 = vpop.f32.mrb[0].mxu0
      %3224 = vmatprep.mubr.f32.mxu0 0.0
      %3225 = vmatmul.mubr.f32.gmra.mrb[0].mxu0 %v2759
      %v3226 = vpop.f32.mrb[0].mxu0
      %v3227 = vadd.f32 %v2472, %v3226
      %v3228 = vpop.f32.mrb[0].mxu0
      %3229 = vmatprep.mubr.f32.mxu0 0.0
      %3230 = vmatmul.mubr.f32.gmra.mrb[0].mxu0 %v2762
      %v3231 = vpop.f32.mrb[0].mxu0
      %v3232 = vadd.f32 %v2472, %v3231
      %v3233 = vpop.f32.mrb[0].mxu0
      %3234 = vmatprep.mubr.f32.mxu0 0.0
      %3235 = vmatmul.mubr.f32.gmra.mrb[0].mxu0 %v2765
      %v3236 = vpop.f32.mrb[0].mxu0
      %v3237 = vadd.f32 %v2472, %v3236
      %v3238 = vpop.f32.mrb[0].mxu0
      %3239 = vmatprep.mubr.f32.mxu0 0.0
      %3240 = vmatmul.mubr.f32.gmra.mrb[0].mxu0 %v2768
      %v3241 = vpop.f32.mrb[0].mxu0
      %v3242 = vadd.f32 %v2472, %v3241
      %v3243 = vpop.f32.mrb[0].mxu0
      %3244 = vmatprep.mubr.f32.mxu0 0.0
      %3245 = vmatmul.mubr.f32.gmra.mrb[0].mxu0 %v2771
      %v3246 = vpop.f32.mrb[0].mxu0
      %v3247 = vadd.f32 %v2472, %v3246
      %v3248 = vpop.f32.mrb[0].mxu0
      %3249 = vmatprep.mubr.f32.mxu0 0.0
      %3250 = vmatmul.mubr.f32.gmra.mrb[0].mxu0 %v2774
      %v3251 = vpop.f32.mrb[0].mxu0
      %v3252 = vadd.f32 %v2472, %v3251
      %v3253 = vpop.f32.mrb[0].mxu0
      %3254 = vmatprep.mubr.f32.mxu0 0.0
      %3255 = vmatmul.mubr.f32.gmra.mrb[0].mxu0 %v2777
      %v3256 = vpop.f32.mrb[0].mxu0
      %v3257 = vadd.f32 %v2472, %v3256
      %v3258 = vpop.f32.mrb[0].mxu0
      %3259 = vmatprep.mubr.f32.mxu0 0.0
      %3260 = vmatmul.mubr.f32.gmra.mrb[0].mxu0 %v2780
      %v3261 = vpop.f32.mrb[0].mxu0
      %v3262 = vadd.f32 %v2472, %v3261
      %v3263 = vpop.f32.mrb[0].mxu0
      %3264 = vmatprep.mubr.f32.mxu0 0.0
      %3265 = vmatmul.mubr.f32.gmra.mrb[0].mxu0 %v2783
      %v3266 = vpop.f32.mrb[0].mxu0
      %v3267 = vadd.f32 %v2472, %v3266
      %v3268 = vpop.f32.mrb[0].mxu0
      %3269 = vmatprep.mubr.f32.mxu0 0.0
      %3270 = vmatmul.mubr.f32.gmra.mrb[0].mxu0 %v2786
      %v3271 = vpop.f32.mrb[0].mxu0
      %v3272 = vadd.f32 %v2472, %v3271
      %v3273 = vpop.f32.mrb[0].mxu0
      %3274 = vmatprep.mubr.f32.mxu0 0.0
      %3275 = vmatmul.mubr.f32.gmra.mrb[0].mxu0 %v2789
      %v3276 = vpop.f32.mrb[0].mxu0
      %v3277 = vadd.f32 %v2472, %v3276
      %v3278 = vpop.f32.mrb[0].mxu0
      %3279 = vmatprep.mubr.f32.mxu0 0.0
      %3280 = vmatmul.mubr.f32.gmra.mrb[0].mxu0 %v2792
      %v3281 = vpop.f32.mrb[0].mxu0
      %v3282 = vadd.f32 %v2472, %v3281
      %v3283 = vpop.f32.mrb[0].mxu0
      %3284 = vmatprep.mubr.f32.mxu0 0.0
      %3285 = vmatmul.mubr.f32.gmra.mrb[0].mxu0 %v2795
      %v3286 = vpop.f32.mrb[0].mxu0
      %v3287 = vadd.f32 %v2472, %v3286
      %v3288 = vpop.f32.mrb[0].mxu0
      %3289 = vmatprep.mubr.f32.mxu0 0.0
      %3290 = vmatmul.mubr.f32.gmra.mrb[0].mxu0 %v2798
      %v3291 = vpop.f32.mrb[0].mxu0
      %v3292 = vadd.f32 %v2472, %v3291
      %v3293 = vpop.f32.mrb[0].mxu0
      %3294 = vmatprep.mubr.f32.mxu0 0.0
      %3295 = vmatmul.mubr.f32.gmra.mrb[0].mxu0 %v2801
      %v3296 = vpop.f32.mrb[0].mxu0
      %v3297 = vadd.f32 %v2472, %v3296
      %v3298 = vpop.f32.mrb[0].mxu0
      %3299 = vmatprep.mubr.f32.mxu0 0.0
      %3300 = vmatmul.mubr.f32.gmra.mrb[0].mxu0 %v2804
      %v3301 = vpop.f32.mrb[0].mxu0
      %v3302 = vadd.f32 %v2472, %v3301
      %v3303 = vpop.f32.mrb[0].mxu0
      %3304 = vmatprep.mubr.f32.mxu0 0.0
      %3305 = vmatmul.mubr.f32.gmra.mrb[0].mxu0 %v2807
      %v3306 = vpop.f32.mrb[0].mxu0
      %v3307 = vadd.f32 %v2472, %v3306
      %v3308 = vpop.f32.mrb[0].mxu0
      %3309 = vmatprep.mubr.f32.mxu0 0.0
      %3310 = vmatmul.mubr.f32.gmra.mrb[0].mxu0 %v2810
      %v3311 = vpop.f32.mrb[0].mxu0
      %v3312 = vadd.f32 %v2472, %v3311
      %v3313 = vpop.f32.mrb[0].mxu0
      %3314 = vmatprep.mubr.f32.mxu0 0.0
      %3315 = vmatmul.mubr.f32.gmra.mrb[0].mxu0 %v2813
      %v3316 = vpop.f32.mrb[0].mxu0
      %v3317 = vadd.f32 %v2472, %v3316
      %v3318 = vpop.f32.mrb[0].mxu0
      %3319 = vmatprep.mubr.f32.mxu0 0.0
      %3320 = vmatmul.mubr.f32.gmra.mrb[0].mxu0 %v2816
      %v3321 = vpop.f32.mrb[0].mxu0
      %v3322 = vadd.f32 %v2472, %v3321
      %v3323 = vpop.f32.mrb[0].mxu0
      %3324 = vmatprep.mubr.f32.mxu0 0.0
      %3325 = vmatmul.mubr.f32.gmra.mrb[0].mxu0 %v2819
      %v3326 = vpop.f32.mrb[0].mxu0
      %v3327 = vadd.f32 %v2472, %v3326
      %v3328 = vpop.f32.mrb[0].mxu0
      %3329 = vmatprep.mubr.f32.mxu0 0.0
      %3330 = vmatmul.mubr.f32.gmra.mrb[0].mxu0 %v2822
      %v3331 = vpop.f32.mrb[0].mxu0
      %v3332 = vadd.f32 %v2472, %v3331
      %v3333 = vpop.f32.mrb[0].mxu0
      %3334 = vmatprep.mubr.f32.mxu0 0.0
      %3335 = vmatmul.mubr.f32.gmra.mrb[0].mxu0 %v2825
      %v3336 = vpop.f32.mrb[0].mxu0
      %v3337 = vadd.f32 %v2472, %v3336
      %v3338 = vpop.f32.mrb[0].mxu0
      %3339 = vmatprep.mubr.f32.mxu0 0.0
      %3340 = vmatmul.mubr.f32.gmra.mrb[0].mxu0 %v2828
      %v3341 = vpop.f32.mrb[0].mxu0
      %v3342 = vadd.f32 %v2472, %v3341
      %v3343 = vpop.f32.mrb[0].mxu0
      %3344 = vmatprep.mubr.f32.mxu0 0.0
      %3345 = vmatmul.mubr.f32.gmra.mrb[0].mxu0 %v2831
      %v3346 = vpop.f32.mrb[0].mxu0
      %v3347 = vadd.f32 %v2472, %v3346
      %v3348 = vpop.f32.mrb[0].mxu0
      %3349 = vmatprep.mubr.f32.mxu0 0.0
      %3350 = vmatmul.mubr.f32.gmra.mrb[0].mxu0 %v2834
      %v3351 = vpop.f32.mrb[0].mxu0
      %v3352 = vadd.f32 %v2472, %v3351
      %v3353 = vpop.f32.mrb[0].mxu0
      %3354 = vmatprep.mubr.f32.mxu0 0.0
      %3355 = vmatmul.mubr.f32.gmra.mrb[0].mxu0 %v2837
      %v3356 = vpop.f32.mrb[0].mxu0
      %v3357 = vadd.f32 %v2472, %v3356
      %v3358 = vpop.f32.mrb[0].mxu0
      %3359 = vmatprep.mubr.f32.mxu0 0.0
      %3360 = vmatmul.mubr.f32.gmra.mrb[0].mxu0 %v2840
      %v3361 = vpop.f32.mrb[0].mxu0
      %v3362 = vadd.f32 %v2472, %v3361
      %v3363 = vpop.f32.mrb[0].mxu0
      %3364 = vmatprep.mubr.f32.mxu0 0.0
      %3365 = vmatmul.mubr.f32.gmra.mrb[0].mxu0 %v2843
      %v3366 = vpop.f32.mrb[0].mxu0
      %v3367 = vadd.f32 %v2472, %v3366
      %v3368 = vpop.f32.mrb[0].mxu0
      %3369 = vmatprep.mubr.f32.mxu0 0.0
      %3370 = vmatmul.mubr.f32.gmra.mrb[0].mxu0 %v2846
      %v3371 = vpop.f32.mrb[0].mxu0
      %v3372 = vadd.f32 %v2472, %v3371
      %v3373 = vpop.f32.mrb[0].mxu0
      %3374 = vmatprep.mubr.f32.mxu0 0.0
      %3375 = vmatmul.mubr.f32.gmra.mrb[0].mxu0 %v2849
      %v3376 = vpop.f32.mrb[0].mxu0
      %v3377 = vadd.f32 %v2472, %v3376
      %v3378 = vpop.f32.mrb[0].mxu0
      %3379 = vmatprep.mubr.f32.mxu0 0.0
      %3380 = vmatmul.mubr.f32.gmra.mrb[0].mxu0 %v2852
      %v3381 = vpop.f32.mrb[0].mxu0
      %v3382 = vadd.f32 %v2472, %v3381
      %v3383 = vpop.f32.mrb[0].mxu0
      %3384 = vmatprep.mubr.f32.mxu0 0.0
      %3385 = vmatmul.mubr.f32.gmra.mrb[0].mxu0 %v2855
      %v3386 = vpop.f32.mrb[0].mxu0
      %v3387 = vadd.f32 %v2472, %v3386
      %v3388 = vpop.f32.mrb[0].mxu0
      %3389 = vmatprep.mubr.f32.mxu0 0.0
      %3390 = vmatmul.mubr.f32.gmra.mrb[0].mxu0 %v2858
      %v3391 = vpop.f32.mrb[0].mxu0
      %v3392 = vadd.f32 %v2472, %v3391
      %v3393 = vpop.f32.mrb[0].mxu0
      %3394 = vmatprep.mubr.f32.mxu0 0.0
      %3395 = vmatmul.mubr.f32.gmra.mrb[0].mxu0 %v2861
      %v3396 = vpop.f32.mrb[0].mxu0
      %v3397 = vadd.f32 %v2472, %v3396
      %v3398 = vpop.f32.mrb[0].mxu0
      %3399 = vmatprep.mubr.f32.mxu0 0.0
      %3400 = vmatmul.mubr.f32.gmra.mrb[0].mxu0 %v2864
      %v3401 = vpop.f32.mrb[0].mxu0
      %v3402 = vadd.f32 %v2472, %v3401
      %v3403 = vpop.f32.mrb[0].mxu0
      %3404 = vmatprep.mubr.f32.mxu0 0.0
      %3405 = vmatmul.mubr.f32.gmra.mrb[0].mxu0 %v2867
      %v3406 = vpop.f32.mrb[0].mxu0
      %v3407 = vadd.f32 %v2472, %v3406
      %v3408 = vpop.f32.mrb[0].mxu0
      %3409 = vmatprep.mubr.f32.mxu0 0.0
      %3410 = vmatmul.mubr.f32.gmra.mrb[0].mxu0 %v2870
      %v3411 = vpop.f32.mrb[0].mxu0
      %v3412 = vadd.f32 %v2472, %v3411
      %v3413 = vpop.f32.mrb[0].mxu0
      %3414 = vmatprep.mubr.f32.mxu0 0.0
      %3415 = vmatmul.mubr.f32.gmra.mrb[0].mxu0 %v2873
      %v3416 = vpop.f32.mrb[0].mxu0
      %v3417 = vadd.f32 %v2472, %v3416
      %v3418 = vpop.f32.mrb[0].mxu0
      %3419 = vmatprep.mubr.f32.mxu0 0.0
      %3420 = vmatmul.mubr.f32.gmra.mrb[0].mxu0 %v2876
      %v3421 = vpop.f32.mrb[0].mxu0
      %v3422 = vadd.f32 %v2472, %v3421
      %v3423 = vpop.f32.mrb[0].mxu0
      %3424 = vmatprep.mubr.f32.mxu0 0.0
      %3425 = vmatmul.mubr.f32.gmra.mrb[0].mxu0 %v2879
      %v3426 = vpop.f32.mrb[0].mxu0
      %v3427 = vadd.f32 %v2472, %v3426
      %v3428 = vpop.f32.mrb[0].mxu0
      %3429 = vmatprep.mubr.f32.mxu0 0.0
      %3430 = vmatmul.mubr.f32.gmra.mrb[0].mxu0 %v2882
      %v3431 = vpop.f32.mrb[0].mxu0
      %v3432 = vadd.f32 %v2472, %v3431
      %v3433 = vpop.f32.mrb[0].mxu0
      %3434 = vmatprep.mubr.f32.mxu0 0.0
      %3435 = vmatmul.mubr.f32.gmra.mrb[0].mxu0 %v2885
      %v3436 = vpop.f32.mrb[0].mxu0
      %v3437 = vadd.f32 %v2472, %v3436
      %v3438 = vpop.f32.mrb[0].mxu0
      %3439 = vmatprep.mubr.f32.mxu0 0.0
      %3440 = vmatmul.mubr.f32.gmra.mrb[0].mxu0 %v2888
      %v3441 = vpop.f32.mrb[0].mxu0
      %v3442 = vadd.f32 %v2472, %v3441
      %v3443 = vpop.f32.mrb[0].mxu0
      %3444 = vmatprep.mubr.f32.mxu0 0.0
      %3445 = vmatmul.mubr.f32.gmra.mrb[0].mxu0 %v2891
      %v3446 = vpop.f32.mrb[0].mxu0
      %v3447 = vadd.f32 %v2472, %v3446
      %v3448 = vpop.f32.mrb[0].mxu0
      %3449 = vmatprep.mubr.f32.mxu0 0.0
      %3450 = vmatmul.mubr.f32.gmra.mrb[0].mxu0 %v2894
      %v3451 = vpop.f32.mrb[0].mxu0
      %v3452 = vadd.f32 %v2472, %v3451
      %v3453 = vpop.f32.mrb[0].mxu0
      %3454 = vmatprep.mubr.f32.mxu0 0.0
      %3455 = vmatmul.mubr.f32.gmra.mrb[0].mxu0 %v2897
      %v3456 = vpop.f32.mrb[0].mxu0
      %v3457 = vadd.f32 %v2472, %v3456
      %v3458 = vpop.f32.mrb[0].mxu0
      %3459 = vmatprep.mubr.f32.mxu0 0.0
      %3460 = vmatmul.mubr.f32.gmra.mrb[0].mxu0 %v2900
      %v3461 = vpop.f32.mrb[0].mxu0
      %v3462 = vadd.f32 %v2472, %v3461
      %v3463 = vpop.f32.mrb[0].mxu0
      %3464 = vmatprep.mubr.f32.mxu0 0.0
      %3465 = vmatmul.mubr.f32.gmra.mrb[0].mxu0 %v2903
      %v3466 = vpop.f32.mrb[0].mxu0
      %v3467 = vadd.f32 %v2472, %v3466
      %v3468 = vpop.f32.mrb[0].mxu0
      %3469 = vmatprep.mubr.f32.mxu0 0.0
      %3470 = vmatmul.mubr.f32.gmra.mrb[0].mxu0 %v2906
      %v3471 = vpop.f32.mrb[0].mxu0
      %v3472 = vadd.f32 %v2472, %v3471
      %v3473 = vpop.f32.mrb[0].mxu0
      %3474 = vmatprep.mubr.f32.mxu0 0.0
      %3475 = vmatmul.mubr.f32.gmra.mrb[0].mxu0 %v2909
      %v3476 = vpop.f32.mrb[0].mxu0
      %v3477 = vadd.f32 %v2472, %v3476
      %v3478 = vpop.f32.mrb[0].mxu0
      %3479 = vmatprep.mubr.f32.mxu0 0.0
      %3480 = vmatmul.mubr.f32.gmra.mrb[0].mxu0 %v2912
      %v3481 = vpop.f32.mrb[0].mxu0
      %v3482 = vadd.f32 %v2472, %v3481
      %v3483 = vpop.f32.mrb[0].mxu0
      %3484 = vmatprep.mubr.f32.mxu0 0.0
      %3485 = vmatmul.mubr.f32.gmra.mrb[0].mxu0 %v2915
      %v3486 = vpop.f32.mrb[0].mxu0
      %v3487 = vadd.f32 %v2472, %v3486
      %v3488 = vpop.f32.mrb[0].mxu0
      %3489 = vmatprep.mubr.f32.mxu0 0.0
      %3490 = vmatmul.mubr.f32.gmra.mrb[0].mxu0 %v2918
      %v3491 = vpop.f32.mrb[0].mxu0
      %v3492 = vadd.f32 %v2472, %v3491
      %v3493 = vpop.f32.mrb[0].mxu0
      %3494 = vmatprep.mubr.f32.mxu0 0.0
      %3495 = vmatmul.mubr.f32.gmra.mrb[0].mxu0 %v2921
      %v3496 = vpop.f32.mrb[0].mxu0
      %v3497 = vadd.f32 %v2472, %v3496
      %v3498 = vpop.f32.mrb[0].mxu0
      %3499 = vmatprep.mubr.f32.mxu0 0.0
      %3500 = vmatmul.mubr.f32.gmra.mrb[0].mxu0 %v2924
      %v3501 = vpop.f32.mrb[0].mxu0
      %v3502 = vadd.f32 %v2472, %v3501
      %v3503 = vpop.f32.mrb[0].mxu0
      %3504 = vmatprep.mubr.f32.mxu0 0.0
      %3505 = vmatmul.mubr.f32.gmra.mrb[0].mxu0 %v2927
      %v3506 = vpop.f32.mrb[0].mxu0
      %v3507 = vadd.f32 %v2472, %v3506
      %v3508 = vpop.f32.mrb[0].mxu0
      %3509 = vmatprep.mubr.f32.mxu0 0.0
      %3510 = vmatmul.mubr.f32.gmra.mrb[0].mxu0 %v2930
      %v3511 = vpop.f32.mrb[0].mxu0
      %v3512 = vadd.f32 %v2472, %v3511
      %v3513 = vpop.f32.mrb[0].mxu0
      %3514 = vmatprep.mubr.f32.mxu0 0.0
      %3515 = vmatmul.mubr.f32.gmra.mrb[0].mxu0 %v2933
      %v3516 = vpop.f32.mrb[0].mxu0
      %v3517 = vadd.f32 %v2472, %v3516
      %v3518 = vpop.f32.mrb[0].mxu0
      %3519 = vmatprep.mubr.f32.mxu0 0.0
      %3520 = vmatmul.mubr.f32.gmra.mrb[0].mxu0 %v2936
      %v3521 = vpop.f32.mrb[0].mxu0
      %v3522 = vadd.f32 %v2472, %v3521
      %v3523 = vpop.f32.mrb[0].mxu0
      %3524 = vmatprep.mubr.f32.mxu0 0.0
      %3525 = vmatmul.mubr.f32.gmra.mrb[0].mxu0 %v2939
      %v3526 = vpop.f32.mrb[0].mxu0
      %v3527 = vadd.f32 %v2472, %v3526
      %v3528 = vpop.f32.mrb[0].mxu0
      %3529 = vmatprep.mubr.f32.mxu0 0.0
      %3530 = vmatmul.mubr.f32.gmra.mrb[0].mxu0 %v2942
      %v3531 = vpop.f32.mrb[0].mxu0
      %v3532 = vadd.f32 %v2472, %v3531
      %v3533 = vpop.f32.mrb[0].mxu0
      %3534 = vmatprep.mubr.f32.mxu0 0.0
      %3535 = vmatmul.mubr.f32.gmra.mrb[0].mxu0 %v2945
      %v3536 = vpop.f32.mrb[0].mxu0
      %v3537 = vadd.f32 %v2472, %v3536
      %v3538 = vpop.f32.mrb[0].mxu0
      %3539 = vmatprep.mubr.f32.mxu0 0.0
      %3540 = vmatmul.mubr.f32.gmra.mrb[0].mxu0 %v2948
      %v3541 = vpop.f32.mrb[0].mxu0
      %v3542 = vadd.f32 %v2472, %v3541
      %v3543 = vpop.f32.mrb[0].mxu0
      %3544 = vmatprep.mubr.f32.mxu0 0.0
      %3545 = vmatmul.mubr.f32.gmra.mrb[0].mxu0 %v2951
      %v3546 = vpop.f32.mrb[0].mxu0
      %v3547 = vadd.f32 %v2472, %v3546
      %v3548 = vpop.f32.mrb[0].mxu0
      %3549 = vmatprep.mubr.f32.mxu0 0.0
      %3550 = vmatmul.mubr.f32.gmra.mrb[0].mxu0 %v2954
      %v3551 = vpop.f32.mrb[0].mxu0
      %v3552 = vadd.f32 %v2472, %v3551
      %v3553 = vpop.f32.mrb[0].mxu0
      %3554 = vmatprep.mubr.f32.mxu0 0.0
      %3555 = vmatmul.mubr.f32.gmra.mrb[0].mxu0 %v2957
      %v3556 = vpop.f32.mrb[0].mxu0
      %v3557 = vadd.f32 %v2472, %v3556
      %v3558 = vpop.f32.mrb[0].mxu0
      %3559 = vmatprep.mubr.f32.mxu0 0.0
      %3560 = vmatmul.mubr.f32.gmra.mrb[0].mxu0 %v2960
      %v3561 = vpop.f32.mrb[0].mxu0
      %v3562 = vadd.f32 %v2472, %v3561
      %v3563 = vpop.f32.mrb[0].mxu0
      %3564 = vmatprep.mubr.f32.mxu0 0.0
      %3565 = vmatmul.mubr.f32.gmra.mrb[0].mxu0 %v2963
      %v3566 = vpop.f32.mrb[0].mxu0
      %v3567 = vadd.f32 %v2472, %v3566
      %v3568 = vpop.f32.mrb[0].mxu0
      %3569 = vmatprep.mubr.f32.mxu0 0.0
      %3570 = vmatmul.mubr.f32.gmra.mrb[0].mxu0 %v2966
      %v3571 = vpop.f32.mrb[0].mxu0
      %v3572 = vadd.f32 %v2472, %v3571
      %v3573 = vpop.f32.mrb[0].mxu0
      %3574 = vmatprep.mubr.f32.mxu0 0.0
      %3575 = vmatmul.mubr.f32.gmra.mrb[0].mxu0 %v2969
      %v3576 = vpop.f32.mrb[0].mxu0
      %v3577 = vadd.f32 %v2472, %v3576
      %v3578 = vpop.f32.mrb[0].mxu0
      %3579 = vmatprep.mubr.f32.mxu0 0.0
      %3580 = vmatmul.mubr.f32.gmra.mrb[0].mxu0 %v2972
      %v3581 = vpop.f32.mrb[0].mxu0
      %v3582 = vadd.f32 %v2472, %v3581
      %v3583 = vpop.f32.mrb[0].mxu0
      %3584 = vmatprep.mubr.f32.mxu0 0.0
      %3585 = vmatmul.mubr.f32.gmra.mrb[0].mxu0 %v2975
      %v3586 = vpop.f32.mrb[0].mxu0
      %v3587 = vadd.f32 %v2472, %v3586
      %v3588 = vpop.f32.mrb[0].mxu0
      %3589 = vmatprep.mubr.f32.mxu0 0.0
      %3590 = vmatmul.mubr.f32.gmra.mrb[0].mxu0 %v2978
      %v3591 = vpop.f32.mrb[0].mxu0
      %v3592 = vadd.f32 %v2472, %v3591
      %v3593 = vpop.f32.mrb[0].mxu0
      %3594 = vmatprep.mubr.f32.mxu0 0.0
      %3595 = vmatmul.mubr.f32.gmra.mrb[0].mxu0 %v2981
      %v3596 = vpop.f32.mrb[0].mxu0
      %v3597 = vadd.f32 %v2472, %v3596
      %v3598 = vpop.f32.mrb[0].mxu0
      %3599 = vmatprep.mubr.f32.mxu0 0.0
      %3600 = vmatmul.mubr.f32.gmra.mrb[0].mxu0 %v2984
      %v3601 = vpop.f32.mrb[0].mxu0
      %v3602 = vadd.f32 %v2472, %v3601
      %v3603 = vpop.f32.mrb[0].mxu0
      %3604 = vmatprep.mubr.f32.mxu0 0.0
      %3605 = vmatmul.mubr.f32.gmra.mrb[0].mxu0 %v2987
      %v3606 = vpop.f32.mrb[0].mxu0
      %v3607 = vadd.f32 %v2472, %v3606
      %v3608 = vpop.f32.mrb[0].mxu0
      %3609 = vmatprep.mubr.f32.mxu0 0.0
      %3610 = vmatmul.mubr.f32.gmra.mrb[0].mxu0 %v2990
      %v3611 = vpop.f32.mrb[0].mxu0
      %v3612 = vadd.f32 %v2472, %v3611
      %v3613 = vpop.f32.mrb[0].mxu0
      %3614 = vmatprep.mubr.f32.mxu0 0.0
      %3615 = vmatmul.mubr.f32.gmra.mrb[0].mxu0 %v2993
      %v3616 = vpop.f32.mrb[0].mxu0
      %v3617 = vadd.f32 %v2472, %v3616
      %v3618 = vpop.f32.mrb[0].mxu0
      %3619 = vmatprep.mubr.f32.mxu0 0.0
      %3620 = vmatmul.mubr.f32.gmra.mrb[0].mxu0 %v2996
      %v3621 = vpop.f32.mrb[0].mxu0
      %v3622 = vadd.f32 %v2472, %v3621
      %v3623 = vpop.f32.mrb[0].mxu0
      %3624 = vmatprep.mubr.f32.mxu0 0.0
      %3625 = vmatmul.mubr.f32.gmra.mrb[0].mxu0 %v2999
      %v3626 = vpop.f32.mrb[0].mxu0
      %v3627 = vadd.f32 %v2472, %v3626
      %v3628 = vpop.f32.mrb[0].mxu0
      %3629 = vmatprep.mubr.f32.mxu0 0.0
      %3630 = vmatmul.mubr.f32.gmra.mrb[0].mxu0 %v3002
      %v3631 = vpop.f32.mrb[0].mxu0
      %v3632 = vadd.f32 %v2472, %v3631
      %v3633 = vpop.f32.mrb[0].mxu0
      %3634 = vmatprep.mubr.f32.mxu0 0.0
      %3635 = vmatmul.mubr.f32.gmra.mrb[0].mxu0 %v3005
      %v3636 = vpop.f32.mrb[0].mxu0
      %v3637 = vadd.f32 %v2472, %v3636
      %v3638 = vpop.f32.mrb[0].mxu0
      %3639 = vmatprep.mubr.f32.mxu0 0.0
      %3640 = vmatmul.mubr.f32.gmra.mrb[0].mxu0 %v3008
      %v3641 = vpop.f32.mrb[0].mxu0
      %v3642 = vadd.f32 %v2472, %v3641
      %v3643 = vpop.f32.mrb[0].mxu0
      %3644 = vmatprep.mubr.f32.mxu0 0.0
      %3645 = vmatmul.mubr.f32.gmra.mrb[0].mxu0 %v3011
      %v3646 = vpop.f32.mrb[0].mxu0
      %v3647 = vadd.f32 %v2472, %v3646
      %v3648 = vpop.f32.mrb[0].mxu0
      %3649 = vmatprep.mubr.f32.mxu0 0.0
      %3650 = vmatmul.mubr.f32.gmra.mrb[0].mxu0 %v3014
      %v3651 = vpop.f32.mrb[0].mxu0
      %v3652 = vadd.f32 %v2472, %v3651
      %v3653 = vpop.f32.mrb[0].mxu0
      %3654 = vmatprep.mubr.f32.mxu0 0.0
      %3655 = vmatmul.mubr.f32.gmra.mrb[0].mxu0 %v3017
      %v3656 = vpop.f32.mrb[0].mxu0
      %v3657 = vadd.f32 %v2472, %v3656
      %v3658 = vpop.f32.mrb[0].mxu0
      %3659 = vmatprep.mubr.f32.mxu0 0.0
      %3660 = vmatmul.mubr.f32.gmra.mrb[0].mxu0 %v3020
      %v3661 = vpop.f32.mrb[0].mxu0
      %v3662 = vadd.f32 %v2472, %v3661
      %v3663 = vpop.f32.mrb[0].mxu0
      %3664 = vmatprep.mubr.f32.mxu0 0.0
      %3665 = vmatmul.mubr.f32.gmra.mrb[0].mxu0 %v3023
      %v3666 = vpop.f32.mrb[0].mxu0
      %v3667 = vadd.f32 %v2472, %v3666
      %v3668 = vpop.f32.mrb[0].mxu0
      %3669 = vmatprep.mubr.f32.mxu0 0.0
      %3670 = vmatmul.mubr.f32.gmra.mrb[0].mxu0 %v3026
      %v3671 = vpop.f32.mrb[0].mxu0
      %v3672 = vadd.f32 %v2472, %v3671
      %v3673 = vpop.f32.mrb[0].mxu0
      %3674 = vmatprep.mubr.f32.mxu0 0.0
      %3675 = vmatmul.mubr.f32.gmra.mrb[0].mxu0 %v3029
      %v3676 = vpop.f32.mrb[0].mxu0
      %v3677 = vadd.f32 %v2472, %v3676
      %v3678 = vpop.f32.mrb[0].mxu0
      %3679 = vmatprep.mubr.f32.mxu0 0.0
      %3680 = vmatmul.mubr.f32.gmra.mrb[0].mxu0 %v3032
      %v3681 = vpop.f32.mrb[0].mxu0
      %v3682 = vadd.f32 %v2472, %v3681
      %v3683 = vpop.f32.mrb[0].mxu0
      %3684 = vmatprep.mubr.f32.mxu0 0.0
      %3685 = vmatmul.mubr.f32.gmra.mrb[0].mxu0 %v3035
      %v3686 = vpop.f32.mrb[0].mxu0
      %v3687 = vadd.f32 %v2472, %v3686
      %v3688 = vpop.f32.mrb[0].mxu0
      %3689 = vmatprep.mubr.f32.mxu0 0.0
      %3690 = vmatmul.mubr.f32.gmra.mrb[0].mxu0 %v3038
      %v3691 = vpop.f32.mrb[0].mxu0
      %v3692 = vadd.f32 %v2472, %v3691
      %v3693 = vpop.f32.mrb[0].mxu0
      %3694 = vmatprep.mubr.f32.mxu0 0.0
      %3695 = vmatmul.mubr.f32.gmra.mrb[0].mxu0 %v3041
      %v3696 = vpop.f32.mrb[0].mxu0
      %v3697 = vadd.f32 %v2472, %v3696
      %v3698 = vpop.f32.mrb[0].mxu0
      %3699 = vmatprep.mubr.f32.mxu0 0.0
      %3700 = vmatmul.mubr.f32.gmra.mrb[0].mxu0 %v3044
      %v3701 = vpop.f32.mrb[0].mxu0
      %v3702 = vadd.f32 %v2472, %v3701
      %v3703 = vpop.f32.mrb[0].mxu0
      %3704 = vmatprep.mubr.f32.mxu0 0.0
      %3705 = vmatmul.mubr.f32.gmra.mrb[0].mxu0 %v3047
      %v3706 = vpop.f32.mrb[0].mxu0
      %v3707 = vadd.f32 %v2472, %v3706
      %v3708 = vpop.f32.mrb[0].mxu0
      %3709 = vmatprep.mubr.f32.mxu0 0.0
      %3710 = vmatmul.mubr.f32.gmra.mrb[0].mxu0 %v3050
      %v3711 = vpop.f32.mrb[0].mxu0
      %v3712 = vadd.f32 %v2472, %v3711
      %v3713 = vpop.f32.mrb[0].mxu0
      %3714 = vmatprep.mubr.f32.mxu0 0.0
      %3715 = vmatmul.mubr.f32.gmra.mrb[0].mxu0 %v3053
      %v3716 = vpop.f32.mrb[0].mxu0
      %v3717 = vadd.f32 %v2472, %v3716
      %v3718 = vpop.f32.mrb[0].mxu0
      %3719 = vmatprep.mubr.f32.mxu0 0.0
      %3720 = vmatmul.mubr.f32.gmra.mrb[0].mxu0 %v3056
      %v3721 = vpop.f32.mrb[0].mxu0
      %v3722 = vadd.f32 %v2472, %v3721
      %v3723 = vpop.f32.mrb[0].mxu0
      %3724 = vmatprep.mubr.f32.mxu0 0.0
      %3725 = vmatmul.mubr.f32.gmra.mrb[0].mxu0 %v3059
      %v3726 = vpop.f32.mrb[0].mxu0
      %v3727 = vadd.f32 %v2472, %v3726
      %v3728 = vpop.f32.mrb[0].mxu0
      %3729 = vmatprep.mubr.f32.mxu0 0.0
      %3730 = vmatmul.mubr.f32.gmra.mrb[0].mxu0 %v3062
      %v3731 = vpop.f32.mrb[0].mxu0
      %v3732 = vadd.f32 %v2472, %v3731
      %v3733 = vpop.f32.mrb[0].mxu0
      %3734 = vmatprep.mubr.f32.mxu0 0.0
      %3735 = vmatmul.mubr.f32.gmra.mrb[0].mxu0 %v3065
      %v3736 = vpop.f32.mrb[0].mxu0
      %v3737 = vadd.f32 %v2472, %v3736
      %v3738 = vpop.f32.mrb[0].mxu0
      %3739 = vmatprep.mubr.f32.mxu0 0.0
      %3740 = vmatmul.mubr.f32.gmra.mrb[0].mxu0 %v3068
      %v3741 = vpop.f32.mrb[0].mxu0
      %v3742 = vadd.f32 %v2472, %v3741
      %v3743 = vpop.f32.mrb[0].mxu0
      %3744 = vmatprep.mubr.f32.mxu0 0.0
      %3745 = vmatmul.mubr.f32.gmra.mrb[0].mxu0 %v3071
      %v3746 = vpop.f32.mrb[0].mxu0
      %v3747 = vadd.f32 %v2472, %v3746
      %v3748 = vpop.f32.mrb[0].mxu0
      %3749 = vmatprep.mubr.f32.mxu0 0.0
      %3750 = vmatmul.mubr.f32.gmra.mrb[0].mxu0 %v3074
      %v3751 = vpop.f32.mrb[0].mxu0
      %v3752 = vadd.f32 %v2472, %v3751
      %v3753 = vpop.f32.mrb[0].mxu0
      %3754 = vmatprep.mubr.f32.mxu0 0.0
      %3755 = vmatmul.mubr.f32.gmra.mrb[0].mxu0 %v3077
      %v3756 = vpop.f32.mrb[0].mxu0
      %v3757 = vadd.f32 %v2472, %v3756
      %v3758 = vpop.f32.mrb[0].mxu0
      %3759 = vmatprep.mubr.f32.mxu0 0.0
      %3760 = vmatmul.mubr.f32.gmra.mrb[0].mxu0 %v3080
      %v3761 = vpop.f32.mrb[0].mxu0
      %v3762 = vadd.f32 %v2472, %v3761
      %v3763 = vpop.f32.mrb[0].mxu0
      %3764 = vmatprep.mubr.f32.mxu0 0.0
      %3765 = vmatmul.mubr.f32.gmra.mrb[0].mxu0 %v3083
      %v3766 = vpop.f32.mrb[0].mxu0
      %v3767 = vadd.f32 %v2472, %v3766
      %v3768 = vpop.f32.mrb[0].mxu0
      %3769 = vmatprep.mubr.f32.mxu0 0.0
      %3770 = vmatmul.mubr.f32.gmra.mrb[0].mxu0 %v3086
      %v3771 = vpop.f32.mrb[0].mxu0
      %v3772 = vadd.f32 %v2472, %v3771
      %v3773 = vpop.f32.mrb[0].mxu0
      %3774 = vmatprep.mubr.f32.mxu0 0.0
      %3775 = vmatmul.mubr.f32.gmra.mrb[0].mxu0 %v3089
      %v3776 = vpop.f32.mrb[0].mxu0
      %v3777 = vadd.f32 %v2472, %v3776
      %v3778 = vpop.f32.mrb[0].mxu0
      %3779 = vmatprep.mubr.f32.mxu0 0.0
      %3780 = vmatmul.mubr.f32.gmra.mrb[0].mxu0 %v3092
      %v3781 = vpop.f32.mrb[0].mxu0
      %v3782 = vadd.f32 %v2472, %v3781
      %v3783 = vpop.f32.mrb[0].mxu0
      %3784 = vmatprep.mubr.f32.mxu0 0.0
      %3785 = vmatmul.mubr.f32.gmra.mrb[0].mxu0 %v3095
      %v3786 = vpop.f32.mrb[0].mxu0
      %v3787 = vadd.f32 %v2472, %v3786
      %v3788 = vpop.f32.mrb[0].mxu0
      %3789 = vmatprep.mubr.f32.mxu0 0.0
      %3790 = vmatmul.mubr.f32.gmra.mrb[0].mxu0 %v3098
      %v3791 = vpop.f32.mrb[0].mxu0
      %v3792 = vadd.f32 %v2472, %v3791
      %v3793 = vpop.f32.mrb[0].mxu0
      %3794 = vmatprep.mubr.f32.mxu0 0.0
      %3795 = vmatmul.mubr.f32.gmra.mrb[0].mxu0 %v3101
      %v3796 = vpop.f32.mrb[0].mxu0
      %v3797 = vadd.f32 %v2472, %v3796
      %v3798 = vpop.f32.mrb[0].mxu0
      %3799 = vmatprep.mubr.f32.mxu0 0.0
      %3800 = vmatmul.mubr.f32.gmra.mrb[0].mxu0 %v3104
      %v3801 = vpop.f32.mrb[0].mxu0
      %v3802 = vadd.f32 %v2472, %v3801
      %v3803 = vpop.f32.mrb[0].mxu0
      %3804 = vmatprep.mubr.f32.mxu0 0.0
      %3805 = vmatmul.mubr.f32.gmra.mrb[0].mxu0 %v3107
      %v3806 = vpop.f32.mrb[0].mxu0
      %v3807 = vadd.f32 %v2472, %v3806
      %v3808 = vpop.f32.mrb[0].mxu0
      %3809 = vmatprep.mubr.f32.mxu0 0.0
      %3810 = vmatmul.mubr.f32.gmra.mrb[0].mxu0 %v3110
      %v3811 = vpop.f32.mrb[0].mxu0
      %v3812 = vadd.f32 %v2472, %v3811
      %v3813 = vpop.f32.mrb[0].mxu0
      %3814 = vmatprep.mubr.f32.mxu0 0.0
      %3815 = vmatmul.mubr.f32.gmra.mrb[0].mxu0 %v3113
      %v3816 = vpop.f32.mrb[0].mxu0
      %v3817 = vadd.f32 %v2472, %v3816
      %v3818 = vpop.f32.mrb[0].mxu0
      %3819 = vdwg.mxu0
      %v3820 = vld [vmem:[%s14] sm:$0xff]
      %v3821 = vld [vmem:[%s14 + $0x8] sm:$0xff]
      %v3822 = vld [vmem:[%s14 + $0x10] sm:$0xff]
      %v3823 = vld [vmem:[%s14 + $0x18] sm:$0xff]
      %v3825 = vsel %vm1216, %v3820, 0
      %v3828 = vsel %vm1216, %v3821, 0
      %v3831 = vsel %vm1216, %v3822, 0
      %v3834 = vsel %vm1216, %v3823, 0
      %3836 = vmatprep.subr.mxu0 0.0
      %3837 = vmatpush1.msra.mxu0 %v2363
      %3838 = vmatprep.subr.mxu0 0.0
      %3839 = vmatpush1.msra.mxu0 %v2364
      %3840 = vmatprep.subr.mxu0 0.0
      %3841 = vmatpush1.msra.mxu0 0.0
      %3842 = vmatprep.subr.mxu0 0.0
      %3843 = vmatpush1.msra.mxu0 0.0
      %3844 = vmatprep.subr.mxu0 0.0
      %3845 = vmatpush1.msra.mxu0 0.0
      %3846 = vmatprep.subr.mxu0 0.0
      %3847 = vmatpush1.msra.mxu0 0.0
      %3848 = vmatprep.subr.mxu0 0.0
      %3849 = vmatpush1.msra.mxu0 0.0
      %3850 = vmatprep.subr.mxu0 0.0
      %3851 = vmatpush1.msra.mxu0 0.0
      %3852 = vmatprep.subr.mxu0 0.0
      %3853 = vmatpush1.msra.mxu0 0.0
      %3854 = vmatprep.subr.mxu0 0.0
      %3855 = vmatpush1.msra.mxu0 0.0
      %3856 = vmatprep.subr.mxu0 0.0
      %3857 = vmatpush1.msra.mxu0 0.0
      %3858 = vmatprep.subr.mxu0 0.0
      %3859 = vmatpush1.msra.mxu0 0.0
      %3860 = vmatprep.subr.mxu0 0.0
      %3861 = vmatpush1.msra.mxu0 0.0
      %3862 = vmatprep.subr.mxu0 0.0
      %3863 = vmatpush1.msra.mxu0 0.0
      %3864 = vmatprep.subr.mxu0 0.0
      %3865 = vmatpush1.msra.mxu0 0.0
      %3866 = vmatprep.subr.mxu0 0.0
      %3867 = vmatpush1.msra.mxu0 0.0
      %3868 = vmatprep.subr.mxu0 0.0
      %3869 = vmatpush1.msra.mxu0 0.0
      %3870 = vmatprep.subr.mxu0 0.0
      %3871 = vmatpush1.msra.mxu0 0.0
      %3872 = vmatprep.subr.mxu0 0.0
      %3873 = vmatpush1.msra.mxu0 0.0
      %3874 = vmatprep.subr.mxu0 0.0
      %3875 = vmatpush1.msra.mxu0 0.0
      %3876 = vmatprep.subr.mxu0 0.0
      %3877 = vmatpush1.msra.mxu0 0.0
      %3878 = vmatprep.subr.mxu0 0.0
      %3879 = vmatpush1.msra.mxu0 0.0
      %3880 = vmatprep.subr.mxu0 0.0
      %3881 = vmatpush1.msra.mxu0 0.0
      %3882 = vmatprep.subr.mxu0 0.0
      %3883 = vmatpush1.msra.mxu0 0.0
      %3884 = vmatprep.subr.mxu0 0.0
      %3885 = vmatpush1.msra.mxu0 0.0
      %3886 = vmatprep.subr.mxu0 0.0
      %3887 = vmatpush1.msra.mxu0 0.0
      %3888 = vmatprep.subr.mxu0 0.0
      %3889 = vmatpush1.msra.mxu0 0.0
      %3890 = vmatprep.subr.mxu0 0.0
      %3891 = vmatpush1.msra.mxu0 0.0
      %3892 = vmatprep.subr.mxu0 0.0
      %3893 = vmatpush1.msra.mxu0 0.0
      %3894 = vmatprep.subr.mxu0 0.0
      %3895 = vmatpush1.msra.mxu0 0.0
      %3896 = vmatprep.subr.mxu0 0.0
      %3897 = vmatpush1.msra.mxu0 0.0
      %3898 = vmatprep.subr.mxu0 0.0
      %3899 = vmatpush1.msra.mxu0 0.0
      %3900 = vmatprep.mubr.f32.mxu0 0.0
      %3901 = vmatmul.mubr.f32.gmra.mrb[0].mxu0 %v3825
      %v3902 = vpop.f32.mrb[0].mxu0
      %v3903 = vadd.f32 0.0, %v3902
      %v3904 = vpop.f32.mrb[0].mxu0
      %3905 = vmatprep.mubr.f32.mxu0 0.0
      %3906 = vmatmul.mubr.f32.gmra.mrb[0].mxu0 %v3828
      %v3907 = vpop.f32.mrb[0].mxu0
      %v3908 = vadd.f32 0.0, %v3907
      %v3909 = vpop.f32.mrb[0].mxu0
      %3910 = vmatprep.mubr.f32.mxu0 0.0
      %3911 = vmatmul.mubr.f32.gmra.mrb[0].mxu0 %v3831
      %v3912 = vpop.f32.mrb[0].mxu0
      %v3913 = vadd.f32 0.0, %v3912
      %v3914 = vpop.f32.mrb[0].mxu0
      %3915 = vmatprep.mubr.f32.mxu0 0.0
      %3916 = vmatmul.mubr.f32.gmra.mrb[0].mxu0 %v3834
      %v3917 = vpop.f32.mrb[0].mxu0
      %v3918 = vadd.f32 0.0, %v3917
      %v3919 = vpop.f32.mrb[0].mxu0
      %3920 = vdwg.mxu0
      %3921 = vmatprep.subr.mxu0 0.0
      %3922 = vmatpush1.msra.mxu0 %v2365
      %3923 = vmatprep.subr.mxu0 0.0
      %3924 = vmatpush1.msra.mxu0 %v2366
      %3925 = vmatprep.subr.mxu0 0.0
      %3926 = vmatpush1.msra.mxu0 0.0
      %3927 = vmatprep.subr.mxu0 0.0
      %3928 = vmatpush1.msra.mxu0 0.0
      %3929 = vmatprep.subr.mxu0 0.0
      %3930 = vmatpush1.msra.mxu0 0.0
      %3931 = vmatprep.subr.mxu0 0.0
      %3932 = vmatpush1.msra.mxu0 0.0
      %3933 = vmatprep.subr.mxu0 0.0
      %3934 = vmatpush1.msra.mxu0 0.0
      %3935 = vmatprep.subr.mxu0 0.0
      %3936 = vmatpush1.msra.mxu0 0.0
      %3937 = vmatprep.subr.mxu0 0.0
      %3938 = vmatpush1.msra.mxu0 0.0
      %3939 = vmatprep.subr.mxu0 0.0
      %3940 = vmatpush1.msra.mxu0 0.0
      %3941 = vmatprep.subr.mxu0 0.0
      %3942 = vmatpush1.msra.mxu0 0.0
      %3943 = vmatprep.subr.mxu0 0.0
      %3944 = vmatpush1.msra.mxu0 0.0
      %3945 = vmatprep.subr.mxu0 0.0
      %3946 = vmatpush1.msra.mxu0 0.0
      %3947 = vmatprep.subr.mxu0 0.0
      %3948 = vmatpush1.msra.mxu0 0.0
      %3949 = vmatprep.subr.mxu0 0.0
      %3950 = vmatpush1.msra.mxu0 0.0
      %3951 = vmatprep.subr.mxu0 0.0
      %3952 = vmatpush1.msra.mxu0 0.0
      %3953 = vmatprep.subr.mxu0 0.0
      %3954 = vmatpush1.msra.mxu0 0.0
      %3955 = vmatprep.subr.mxu0 0.0
      %3956 = vmatpush1.msra.mxu0 0.0
      %3957 = vmatprep.subr.mxu0 0.0
      %3958 = vmatpush1.msra.mxu0 0.0
      %3959 = vmatprep.subr.mxu0 0.0
      %3960 = vmatpush1.msra.mxu0 0.0
      %3961 = vmatprep.subr.mxu0 0.0
      %3962 = vmatpush1.msra.mxu0 0.0
      %3963 = vmatprep.subr.mxu0 0.0
      %3964 = vmatpush1.msra.mxu0 0.0
      %3965 = vmatprep.subr.mxu0 0.0
      %3966 = vmatpush1.msra.mxu0 0.0
      %3967 = vmatprep.subr.mxu0 0.0
      %3968 = vmatpush1.msra.mxu0 0.0
      %3969 = vmatprep.subr.mxu0 0.0
      %3970 = vmatpush1.msra.mxu0 0.0
      %3971 = vmatprep.subr.mxu0 0.0
      %3972 = vmatpush1.msra.mxu0 0.0
      %3973 = vmatprep.subr.mxu0 0.0
      %3974 = vmatpush1.msra.mxu0 0.0
      %3975 = vmatprep.subr.mxu0 0.0
      %3976 = vmatpush1.msra.mxu0 0.0
      %3977 = vmatprep.subr.mxu0 0.0
      %3978 = vmatpush1.msra.mxu0 0.0
      %3979 = vmatprep.subr.mxu0 0.0
      %3980 = vmatpush1.msra.mxu0 0.0
      %3981 = vmatprep.subr.mxu0 0.0
      %3982 = vmatpush1.msra.mxu0 0.0
      %3983 = vmatprep.subr.mxu0 0.0
      %3984 = vmatpush1.msra.mxu0 0.0
      %3985 = vmatprep.mubr.f32.mxu0 0.0
      %3986 = vmatmul.mubr.f32.gmra.mrb[0].mxu0 %v3825
      %v3987 = vpop.f32.mrb[0].mxu0
      %v3988 = vadd.f32 0.0, %v3987
      %v3989 = vpop.f32.mrb[0].mxu0
      %3990 = vmatprep.mubr.f32.mxu0 0.0
      %3991 = vmatmul.mubr.f32.gmra.mrb[0].mxu0 %v3828
      %v3992 = vpop.f32.mrb[0].mxu0
      %v3993 = vadd.f32 0.0, %v3992
      %v3994 = vpop.f32.mrb[0].mxu0
      %3995 = vmatprep.mubr.f32.mxu0 0.0
      %3996 = vmatmul.mubr.f32.gmra.mrb[0].mxu0 %v3831
      %v3997 = vpop.f32.mrb[0].mxu0
      %v3998 = vadd.f32 0.0, %v3997
      %v3999 = vpop.f32.mrb[0].mxu0
      %4000 = vmatprep.mubr.f32.mxu0 0.0
      %4001 = vmatmul.mubr.f32.gmra.mrb[0].mxu0 %v3834
      %v4002 = vpop.f32.mrb[0].mxu0
      %v4003 = vadd.f32 0.0, %v4002
      %v4004 = vpop.f32.mrb[0].mxu0
      %4005 = vdwg.mxu0
      %4006 = vmatprep.subr.mxu0 0.0
      %4007 = vmatpush1.msra.mxu0 %v2367
      %4008 = vmatprep.subr.mxu0 0.0
      %4009 = vmatpush1.msra.mxu0 %v2368
      %4010 = vmatprep.subr.mxu0 0.0
      %4011 = vmatpush1.msra.mxu0 0.0
      %4012 = vmatprep.subr.mxu0 0.0
      %4013 = vmatpush1.msra.mxu0 0.0
      %4014 = vmatprep.subr.mxu0 0.0
      %4015 = vmatpush1.msra.mxu0 0.0
      %4016 = vmatprep.subr.mxu0 0.0
      %4017 = vmatpush1.msra.mxu0 0.0
      %4018 = vmatprep.subr.mxu0 0.0
      %4019 = vmatpush1.msra.mxu0 0.0
      %4020 = vmatprep.subr.mxu0 0.0
      %4021 = vmatpush1.msra.mxu0 0.0
      %4022 = vmatprep.subr.mxu0 0.0
      %4023 = vmatpush1.msra.mxu0 0.0
      %4024 = vmatprep.subr.mxu0 0.0
      %4025 = vmatpush1.msra.mxu0 0.0
      %4026 = vmatprep.subr.mxu0 0.0
      %4027 = vmatpush1.msra.mxu0 0.0
      %4028 = vmatprep.subr.mxu0 0.0
      %4029 = vmatpush1.msra.mxu0 0.0
      %4030 = vmatprep.subr.mxu0 0.0
      %4031 = vmatpush1.msra.mxu0 0.0
      %4032 = vmatprep.subr.mxu0 0.0
      %4033 = vmatpush1.msra.mxu0 0.0
      %4034 = vmatprep.subr.mxu0 0.0
      %4035 = vmatpush1.msra.mxu0 0.0
      %4036 = vmatprep.subr.mxu0 0.0
      %4037 = vmatpush1.msra.mxu0 0.0
      %4038 = vmatprep.subr.mxu0 0.0
      %4039 = vmatpush1.msra.mxu0 0.0
      %4040 = vmatprep.subr.mxu0 0.0
      %4041 = vmatpush1.msra.mxu0 0.0
      %4042 = vmatprep.subr.mxu0 0.0
      %4043 = vmatpush1.msra.mxu0 0.0
      %4044 = vmatprep.subr.mxu0 0.0
      %4045 = vmatpush1.msra.mxu0 0.0
      %4046 = vmatprep.subr.mxu0 0.0
      %4047 = vmatpush1.msra.mxu0 0.0
      %4048 = vmatprep.subr.mxu0 0.0
      %4049 = vmatpush1.msra.mxu0 0.0
      %4050 = vmatprep.subr.mxu0 0.0
      %4051 = vmatpush1.msra.mxu0 0.0
      %4052 = vmatprep.subr.mxu0 0.0
      %4053 = vmatpush1.msra.mxu0 0.0
      %4054 = vmatprep.subr.mxu0 0.0
      %4055 = vmatpush1.msra.mxu0 0.0
      %4056 = vmatprep.subr.mxu0 0.0
      %4057 = vmatpush1.msra.mxu0 0.0
      %4058 = vmatprep.subr.mxu0 0.0
      %4059 = vmatpush1.msra.mxu0 0.0
      %4060 = vmatprep.subr.mxu0 0.0
      %4061 = vmatpush1.msra.mxu0 0.0
      %4062 = vmatprep.subr.mxu0 0.0
      %4063 = vmatpush1.msra.mxu0 0.0
      %4064 = vmatprep.subr.mxu0 0.0
      %4065 = vmatpush1.msra.mxu0 0.0
      %4066 = vmatprep.subr.mxu0 0.0
      %4067 = vmatpush1.msra.mxu0 0.0
      %4068 = vmatprep.subr.mxu0 0.0
      %4069 = vmatpush1.msra.mxu0 0.0
      %4070 = vmatprep.mubr.f32.mxu0 0.0
      %4071 = vmatmul.mubr.f32.gmra.mrb[0].mxu0 %v3825
      %v4072 = vpop.f32.mrb[0].mxu0
      %v4073 = vadd.f32 0.0, %v4072
      %v4074 = vpop.f32.mrb[0].mxu0
      %4075 = vmatprep.mubr.f32.mxu0 0.0
      %4076 = vmatmul.mubr.f32.gmra.mrb[0].mxu0 %v3828
      %v4077 = vpop.f32.mrb[0].mxu0
      %v4078 = vadd.f32 0.0, %v4077
      %v4079 = vpop.f32.mrb[0].mxu0
      %4080 = vmatprep.mubr.f32.mxu0 0.0
      %4081 = vmatmul.mubr.f32.gmra.mrb[0].mxu0 %v3831
      %v4082 = vpop.f32.mrb[0].mxu0
      %v4083 = vadd.f32 0.0, %v4082
      %v4084 = vpop.f32.mrb[0].mxu0
      %4085 = vmatprep.mubr.f32.mxu0 0.0
      %4086 = vmatmul.mubr.f32.gmra.mrb[0].mxu0 %v3834
      %v4087 = vpop.f32.mrb[0].mxu0
      %v4088 = vadd.f32 0.0, %v4087
      %v4089 = vpop.f32.mrb[0].mxu0
      %4090 = vdwg.mxu0
      %4091 = vmatprep.subr.mxu0 0.0
      %4092 = vmatpush1.msra.mxu0 %v2369
      %4093 = vmatprep.subr.mxu0 0.0
      %4094 = vmatpush1.msra.mxu0 %v2370
      %4095 = vmatprep.subr.mxu0 0.0
      %4096 = vmatpush1.msra.mxu0 0.0
      %4097 = vmatprep.subr.mxu0 0.0
      %4098 = vmatpush1.msra.mxu0 0.0
      %4099 = vmatprep.subr.mxu0 0.0
      %4100 = vmatpush1.msra.mxu0 0.0
      %4101 = vmatprep.subr.mxu0 0.0
      %4102 = vmatpush1.msra.mxu0 0.0
      %4103 = vmatprep.subr.mxu0 0.0
      %4104 = vmatpush1.msra.mxu0 0.0
      %4105 = vmatprep.subr.mxu0 0.0
      %4106 = vmatpush1.msra.mxu0 0.0
      %4107 = vmatprep.subr.mxu0 0.0
      %4108 = vmatpush1.msra.mxu0 0.0
      %4109 = vmatprep.subr.mxu0 0.0
      %4110 = vmatpush1.msra.mxu0 0.0
      %4111 = vmatprep.subr.mxu0 0.0
      %4112 = vmatpush1.msra.mxu0 0.0
      %4113 = vmatprep.subr.mxu0 0.0
      %4114 = vmatpush1.msra.mxu0 0.0
      %4115 = vmatprep.subr.mxu0 0.0
      %4116 = vmatpush1.msra.mxu0 0.0
      %4117 = vmatprep.subr.mxu0 0.0
      %4118 = vmatpush1.msra.mxu0 0.0
      %4119 = vmatprep.subr.mxu0 0.0
      %4120 = vmatpush1.msra.mxu0 0.0
      %4121 = vmatprep.subr.mxu0 0.0
      %4122 = vmatpush1.msra.mxu0 0.0
      %4123 = vmatprep.subr.mxu0 0.0
      %4124 = vmatpush1.msra.mxu0 0.0
      %4125 = vmatprep.subr.mxu0 0.0
      %4126 = vmatpush1.msra.mxu0 0.0
      %4127 = vmatprep.subr.mxu0 0.0
      %4128 = vmatpush1.msra.mxu0 0.0
      %4129 = vmatprep.subr.mxu0 0.0
      %4130 = vmatpush1.msra.mxu0 0.0
      %4131 = vmatprep.subr.mxu0 0.0
      %4132 = vmatpush1.msra.mxu0 0.0
      %4133 = vmatprep.subr.mxu0 0.0
      %4134 = vmatpush1.msra.mxu0 0.0
      %4135 = vmatprep.subr.mxu0 0.0
      %4136 = vmatpush1.msra.mxu0 0.0
      %4137 = vmatprep.subr.mxu0 0.0
      %4138 = vmatpush1.msra.mxu0 0.0
      %4139 = vmatprep.subr.mxu0 0.0
      %4140 = vmatpush1.msra.mxu0 0.0
      %4141 = vmatprep.subr.mxu0 0.0
      %4142 = vmatpush1.msra.mxu0 0.0
      %4143 = vmatprep.subr.mxu0 0.0
      %4144 = vmatpush1.msra.mxu0 0.0
      %4145 = vmatprep.subr.mxu0 0.0
      %4146 = vmatpush1.msra.mxu0 0.0
      %4147 = vmatprep.subr.mxu0 0.0
      %4148 = vmatpush1.msra.mxu0 0.0
      %4149 = vmatprep.subr.mxu0 0.0
      %4150 = vmatpush1.msra.mxu0 0.0
      %4151 = vmatprep.subr.mxu0 0.0
      %4152 = vmatpush1.msra.mxu0 0.0
      %4153 = vmatprep.subr.mxu0 0.0
      %4154 = vmatpush1.msra.mxu0 0.0
      %4155 = vmatprep.mubr.f32.mxu0 0.0
      %4156 = vmatmul.mubr.f32.gmra.mrb[0].mxu0 %v3825
      %v4157 = vpop.f32.mrb[0].mxu0
      %v4158 = vadd.f32 0.0, %v4157
      %v4159 = vpop.f32.mrb[0].mxu0
      %4160 = vmatprep.mubr.f32.mxu0 0.0
      %4161 = vmatmul.mubr.f32.gmra.mrb[0].mxu0 %v3828
      %v4162 = vpop.f32.mrb[0].mxu0
      %v4163 = vadd.f32 0.0, %v4162
      %v4164 = vpop.f32.mrb[0].mxu0
      %4165 = vmatprep.mubr.f32.mxu0 0.0
      %4166 = vmatmul.mubr.f32.gmra.mrb[0].mxu0 %v3831
      %v4167 = vpop.f32.mrb[0].mxu0
      %v4168 = vadd.f32 0.0, %v4167
      %v4169 = vpop.f32.mrb[0].mxu0
      %4170 = vmatprep.mubr.f32.mxu0 0.0
      %4171 = vmatmul.mubr.f32.gmra.mrb[0].mxu0 %v3834
      %v4172 = vpop.f32.mrb[0].mxu0
      %v4173 = vadd.f32 0.0, %v4172
      %v4174 = vpop.f32.mrb[0].mxu0
      %4175 = vdwg.mxu0
      %4176 = vmatprep.subr.mxu0 0.0
      %4177 = vmatpush1.msra.mxu0 %v2371
      %4178 = vmatprep.subr.mxu0 0.0
      %4179 = vmatpush1.msra.mxu0 %v2372
      %4180 = vmatprep.subr.mxu0 0.0
      %4181 = vmatpush1.msra.mxu0 0.0
      %4182 = vmatprep.subr.mxu0 0.0
      %4183 = vmatpush1.msra.mxu0 0.0
      %4184 = vmatprep.subr.mxu0 0.0
      %4185 = vmatpush1.msra.mxu0 0.0
      %4186 = vmatprep.subr.mxu0 0.0
      %4187 = vmatpush1.msra.mxu0 0.0
      %4188 = vmatprep.subr.mxu0 0.0
      %4189 = vmatpush1.msra.mxu0 0.0
      %4190 = vmatprep.subr.mxu0 0.0
      %4191 = vmatpush1.msra.mxu0 0.0
      %4192 = vmatprep.subr.mxu0 0.0
      %4193 = vmatpush1.msra.mxu0 0.0
      %4194 = vmatprep.subr.mxu0 0.0
      %4195 = vmatpush1.msra.mxu0 0.0
      %4196 = vmatprep.subr.mxu0 0.0
      %4197 = vmatpush1.msra.mxu0 0.0
      %4198 = vmatprep.subr.mxu0 0.0
      %4199 = vmatpush1.msra.mxu0 0.0
      %4200 = vmatprep.subr.mxu0 0.0
      %4201 = vmatpush1.msra.mxu0 0.0
      %4202 = vmatprep.subr.mxu0 0.0
      %4203 = vmatpush1.msra.mxu0 0.0
      %4204 = vmatprep.subr.mxu0 0.0
      %4205 = vmatpush1.msra.mxu0 0.0
      %4206 = vmatprep.subr.mxu0 0.0
      %4207 = vmatpush1.msra.mxu0 0.0
      %4208 = vmatprep.subr.mxu0 0.0
      %4209 = vmatpush1.msra.mxu0 0.0
      %4210 = vmatprep.subr.mxu0 0.0
      %4211 = vmatpush1.msra.mxu0 0.0
      %4212 = vmatprep.subr.mxu0 0.0
      %4213 = vmatpush1.msra.mxu0 0.0
      %4214 = vmatprep.subr.mxu0 0.0
      %4215 = vmatpush1.msra.mxu0 0.0
      %4216 = vmatprep.subr.mxu0 0.0
      %4217 = vmatpush1.msra.mxu0 0.0
      %4218 = vmatprep.subr.mxu0 0.0
      %4219 = vmatpush1.msra.mxu0 0.0
      %4220 = vmatprep.subr.mxu0 0.0
      %4221 = vmatpush1.msra.mxu0 0.0
      %4222 = vmatprep.subr.mxu0 0.0
      %4223 = vmatpush1.msra.mxu0 0.0
      %4224 = vmatprep.subr.mxu0 0.0
      %4225 = vmatpush1.msra.mxu0 0.0
      %4226 = vmatprep.subr.mxu0 0.0
      %4227 = vmatpush1.msra.mxu0 0.0
      %4228 = vmatprep.subr.mxu0 0.0
      %4229 = vmatpush1.msra.mxu0 0.0
      %4230 = vmatprep.subr.mxu0 0.0
      %4231 = vmatpush1.msra.mxu0 0.0
      %4232 = vmatprep.subr.mxu0 0.0
      %4233 = vmatpush1.msra.mxu0 0.0
      %4234 = vmatprep.subr.mxu0 0.0
      %4235 = vmatpush1.msra.mxu0 0.0
      %4236 = vmatprep.subr.mxu0 0.0
      %4237 = vmatpush1.msra.mxu0 0.0
      %4238 = vmatprep.subr.mxu0 0.0
      %4239 = vmatpush1.msra.mxu0 0.0
      %4240 = vmatprep.mubr.f32.mxu0 0.0
      %4241 = vmatmul.mubr.f32.gmra.mrb[0].mxu0 %v3825
      %v4242 = vpop.f32.mrb[0].mxu0
      %v4243 = vadd.f32 0.0, %v4242
      %v4244 = vpop.f32.mrb[0].mxu0
      %4245 = vmatprep.mubr.f32.mxu0 0.0
      %4246 = vmatmul.mubr.f32.gmra.mrb[0].mxu0 %v3828
      %v4247 = vpop.f32.mrb[0].mxu0
      %v4248 = vadd.f32 0.0, %v4247
      %v4249 = vpop.f32.mrb[0].mxu0
      %4250 = vmatprep.mubr.f32.mxu0 0.0
      %4251 = vmatmul.mubr.f32.gmra.mrb[0].mxu0 %v3831
      %v4252 = vpop.f32.mrb[0].mxu0
      %v4253 = vadd.f32 0.0, %v4252
      %v4254 = vpop.f32.mrb[0].mxu0
      %4255 = vmatprep.mubr.f32.mxu0 0.0
      %4256 = vmatmul.mubr.f32.gmra.mrb[0].mxu0 %v3834
      %v4257 = vpop.f32.mrb[0].mxu0
      %v4258 = vadd.f32 0.0, %v4257
      %v4259 = vpop.f32.mrb[0].mxu0
      %4260 = vdwg.mxu0
      %4261 = vmatprep.subr.mxu0 0.0
      %4262 = vmatpush1.msra.mxu0 %v2373
      %4263 = vmatprep.subr.mxu0 0.0
      %4264 = vmatpush1.msra.mxu0 %v2374
      %4265 = vmatprep.subr.mxu0 0.0
      %4266 = vmatpush1.msra.mxu0 0.0
      %4267 = vmatprep.subr.mxu0 0.0
      %4268 = vmatpush1.msra.mxu0 0.0
      %4269 = vmatprep.subr.mxu0 0.0
      %4270 = vmatpush1.msra.mxu0 0.0
      %4271 = vmatprep.subr.mxu0 0.0
      %4272 = vmatpush1.msra.mxu0 0.0
      %4273 = vmatprep.subr.mxu0 0.0
      %4274 = vmatpush1.msra.mxu0 0.0
      %4275 = vmatprep.subr.mxu0 0.0
      %4276 = vmatpush1.msra.mxu0 0.0
      %4277 = vmatprep.subr.mxu0 0.0
      %4278 = vmatpush1.msra.mxu0 0.0
      %4279 = vmatprep.subr.mxu0 0.0
      %4280 = vmatpush1.msra.mxu0 0.0
      %4281 = vmatprep.subr.mxu0 0.0
      %4282 = vmatpush1.msra.mxu0 0.0
      %4283 = vmatprep.subr.mxu0 0.0
      %4284 = vmatpush1.msra.mxu0 0.0
      %4285 = vmatprep.subr.mxu0 0.0
      %4286 = vmatpush1.msra.mxu0 0.0
      %4287 = vmatprep.subr.mxu0 0.0
      %4288 = vmatpush1.msra.mxu0 0.0
      %4289 = vmatprep.subr.mxu0 0.0
      %4290 = vmatpush1.msra.mxu0 0.0
      %4291 = vmatprep.subr.mxu0 0.0
      %4292 = vmatpush1.msra.mxu0 0.0
      %4293 = vmatprep.subr.mxu0 0.0
      %4294 = vmatpush1.msra.mxu0 0.0
      %4295 = vmatprep.subr.mxu0 0.0
      %4296 = vmatpush1.msra.mxu0 0.0
      %4297 = vmatprep.subr.mxu0 0.0
      %4298 = vmatpush1.msra.mxu0 0.0
      %4299 = vmatprep.subr.mxu0 0.0
      %4300 = vmatpush1.msra.mxu0 0.0
      %4301 = vmatprep.subr.mxu0 0.0
      %4302 = vmatpush1.msra.mxu0 0.0
      %4303 = vmatprep.subr.mxu0 0.0
      %4304 = vmatpush1.msra.mxu0 0.0
      %4305 = vmatprep.subr.mxu0 0.0
      %4306 = vmatpush1.msra.mxu0 0.0
      %4307 = vmatprep.subr.mxu0 0.0
      %4308 = vmatpush1.msra.mxu0 0.0
      %4309 = vmatprep.subr.mxu0 0.0
      %4310 = vmatpush1.msra.mxu0 0.0
      %4311 = vmatprep.subr.mxu0 0.0
      %4312 = vmatpush1.msra.mxu0 0.0
      %4313 = vmatprep.subr.mxu0 0.0
      %4314 = vmatpush1.msra.mxu0 0.0
      %4315 = vmatprep.subr.mxu0 0.0
      %4316 = vmatpush1.msra.mxu0 0.0
      %4317 = vmatprep.subr.mxu0 0.0
      %4318 = vmatpush1.msra.mxu0 0.0
      %4319 = vmatprep.subr.mxu0 0.0
      %4320 = vmatpush1.msra.mxu0 0.0
      %4321 = vmatprep.subr.mxu0 0.0
      %4322 = vmatpush1.msra.mxu0 0.0
      %4323 = vmatprep.subr.mxu0 0.0
      %4324 = vmatpush1.msra.mxu0 0.0
      %4325 = vmatprep.mubr.f32.mxu0 0.0
      %4326 = vmatmul.mubr.f32.gmra.mrb[0].mxu0 %v3825
      %v4327 = vpop.f32.mrb[0].mxu0
      %v4328 = vadd.f32 0.0, %v4327
      %v4329 = vpop.f32.mrb[0].mxu0
      %4330 = vmatprep.mubr.f32.mxu0 0.0
      %4331 = vmatmul.mubr.f32.gmra.mrb[0].mxu0 %v3828
      %v4332 = vpop.f32.mrb[0].mxu0
      %v4333 = vadd.f32 0.0, %v4332
      %v4334 = vpop.f32.mrb[0].mxu0
      %4335 = vmatprep.mubr.f32.mxu0 0.0
      %4336 = vmatmul.mubr.f32.gmra.mrb[0].mxu0 %v3831
      %v4337 = vpop.f32.mrb[0].mxu0
      %v4338 = vadd.f32 0.0, %v4337
      %v4339 = vpop.f32.mrb[0].mxu0
      %4340 = vmatprep.mubr.f32.mxu0 0.0
      %4341 = vmatmul.mubr.f32.gmra.mrb[0].mxu0 %v3834
      %v4342 = vpop.f32.mrb[0].mxu0
      %v4343 = vadd.f32 0.0, %v4342
      %v4344 = vpop.f32.mrb[0].mxu0
      %4345 = vdwg.mxu0
      %4346 = vmatprep.subr.mxu0 0.0
      %4347 = vmatpush1.msra.mxu0 %v2375
      %4348 = vmatprep.subr.mxu0 0.0
      %4349 = vmatpush1.msra.mxu0 %v2376
      %4350 = vmatprep.subr.mxu0 0.0
      %4351 = vmatpush1.msra.mxu0 0.0
      %4352 = vmatprep.subr.mxu0 0.0
      %4353 = vmatpush1.msra.mxu0 0.0
      %4354 = vmatprep.subr.mxu0 0.0
      %4355 = vmatpush1.msra.mxu0 0.0
      %4356 = vmatprep.subr.mxu0 0.0
      %4357 = vmatpush1.msra.mxu0 0.0
      %4358 = vmatprep.subr.mxu0 0.0
      %4359 = vmatpush1.msra.mxu0 0.0
      %4360 = vmatprep.subr.mxu0 0.0
      %4361 = vmatpush1.msra.mxu0 0.0
      %4362 = vmatprep.subr.mxu0 0.0
      %4363 = vmatpush1.msra.mxu0 0.0
      %4364 = vmatprep.subr.mxu0 0.0
      %4365 = vmatpush1.msra.mxu0 0.0
      %4366 = vmatprep.subr.mxu0 0.0
      %4367 = vmatpush1.msra.mxu0 0.0
      %4368 = vmatprep.subr.mxu0 0.0
      %4369 = vmatpush1.msra.mxu0 0.0
      %4370 = vmatprep.subr.mxu0 0.0
      %4371 = vmatpush1.msra.mxu0 0.0
      %4372 = vmatprep.subr.mxu0 0.0
      %4373 = vmatpush1.msra.mxu0 0.0
      %4374 = vmatprep.subr.mxu0 0.0
      %4375 = vmatpush1.msra.mxu0 0.0
      %4376 = vmatprep.subr.mxu0 0.0
      %4377 = vmatpush1.msra.mxu0 0.0
      %4378 = vmatprep.subr.mxu0 0.0
      %4379 = vmatpush1.msra.mxu0 0.0
      %4380 = vmatprep.subr.mxu0 0.0
      %4381 = vmatpush1.msra.mxu0 0.0
      %4382 = vmatprep.subr.mxu0 0.0
      %4383 = vmatpush1.msra.mxu0 0.0
      %4384 = vmatprep.subr.mxu0 0.0
      %4385 = vmatpush1.msra.mxu0 0.0
      %4386 = vmatprep.subr.mxu0 0.0
      %4387 = vmatpush1.msra.mxu0 0.0
      %4388 = vmatprep.subr.mxu0 0.0
      %4389 = vmatpush1.msra.mxu0 0.0
      %4390 = vmatprep.subr.mxu0 0.0
      %4391 = vmatpush1.msra.mxu0 0.0
      %4392 = vmatprep.subr.mxu0 0.0
      %4393 = vmatpush1.msra.mxu0 0.0
      %4394 = vmatprep.subr.mxu0 0.0
      %4395 = vmatpush1.msra.mxu0 0.0
      %4396 = vmatprep.subr.mxu0 0.0
      %4397 = vmatpush1.msra.mxu0 0.0
      %4398 = vmatprep.subr.mxu0 0.0
      %4399 = vmatpush1.msra.mxu0 0.0
      %4400 = vmatprep.subr.mxu0 0.0
      %4401 = vmatpush1.msra.mxu0 0.0
      %4402 = vmatprep.subr.mxu0 0.0
      %4403 = vmatpush1.msra.mxu0 0.0
      %4404 = vmatprep.subr.mxu0 0.0
      %4405 = vmatpush1.msra.mxu0 0.0
      %4406 = vmatprep.subr.mxu0 0.0
      %4407 = vmatpush1.msra.mxu0 0.0
      %4408 = vmatprep.subr.mxu0 0.0
      %4409 = vmatpush1.msra.mxu0 0.0
      %4410 = vmatprep.mubr.f32.mxu0 0.0
      %4411 = vmatmul.mubr.f32.gmra.mrb[0].mxu0 %v3825
      %v4412 = vpop.f32.mrb[0].mxu0
      %v4413 = vadd.f32 0.0, %v4412
      %v4414 = vpop.f32.mrb[0].mxu0
      %4415 = vmatprep.mubr.f32.mxu0 0.0
      %4416 = vmatmul.mubr.f32.gmra.mrb[0].mxu0 %v3828
      %v4417 = vpop.f32.mrb[0].mxu0
      %v4418 = vadd.f32 0.0, %v4417
      %v4419 = vpop.f32.mrb[0].mxu0
      %4420 = vmatprep.mubr.f32.mxu0 0.0
      %4421 = vmatmul.mubr.f32.gmra.mrb[0].mxu0 %v3831
      %v4422 = vpop.f32.mrb[0].mxu0
      %v4423 = vadd.f32 0.0, %v4422
      %v4424 = vpop.f32.mrb[0].mxu0
      %4425 = vmatprep.mubr.f32.mxu0 0.0
      %4426 = vmatmul.mubr.f32.gmra.mrb[0].mxu0 %v3834
      %v4427 = vpop.f32.mrb[0].mxu0
      %v4428 = vadd.f32 0.0, %v4427
      %v4429 = vpop.f32.mrb[0].mxu0
      %4430 = vdwg.mxu0
      %4431 = vmatprep.subr.mxu0 0.0
      %4432 = vmatpush1.msra.mxu0 %v2377
      %4433 = vmatprep.subr.mxu0 0.0
      %4434 = vmatpush1.msra.mxu0 %v2378
      %4435 = vmatprep.subr.mxu0 0.0
      %4436 = vmatpush1.msra.mxu0 0.0
      %4437 = vmatprep.subr.mxu0 0.0
      %4438 = vmatpush1.msra.mxu0 0.0
      %4439 = vmatprep.subr.mxu0 0.0
      %4440 = vmatpush1.msra.mxu0 0.0
      %4441 = vmatprep.subr.mxu0 0.0
      %4442 = vmatpush1.msra.mxu0 0.0
      %4443 = vmatprep.subr.mxu0 0.0
      %4444 = vmatpush1.msra.mxu0 0.0
      %4445 = vmatprep.subr.mxu0 0.0
      %4446 = vmatpush1.msra.mxu0 0.0
      %4447 = vmatprep.subr.mxu0 0.0
      %4448 = vmatpush1.msra.mxu0 0.0
      %4449 = vmatprep.subr.mxu0 0.0
      %4450 = vmatpush1.msra.mxu0 0.0
      %4451 = vmatprep.subr.mxu0 0.0
      %4452 = vmatpush1.msra.mxu0 0.0
      %4453 = vmatprep.subr.mxu0 0.0
      %4454 = vmatpush1.msra.mxu0 0.0
      %4455 = vmatprep.subr.mxu0 0.0
      %4456 = vmatpush1.msra.mxu0 0.0
      %4457 = vmatprep.subr.mxu0 0.0
      %4458 = vmatpush1.msra.mxu0 0.0
      %4459 = vmatprep.subr.mxu0 0.0
      %4460 = vmatpush1.msra.mxu0 0.0
      %4461 = vmatprep.subr.mxu0 0.0
      %4462 = vmatpush1.msra.mxu0 0.0
      %4463 = vmatprep.subr.mxu0 0.0
      %4464 = vmatpush1.msra.mxu0 0.0
      %4465 = vmatprep.subr.mxu0 0.0
      %4466 = vmatpush1.msra.mxu0 0.0
      %4467 = vmatprep.subr.mxu0 0.0
      %4468 = vmatpush1.msra.mxu0 0.0
      %4469 = vmatprep.subr.mxu0 0.0
      %4470 = vmatpush1.msra.mxu0 0.0
      %4471 = vmatprep.subr.mxu0 0.0
      %4472 = vmatpush1.msra.mxu0 0.0
      %4473 = vmatprep.subr.mxu0 0.0
      %4474 = vmatpush1.msra.mxu0 0.0
      %4475 = vmatprep.subr.mxu0 0.0
      %4476 = vmatpush1.msra.mxu0 0.0
      %4477 = vmatprep.subr.mxu0 0.0
      %4478 = vmatpush1.msra.mxu0 0.0
      %4479 = vmatprep.subr.mxu0 0.0
      %4480 = vmatpush1.msra.mxu0 0.0
      %4481 = vmatprep.subr.mxu0 0.0
      %4482 = vmatpush1.msra.mxu0 0.0
      %4483 = vmatprep.subr.mxu0 0.0
      %4484 = vmatpush1.msra.mxu0 0.0
      %4485 = vmatprep.subr.mxu0 0.0
      %4486 = vmatpush1.msra.mxu0 0.0
      %4487 = vmatprep.subr.mxu0 0.0
      %4488 = vmatpush1.msra.mxu0 0.0
      %4489 = vmatprep.subr.mxu0 0.0
      %4490 = vmatpush1.msra.mxu0 0.0
      %4491 = vmatprep.subr.mxu0 0.0
      %4492 = vmatpush1.msra.mxu0 0.0
      %4493 = vmatprep.subr.mxu0 0.0
      %4494 = vmatpush1.msra.mxu0 0.0
      %4495 = vmatprep.mubr.f32.mxu0 0.0
      %4496 = vmatmul.mubr.f32.gmra.mrb[0].mxu0 %v3825
      %v4497 = vpop.f32.mrb[0].mxu0
      %v4498 = vadd.f32 0.0, %v4497
      %v4499 = vpop.f32.mrb[0].mxu0
      %4500 = vmatprep.mubr.f32.mxu0 0.0
      %4501 = vmatmul.mubr.f32.gmra.mrb[0].mxu0 %v3828
      %v4502 = vpop.f32.mrb[0].mxu0
      %v4503 = vadd.f32 0.0, %v4502
      %v4504 = vpop.f32.mrb[0].mxu0
      %4505 = vmatprep.mubr.f32.mxu0 0.0
      %4506 = vmatmul.mubr.f32.gmra.mrb[0].mxu0 %v3831
      %v4507 = vpop.f32.mrb[0].mxu0
      %v4508 = vadd.f32 0.0, %v4507
      %v4509 = vpop.f32.mrb[0].mxu0
      %4510 = vmatprep.mubr.f32.mxu0 0.0
      %4511 = vmatmul.mubr.f32.gmra.mrb[0].mxu0 %v3834
      %v4512 = vpop.f32.mrb[0].mxu0
      %v4513 = vadd.f32 0.0, %v4512
      %v4514 = vpop.f32.mrb[0].mxu0
      %4515 = vdwg.mxu0
      %4516 = vmatprep.subr.mxu0 0.0
      %4517 = vmatpush1.msra.mxu0 %v2379
      %4518 = vmatprep.subr.mxu0 0.0
      %4519 = vmatpush1.msra.mxu0 %v2380
      %4520 = vmatprep.subr.mxu0 0.0
      %4521 = vmatpush1.msra.mxu0 0.0
      %4522 = vmatprep.subr.mxu0 0.0
      %4523 = vmatpush1.msra.mxu0 0.0
      %4524 = vmatprep.subr.mxu0 0.0
      %4525 = vmatpush1.msra.mxu0 0.0
      %4526 = vmatprep.subr.mxu0 0.0
      %4527 = vmatpush1.msra.mxu0 0.0
      %4528 = vmatprep.subr.mxu0 0.0
      %4529 = vmatpush1.msra.mxu0 0.0
      %4530 = vmatprep.subr.mxu0 0.0
      %4531 = vmatpush1.msra.mxu0 0.0
      %4532 = vmatprep.subr.mxu0 0.0
      %4533 = vmatpush1.msra.mxu0 0.0
      %4534 = vmatprep.subr.mxu0 0.0
      %4535 = vmatpush1.msra.mxu0 0.0
      %4536 = vmatprep.subr.mxu0 0.0
      %4537 = vmatpush1.msra.mxu0 0.0
      %4538 = vmatprep.subr.mxu0 0.0
      %4539 = vmatpush1.msra.mxu0 0.0
      %4540 = vmatprep.subr.mxu0 0.0
      %4541 = vmatpush1.msra.mxu0 0.0
      %4542 = vmatprep.subr.mxu0 0.0
      %4543 = vmatpush1.msra.mxu0 0.0
      %4544 = vmatprep.subr.mxu0 0.0
      %4545 = vmatpush1.msra.mxu0 0.0
      %4546 = vmatprep.subr.mxu0 0.0
      %4547 = vmatpush1.msra.mxu0 0.0
      %4548 = vmatprep.subr.mxu0 0.0
      %4549 = vmatpush1.msra.mxu0 0.0
      %4550 = vmatprep.subr.mxu0 0.0
      %4551 = vmatpush1.msra.mxu0 0.0
      %4552 = vmatprep.subr.mxu0 0.0
      %4553 = vmatpush1.msra.mxu0 0.0
      %4554 = vmatprep.subr.mxu0 0.0
      %4555 = vmatpush1.msra.mxu0 0.0
      %4556 = vmatprep.subr.mxu0 0.0
      %4557 = vmatpush1.msra.mxu0 0.0
      %4558 = vmatprep.subr.mxu0 0.0
      %4559 = vmatpush1.msra.mxu0 0.0
      %4560 = vmatprep.subr.mxu0 0.0
      %4561 = vmatpush1.msra.mxu0 0.0
      %4562 = vmatprep.subr.mxu0 0.0
      %4563 = vmatpush1.msra.mxu0 0.0
      %4564 = vmatprep.subr.mxu0 0.0
      %4565 = vmatpush1.msra.mxu0 0.0
      %4566 = vmatprep.subr.mxu0 0.0
      %4567 = vmatpush1.msra.mxu0 0.0
      %4568 = vmatprep.subr.mxu0 0.0
      %4569 = vmatpush1.msra.mxu0 0.0
      %4570 = vmatprep.subr.mxu0 0.0
      %4571 = vmatpush1.msra.mxu0 0.0
      %4572 = vmatprep.subr.mxu0 0.0
      %4573 = vmatpush1.msra.mxu0 0.0
      %4574 = vmatprep.subr.mxu0 0.0
      %4575 = vmatpush1.msra.mxu0 0.0
      %4576 = vmatprep.subr.mxu0 0.0
      %4577 = vmatpush1.msra.mxu0 0.0
      %4578 = vmatprep.subr.mxu0 0.0
      %4579 = vmatpush1.msra.mxu0 0.0
      %4580 = vmatprep.mubr.f32.mxu0 0.0
      %4581 = vmatmul.mubr.f32.gmra.mrb[0].mxu0 %v3825
      %v4582 = vpop.f32.mrb[0].mxu0
      %v4583 = vadd.f32 0.0, %v4582
      %v4584 = vpop.f32.mrb[0].mxu0
      %4585 = vmatprep.mubr.f32.mxu0 0.0
      %4586 = vmatmul.mubr.f32.gmra.mrb[0].mxu0 %v3828
      %v4587 = vpop.f32.mrb[0].mxu0
      %v4588 = vadd.f32 0.0, %v4587
      %v4589 = vpop.f32.mrb[0].mxu0
      %4590 = vmatprep.mubr.f32.mxu0 0.0
      %4591 = vmatmul.mubr.f32.gmra.mrb[0].mxu0 %v3831
      %v4592 = vpop.f32.mrb[0].mxu0
      %v4593 = vadd.f32 0.0, %v4592
      %v4594 = vpop.f32.mrb[0].mxu0
      %4595 = vmatprep.mubr.f32.mxu0 0.0
      %4596 = vmatmul.mubr.f32.gmra.mrb[0].mxu0 %v3834
      %v4597 = vpop.f32.mrb[0].mxu0
      %v4598 = vadd.f32 0.0, %v4597
      %v4599 = vpop.f32.mrb[0].mxu0
      %4600 = vdwg.mxu0
      %4601 = vmatprep.subr.mxu0 0.0
      %4602 = vmatpush1.msra.mxu0 %v2381
      %4603 = vmatprep.subr.mxu0 0.0
      %4604 = vmatpush1.msra.mxu0 %v2382
      %4605 = vmatprep.subr.mxu0 0.0
      %4606 = vmatpush1.msra.mxu0 0.0
      %4607 = vmatprep.subr.mxu0 0.0
      %4608 = vmatpush1.msra.mxu0 0.0
      %4609 = vmatprep.subr.mxu0 0.0
      %4610 = vmatpush1.msra.mxu0 0.0
      %4611 = vmatprep.subr.mxu0 0.0
      %4612 = vmatpush1.msra.mxu0 0.0
      %4613 = vmatprep.subr.mxu0 0.0
      %4614 = vmatpush1.msra.mxu0 0.0
      %4615 = vmatprep.subr.mxu0 0.0
      %4616 = vmatpush1.msra.mxu0 0.0
      %4617 = vmatprep.subr.mxu0 0.0
      %4618 = vmatpush1.msra.mxu0 0.0
      %4619 = vmatprep.subr.mxu0 0.0
      %4620 = vmatpush1.msra.mxu0 0.0
      %4621 = vmatprep.subr.mxu0 0.0
      %4622 = vmatpush1.msra.mxu0 0.0
      %4623 = vmatprep.subr.mxu0 0.0
      %4624 = vmatpush1.msra.mxu0 0.0
      %4625 = vmatprep.subr.mxu0 0.0
      %4626 = vmatpush1.msra.mxu0 0.0
      %4627 = vmatprep.subr.mxu0 0.0
      %4628 = vmatpush1.msra.mxu0 0.0
      %4629 = vmatprep.subr.mxu0 0.0
      %4630 = vmatpush1.msra.mxu0 0.0
      %4631 = vmatprep.subr.mxu0 0.0
      %4632 = vmatpush1.msra.mxu0 0.0
      %4633 = vmatprep.subr.mxu0 0.0
      %4634 = vmatpush1.msra.mxu0 0.0
      %4635 = vmatprep.subr.mxu0 0.0
      %4636 = vmatpush1.msra.mxu0 0.0
      %4637 = vmatprep.subr.mxu0 0.0
      %4638 = vmatpush1.msra.mxu0 0.0
      %4639 = vmatprep.subr.mxu0 0.0
      %4640 = vmatpush1.msra.mxu0 0.0
      %4641 = vmatprep.subr.mxu0 0.0
      %4642 = vmatpush1.msra.mxu0 0.0
      %4643 = vmatprep.subr.mxu0 0.0
      %4644 = vmatpush1.msra.mxu0 0.0
      %4645 = vmatprep.subr.mxu0 0.0
      %4646 = vmatpush1.msra.mxu0 0.0
      %4647 = vmatprep.subr.mxu0 0.0
      %4648 = vmatpush1.msra.mxu0 0.0
      %4649 = vmatprep.subr.mxu0 0.0
      %4650 = vmatpush1.msra.mxu0 0.0
      %4651 = vmatprep.subr.mxu0 0.0
      %4652 = vmatpush1.msra.mxu0 0.0
      %4653 = vmatprep.subr.mxu0 0.0
      %4654 = vmatpush1.msra.mxu0 0.0
      %4655 = vmatprep.subr.mxu0 0.0
      %4656 = vmatpush1.msra.mxu0 0.0
      %4657 = vmatprep.subr.mxu0 0.0
      %4658 = vmatpush1.msra.mxu0 0.0
      %4659 = vmatprep.subr.mxu0 0.0
      %4660 = vmatpush1.msra.mxu0 0.0
      %4661 = vmatprep.subr.mxu0 0.0
      %4662 = vmatpush1.msra.mxu0 0.0
      %4663 = vmatprep.subr.mxu0 0.0
      %4664 = vmatpush1.msra.mxu0 0.0
      %4665 = vmatprep.mubr.f32.mxu0 0.0
      %4666 = vmatmul.mubr.f32.gmra.mrb[0].mxu0 %v3825
      %v4667 = vpop.f32.mrb[0].mxu0
      %v4668 = vadd.f32 0.0, %v4667
      %v4669 = vpop.f32.mrb[0].mxu0
      %4670 = vmatprep.mubr.f32.mxu0 0.0
      %4671 = vmatmul.mubr.f32.gmra.mrb[0].mxu0 %v3828
      %v4672 = vpop.f32.mrb[0].mxu0
      %v4673 = vadd.f32 0.0, %v4672
      %v4674 = vpop.f32.mrb[0].mxu0
      %4675 = vmatprep.mubr.f32.mxu0 0.0
      %4676 = vmatmul.mubr.f32.gmra.mrb[0].mxu0 %v3831
      %v4677 = vpop.f32.mrb[0].mxu0
      %v4678 = vadd.f32 0.0, %v4677
      %v4679 = vpop.f32.mrb[0].mxu0
      %4680 = vmatprep.mubr.f32.mxu0 0.0
      %4681 = vmatmul.mubr.f32.gmra.mrb[0].mxu0 %v3834
      %v4682 = vpop.f32.mrb[0].mxu0
      %v4683 = vadd.f32 0.0, %v4682
      %v4684 = vpop.f32.mrb[0].mxu0
      %4685 = vdwg.mxu0
      %4686 = vmatprep.subr.mxu0 0.0
      %4687 = vmatpush1.msra.mxu0 %v2383
      %4688 = vmatprep.subr.mxu0 0.0
      %4689 = vmatpush1.msra.mxu0 %v2384
      %4690 = vmatprep.subr.mxu0 0.0
      %4691 = vmatpush1.msra.mxu0 0.0
      %4692 = vmatprep.subr.mxu0 0.0
      %4693 = vmatpush1.msra.mxu0 0.0
      %4694 = vmatprep.subr.mxu0 0.0
      %4695 = vmatpush1.msra.mxu0 0.0
      %4696 = vmatprep.subr.mxu0 0.0
      %4697 = vmatpush1.msra.mxu0 0.0
      %4698 = vmatprep.subr.mxu0 0.0
      %4699 = vmatpush1.msra.mxu0 0.0
      %4700 = vmatprep.subr.mxu0 0.0
      %4701 = vmatpush1.msra.mxu0 0.0
      %4702 = vmatprep.subr.mxu0 0.0
      %4703 = vmatpush1.msra.mxu0 0.0
      %4704 = vmatprep.subr.mxu0 0.0
      %4705 = vmatpush1.msra.mxu0 0.0
      %4706 = vmatprep.subr.mxu0 0.0
      %4707 = vmatpush1.msra.mxu0 0.0
      %4708 = vmatprep.subr.mxu0 0.0
      %4709 = vmatpush1.msra.mxu0 0.0
      %4710 = vmatprep.subr.mxu0 0.0
      %4711 = vmatpush1.msra.mxu0 0.0
      %4712 = vmatprep.subr.mxu0 0.0
      %4713 = vmatpush1.msra.mxu0 0.0
      %4714 = vmatprep.subr.mxu0 0.0
      %4715 = vmatpush1.msra.mxu0 0.0
      %4716 = vmatprep.subr.mxu0 0.0
      %4717 = vmatpush1.msra.mxu0 0.0
      %4718 = vmatprep.subr.mxu0 0.0
      %4719 = vmatpush1.msra.mxu0 0.0
      %4720 = vmatprep.subr.mxu0 0.0
      %4721 = vmatpush1.msra.mxu0 0.0
      %4722 = vmatprep.subr.mxu0 0.0
      %4723 = vmatpush1.msra.mxu0 0.0
      %4724 = vmatprep.subr.mxu0 0.0
      %4725 = vmatpush1.msra.mxu0 0.0
      %4726 = vmatprep.subr.mxu0 0.0
      %4727 = vmatpush1.msra.mxu0 0.0
      %4728 = vmatprep.subr.mxu0 0.0
      %4729 = vmatpush1.msra.mxu0 0.0
      %4730 = vmatprep.subr.mxu0 0.0
      %4731 = vmatpush1.msra.mxu0 0.0
      %4732 = vmatprep.subr.mxu0 0.0
      %4733 = vmatpush1.msra.mxu0 0.0
      %4734 = vmatprep.subr.mxu0 0.0
      %4735 = vmatpush1.msra.mxu0 0.0
      %4736 = vmatprep.subr.mxu0 0.0
      %4737 = vmatpush1.msra.mxu0 0.0
      %4738 = vmatprep.subr.mxu0 0.0
      %4739 = vmatpush1.msra.mxu0 0.0
      %4740 = vmatprep.subr.mxu0 0.0
      %4741 = vmatpush1.msra.mxu0 0.0
      %4742 = vmatprep.subr.mxu0 0.0
      %4743 = vmatpush1.msra.mxu0 0.0
      %4744 = vmatprep.subr.mxu0 0.0
      %4745 = vmatpush1.msra.mxu0 0.0
      %4746 = vmatprep.subr.mxu0 0.0
      %4747 = vmatpush1.msra.mxu0 0.0
      %4748 = vmatprep.subr.mxu0 0.0
      %4749 = vmatpush1.msra.mxu0 0.0
      %4750 = vmatprep.mubr.f32.mxu0 0.0
      %4751 = vmatmul.mubr.f32.gmra.mrb[0].mxu0 %v3825
      %v4752 = vpop.f32.mrb[0].mxu0
      %v4753 = vadd.f32 0.0, %v4752
      %v4754 = vpop.f32.mrb[0].mxu0
      %4755 = vmatprep.mubr.f32.mxu0 0.0
      %4756 = vmatmul.mubr.f32.gmra.mrb[0].mxu0 %v3828
      %v4757 = vpop.f32.mrb[0].mxu0
      %v4758 = vadd.f32 0.0, %v4757
      %v4759 = vpop.f32.mrb[0].mxu0
      %4760 = vmatprep.mubr.f32.mxu0 0.0
      %4761 = vmatmul.mubr.f32.gmra.mrb[0].mxu0 %v3831
      %v4762 = vpop.f32.mrb[0].mxu0
      %v4763 = vadd.f32 0.0, %v4762
      %v4764 = vpop.f32.mrb[0].mxu0
      %4765 = vmatprep.mubr.f32.mxu0 0.0
      %4766 = vmatmul.mubr.f32.gmra.mrb[0].mxu0 %v3834
      %v4767 = vpop.f32.mrb[0].mxu0
      %v4768 = vadd.f32 0.0, %v4767
      %v4769 = vpop.f32.mrb[0].mxu0
      %4770 = vdwg.mxu0
      %4771 = vmatprep.subr.mxu0 0.0
      %4772 = vmatpush1.msra.mxu0 %v2385
      %4773 = vmatprep.subr.mxu0 0.0
      %4774 = vmatpush1.msra.mxu0 %v2386
      %4775 = vmatprep.subr.mxu0 0.0
      %4776 = vmatpush1.msra.mxu0 0.0
      %4777 = vmatprep.subr.mxu0 0.0
      %4778 = vmatpush1.msra.mxu0 0.0
      %4779 = vmatprep.subr.mxu0 0.0
      %4780 = vmatpush1.msra.mxu0 0.0
      %4781 = vmatprep.subr.mxu0 0.0
      %4782 = vmatpush1.msra.mxu0 0.0
      %4783 = vmatprep.subr.mxu0 0.0
      %4784 = vmatpush1.msra.mxu0 0.0
      %4785 = vmatprep.subr.mxu0 0.0
      %4786 = vmatpush1.msra.mxu0 0.0
      %4787 = vmatprep.subr.mxu0 0.0
      %4788 = vmatpush1.msra.mxu0 0.0
      %4789 = vmatprep.subr.mxu0 0.0
      %4790 = vmatpush1.msra.mxu0 0.0
      %4791 = vmatprep.subr.mxu0 0.0
      %4792 = vmatpush1.msra.mxu0 0.0
      %4793 = vmatprep.subr.mxu0 0.0
      %4794 = vmatpush1.msra.mxu0 0.0
      %4795 = vmatprep.subr.mxu0 0.0
      %4796 = vmatpush1.msra.mxu0 0.0
      %4797 = vmatprep.subr.mxu0 0.0
      %4798 = vmatpush1.msra.mxu0 0.0
      %4799 = vmatprep.subr.mxu0 0.0
      %4800 = vmatpush1.msra.mxu0 0.0
      %4801 = vmatprep.subr.mxu0 0.0
      %4802 = vmatpush1.msra.mxu0 0.0
      %4803 = vmatprep.subr.mxu0 0.0
      %4804 = vmatpush1.msra.mxu0 0.0
      %4805 = vmatprep.subr.mxu0 0.0
      %4806 = vmatpush1.msra.mxu0 0.0
      %4807 = vmatprep.subr.mxu0 0.0
      %4808 = vmatpush1.msra.mxu0 0.0
      %4809 = vmatprep.subr.mxu0 0.0
      %4810 = vmatpush1.msra.mxu0 0.0
      %4811 = vmatprep.subr.mxu0 0.0
      %4812 = vmatpush1.msra.mxu0 0.0
      %4813 = vmatprep.subr.mxu0 0.0
      %4814 = vmatpush1.msra.mxu0 0.0
      %4815 = vmatprep.subr.mxu0 0.0
      %4816 = vmatpush1.msra.mxu0 0.0
      %4817 = vmatprep.subr.mxu0 0.0
      %4818 = vmatpush1.msra.mxu0 0.0
      %4819 = vmatprep.subr.mxu0 0.0
      %4820 = vmatpush1.msra.mxu0 0.0
      %4821 = vmatprep.subr.mxu0 0.0
      %4822 = vmatpush1.msra.mxu0 0.0
      %4823 = vmatprep.subr.mxu0 0.0
      %4824 = vmatpush1.msra.mxu0 0.0
      %4825 = vmatprep.subr.mxu0 0.0
      %4826 = vmatpush1.msra.mxu0 0.0
      %4827 = vmatprep.subr.mxu0 0.0
      %4828 = vmatpush1.msra.mxu0 0.0
      %4829 = vmatprep.subr.mxu0 0.0
      %4830 = vmatpush1.msra.mxu0 0.0
      %4831 = vmatprep.subr.mxu0 0.0
      %4832 = vmatpush1.msra.mxu0 0.0
      %4833 = vmatprep.subr.mxu0 0.0
      %4834 = vmatpush1.msra.mxu0 0.0
      %4835 = vmatprep.mubr.f32.mxu0 0.0
      %4836 = vmatmul.mubr.f32.gmra.mrb[0].mxu0 %v3825
      %v4837 = vpop.f32.mrb[0].mxu0
      %v4838 = vadd.f32 0.0, %v4837
      %v4839 = vpop.f32.mrb[0].mxu0
      %4840 = vmatprep.mubr.f32.mxu0 0.0
      %4841 = vmatmul.mubr.f32.gmra.mrb[0].mxu0 %v3828
      %v4842 = vpop.f32.mrb[0].mxu0
      %v4843 = vadd.f32 0.0, %v4842
      %v4844 = vpop.f32.mrb[0].mxu0
      %4845 = vmatprep.mubr.f32.mxu0 0.0
      %4846 = vmatmul.mubr.f32.gmra.mrb[0].mxu0 %v3831
      %v4847 = vpop.f32.mrb[0].mxu0
      %v4848 = vadd.f32 0.0, %v4847
      %v4849 = vpop.f32.mrb[0].mxu0
      %4850 = vmatprep.mubr.f32.mxu0 0.0
      %4851 = vmatmul.mubr.f32.gmra.mrb[0].mxu0 %v3834
      %v4852 = vpop.f32.mrb[0].mxu0
      %v4853 = vadd.f32 0.0, %v4852
      %v4854 = vpop.f32.mrb[0].mxu0
      %4855 = vdwg.mxu0
      %4856 = vmatprep.subr.mxu0 0.0
      %4857 = vmatpush1.msra.mxu0 %v2387
      %4858 = vmatprep.subr.mxu0 0.0
      %4859 = vmatpush1.msra.mxu0 %v2388
      %4860 = vmatprep.subr.mxu0 0.0
      %4861 = vmatpush1.msra.mxu0 0.0
      %4862 = vmatprep.subr.mxu0 0.0
      %4863 = vmatpush1.msra.mxu0 0.0
      %4864 = vmatprep.subr.mxu0 0.0
      %4865 = vmatpush1.msra.mxu0 0.0
      %4866 = vmatprep.subr.mxu0 0.0
      %4867 = vmatpush1.msra.mxu0 0.0
      %4868 = vmatprep.subr.mxu0 0.0
      %4869 = vmatpush1.msra.mxu0 0.0
      %4870 = vmatprep.subr.mxu0 0.0
      %4871 = vmatpush1.msra.mxu0 0.0
      %4872 = vmatprep.subr.mxu0 0.0
      %4873 = vmatpush1.msra.mxu0 0.0
      %4874 = vmatprep.subr.mxu0 0.0
      %4875 = vmatpush1.msra.mxu0 0.0
      %4876 = vmatprep.subr.mxu0 0.0
      %4877 = vmatpush1.msra.mxu0 0.0
      %4878 = vmatprep.subr.mxu0 0.0
      %4879 = vmatpush1.msra.mxu0 0.0
      %4880 = vmatprep.subr.mxu0 0.0
      %4881 = vmatpush1.msra.mxu0 0.0
      %4882 = vmatprep.subr.mxu0 0.0
      %4883 = vmatpush1.msra.mxu0 0.0
      %4884 = vmatprep.subr.mxu0 0.0
      %4885 = vmatpush1.msra.mxu0 0.0
      %4886 = vmatprep.subr.mxu0 0.0
      %4887 = vmatpush1.msra.mxu0 0.0
      %4888 = vmatprep.subr.mxu0 0.0
      %4889 = vmatpush1.msra.mxu0 0.0
      %4890 = vmatprep.subr.mxu0 0.0
      %4891 = vmatpush1.msra.mxu0 0.0
      %4892 = vmatprep.subr.mxu0 0.0
      %4893 = vmatpush1.msra.mxu0 0.0
      %4894 = vmatprep.subr.mxu0 0.0
      %4895 = vmatpush1.msra.mxu0 0.0
      %4896 = vmatprep.subr.mxu0 0.0
      %4897 = vmatpush1.msra.mxu0 0.0
      %4898 = vmatprep.subr.mxu0 0.0
      %4899 = vmatpush1.msra.mxu0 0.0
      %4900 = vmatprep.subr.mxu0 0.0
      %4901 = vmatpush1.msra.mxu0 0.0
      %4902 = vmatprep.subr.mxu0 0.0
      %4903 = vmatpush1.msra.mxu0 0.0
      %4904 = vmatprep.subr.mxu0 0.0
      %4905 = vmatpush1.msra.mxu0 0.0
      %4906 = vmatprep.subr.mxu0 0.0
      %4907 = vmatpush1.msra.mxu0 0.0
      %4908 = vmatprep.subr.mxu0 0.0
      %4909 = vmatpush1.msra.mxu0 0.0
      %4910 = vmatprep.subr.mxu0 0.0
      %4911 = vmatpush1.msra.mxu0 0.0
      %4912 = vmatprep.subr.mxu0 0.0
      %4913 = vmatpush1.msra.mxu0 0.0
      %4914 = vmatprep.subr.mxu0 0.0
      %4915 = vmatpush1.msra.mxu0 0.0
      %4916 = vmatprep.subr.mxu0 0.0
      %4917 = vmatpush1.msra.mxu0 0.0
      %4918 = vmatprep.subr.mxu0 0.0
      %4919 = vmatpush1.msra.mxu0 0.0
      %4920 = vmatprep.mubr.f32.mxu0 0.0
      %4921 = vmatmul.mubr.f32.gmra.mrb[0].mxu0 %v3825
      %v4922 = vpop.f32.mrb[0].mxu0
      %v4923 = vadd.f32 0.0, %v4922
      %v4924 = vpop.f32.mrb[0].mxu0
      %4925 = vmatprep.mubr.f32.mxu0 0.0
      %4926 = vmatmul.mubr.f32.gmra.mrb[0].mxu0 %v3828
      %v4927 = vpop.f32.mrb[0].mxu0
      %v4928 = vadd.f32 0.0, %v4927
      %v4929 = vpop.f32.mrb[0].mxu0
      %4930 = vmatprep.mubr.f32.mxu0 0.0
      %4931 = vmatmul.mubr.f32.gmra.mrb[0].mxu0 %v3831
      %v4932 = vpop.f32.mrb[0].mxu0
      %v4933 = vadd.f32 0.0, %v4932
      %v4934 = vpop.f32.mrb[0].mxu0
      %4935 = vmatprep.mubr.f32.mxu0 0.0
      %4936 = vmatmul.mubr.f32.gmra.mrb[0].mxu0 %v3834
      %v4937 = vpop.f32.mrb[0].mxu0
      %v4938 = vadd.f32 0.0, %v4937
      %v4939 = vpop.f32.mrb[0].mxu0
      %4940 = vdwg.mxu0
      %4941 = vmatprep.subr.mxu0 0.0
      %4942 = vmatpush1.msra.mxu0 %v2389
      %4943 = vmatprep.subr.mxu0 0.0
      %4944 = vmatpush1.msra.mxu0 %v2390
      %4945 = vmatprep.subr.mxu0 0.0
      %4946 = vmatpush1.msra.mxu0 0.0
      %4947 = vmatprep.subr.mxu0 0.0
      %4948 = vmatpush1.msra.mxu0 0.0
      %4949 = vmatprep.subr.mxu0 0.0
      %4950 = vmatpush1.msra.mxu0 0.0
      %4951 = vmatprep.subr.mxu0 0.0
      %4952 = vmatpush1.msra.mxu0 0.0
      %4953 = vmatprep.subr.mxu0 0.0
      %4954 = vmatpush1.msra.mxu0 0.0
      %4955 = vmatprep.subr.mxu0 0.0
      %4956 = vmatpush1.msra.mxu0 0.0
      %4957 = vmatprep.subr.mxu0 0.0
      %4958 = vmatpush1.msra.mxu0 0.0
      %4959 = vmatprep.subr.mxu0 0.0
      %4960 = vmatpush1.msra.mxu0 0.0
      %4961 = vmatprep.subr.mxu0 0.0
      %4962 = vmatpush1.msra.mxu0 0.0
      %4963 = vmatprep.subr.mxu0 0.0
      %4964 = vmatpush1.msra.mxu0 0.0
      %4965 = vmatprep.subr.mxu0 0.0
      %4966 = vmatpush1.msra.mxu0 0.0
      %4967 = vmatprep.subr.mxu0 0.0
      %4968 = vmatpush1.msra.mxu0 0.0
      %4969 = vmatprep.subr.mxu0 0.0
      %4970 = vmatpush1.msra.mxu0 0.0
      %4971 = vmatprep.subr.mxu0 0.0
      %4972 = vmatpush1.msra.mxu0 0.0
      %4973 = vmatprep.subr.mxu0 0.0
      %4974 = vmatpush1.msra.mxu0 0.0
      %4975 = vmatprep.subr.mxu0 0.0
      %4976 = vmatpush1.msra.mxu0 0.0
      %4977 = vmatprep.subr.mxu0 0.0
      %4978 = vmatpush1.msra.mxu0 0.0
      %4979 = vmatprep.subr.mxu0 0.0
      %4980 = vmatpush1.msra.mxu0 0.0
      %4981 = vmatprep.subr.mxu0 0.0
      %4982 = vmatpush1.msra.mxu0 0.0
      %4983 = vmatprep.subr.mxu0 0.0
      %4984 = vmatpush1.msra.mxu0 0.0
      %4985 = vmatprep.subr.mxu0 0.0
      %4986 = vmatpush1.msra.mxu0 0.0
      %4987 = vmatprep.subr.mxu0 0.0
      %4988 = vmatpush1.msra.mxu0 0.0
      %4989 = vmatprep.subr.mxu0 0.0
      %4990 = vmatpush1.msra.mxu0 0.0
      %4991 = vmatprep.subr.mxu0 0.0
      %4992 = vmatpush1.msra.mxu0 0.0
      %4993 = vmatprep.subr.mxu0 0.0
      %4994 = vmatpush1.msra.mxu0 0.0
      %4995 = vmatprep.subr.mxu0 0.0
      %4996 = vmatpush1.msra.mxu0 0.0
      %4997 = vmatprep.subr.mxu0 0.0
      %4998 = vmatpush1.msra.mxu0 0.0
      %4999 = vmatprep.subr.mxu0 0.0
      %5000 = vmatpush1.msra.mxu0 0.0
      %5001 = vmatprep.subr.mxu0 0.0
      %5002 = vmatpush1.msra.mxu0 0.0
      %5003 = vmatprep.subr.mxu0 0.0
      %5004 = vmatpush1.msra.mxu0 0.0
      %5005 = vmatprep.mubr.f32.mxu0 0.0
      %5006 = vmatmul.mubr.f32.gmra.mrb[0].mxu0 %v3825
      %v5007 = vpop.f32.mrb[0].mxu0
      %v5008 = vadd.f32 0.0, %v5007
      %v5009 = vpop.f32.mrb[0].mxu0
      %5010 = vmatprep.mubr.f32.mxu0 0.0
      %5011 = vmatmul.mubr.f32.gmra.mrb[0].mxu0 %v3828
      %v5012 = vpop.f32.mrb[0].mxu0
      %v5013 = vadd.f32 0.0, %v5012
      %v5014 = vpop.f32.mrb[0].mxu0
      %5015 = vmatprep.mubr.f32.mxu0 0.0
      %5016 = vmatmul.mubr.f32.gmra.mrb[0].mxu0 %v3831
      %v5017 = vpop.f32.mrb[0].mxu0
      %v5018 = vadd.f32 0.0, %v5017
      %v5019 = vpop.f32.mrb[0].mxu0
      %5020 = vmatprep.mubr.f32.mxu0 0.0
      %5021 = vmatmul.mubr.f32.gmra.mrb[0].mxu0 %v3834
      %v5022 = vpop.f32.mrb[0].mxu0
      %v5023 = vadd.f32 0.0, %v5022
      %v5024 = vpop.f32.mrb[0].mxu0
      %5025 = vdwg.mxu0
      %5026 = vmatprep.subr.mxu0 0.0
      %5027 = vmatpush1.msra.mxu0 %v2391
      %5028 = vmatprep.subr.mxu0 0.0
      %5029 = vmatpush1.msra.mxu0 %v2392
      %5030 = vmatprep.subr.mxu0 0.0
      %5031 = vmatpush1.msra.mxu0 0.0
      %5032 = vmatprep.subr.mxu0 0.0
      %5033 = vmatpush1.msra.mxu0 0.0
      %5034 = vmatprep.subr.mxu0 0.0
      %5035 = vmatpush1.msra.mxu0 0.0
      %5036 = vmatprep.subr.mxu0 0.0
      %5037 = vmatpush1.msra.mxu0 0.0
      %5038 = vmatprep.subr.mxu0 0.0
      %5039 = vmatpush1.msra.mxu0 0.0
      %5040 = vmatprep.subr.mxu0 0.0
      %5041 = vmatpush1.msra.mxu0 0.0
      %5042 = vmatprep.subr.mxu0 0.0
      %5043 = vmatpush1.msra.mxu0 0.0
      %5044 = vmatprep.subr.mxu0 0.0
      %5045 = vmatpush1.msra.mxu0 0.0
      %5046 = vmatprep.subr.mxu0 0.0
      %5047 = vmatpush1.msra.mxu0 0.0
      %5048 = vmatprep.subr.mxu0 0.0
      %5049 = vmatpush1.msra.mxu0 0.0
      %5050 = vmatprep.subr.mxu0 0.0
      %5051 = vmatpush1.msra.mxu0 0.0
      %5052 = vmatprep.subr.mxu0 0.0
      %5053 = vmatpush1.msra.mxu0 0.0
      %5054 = vmatprep.subr.mxu0 0.0
      %5055 = vmatpush1.msra.mxu0 0.0
      %5056 = vmatprep.subr.mxu0 0.0
      %5057 = vmatpush1.msra.mxu0 0.0
      %5058 = vmatprep.subr.mxu0 0.0
      %5059 = vmatpush1.msra.mxu0 0.0
      %5060 = vmatprep.subr.mxu0 0.0
      %5061 = vmatpush1.msra.mxu0 0.0
      %5062 = vmatprep.subr.mxu0 0.0
      %5063 = vmatpush1.msra.mxu0 0.0
      %5064 = vmatprep.subr.mxu0 0.0
      %5065 = vmatpush1.msra.mxu0 0.0
      %5066 = vmatprep.subr.mxu0 0.0
      %5067 = vmatpush1.msra.mxu0 0.0
      %5068 = vmatprep.subr.mxu0 0.0
      %5069 = vmatpush1.msra.mxu0 0.0
      %5070 = vmatprep.subr.mxu0 0.0
      %5071 = vmatpush1.msra.mxu0 0.0
      %5072 = vmatprep.subr.mxu0 0.0
      %5073 = vmatpush1.msra.mxu0 0.0
      %5074 = vmatprep.subr.mxu0 0.0
      %5075 = vmatpush1.msra.mxu0 0.0
      %5076 = vmatprep.subr.mxu0 0.0
      %5077 = vmatpush1.msra.mxu0 0.0
      %5078 = vmatprep.subr.mxu0 0.0
      %5079 = vmatpush1.msra.mxu0 0.0
      %5080 = vmatprep.subr.mxu0 0.0
      %5081 = vmatpush1.msra.mxu0 0.0
      %5082 = vmatprep.subr.mxu0 0.0
      %5083 = vmatpush1.msra.mxu0 0.0
      %5084 = vmatprep.subr.mxu0 0.0
      %5085 = vmatpush1.msra.mxu0 0.0
      %5086 = vmatprep.subr.mxu0 0.0
      %5087 = vmatpush1.msra.mxu0 0.0
      %5088 = vmatprep.subr.mxu0 0.0
      %5089 = vmatpush1.msra.mxu0 0.0
      %5090 = vmatprep.mubr.f32.mxu0 0.0
      %5091 = vmatmul.mubr.f32.gmra.mrb[0].mxu0 %v3825
      %v5092 = vpop.f32.mrb[0].mxu0
      %v5093 = vadd.f32 0.0, %v5092
      %v5094 = vpop.f32.mrb[0].mxu0
      %5095 = vmatprep.mubr.f32.mxu0 0.0
      %5096 = vmatmul.mubr.f32.gmra.mrb[0].mxu0 %v3828
      %v5097 = vpop.f32.mrb[0].mxu0
      %v5098 = vadd.f32 0.0, %v5097
      %v5099 = vpop.f32.mrb[0].mxu0
      %5100 = vmatprep.mubr.f32.mxu0 0.0
      %5101 = vmatmul.mubr.f32.gmra.mrb[0].mxu0 %v3831
      %v5102 = vpop.f32.mrb[0].mxu0
      %v5103 = vadd.f32 0.0, %v5102
      %v5104 = vpop.f32.mrb[0].mxu0
      %5105 = vmatprep.mubr.f32.mxu0 0.0
      %5106 = vmatmul.mubr.f32.gmra.mrb[0].mxu0 %v3834
      %v5107 = vpop.f32.mrb[0].mxu0
      %v5108 = vadd.f32 0.0, %v5107
      %v5109 = vpop.f32.mrb[0].mxu0
      %5110 = vdwg.mxu0
      %5111 = vmatprep.subr.mxu0 0.0
      %5112 = vmatpush1.msra.mxu0 %v2393
      %5113 = vmatprep.subr.mxu0 0.0
      %5114 = vmatpush1.msra.mxu0 %v2394
      %5115 = vmatprep.subr.mxu0 0.0
      %5116 = vmatpush1.msra.mxu0 0.0
      %5117 = vmatprep.subr.mxu0 0.0
      %5118 = vmatpush1.msra.mxu0 0.0
      %5119 = vmatprep.subr.mxu0 0.0
      %5120 = vmatpush1.msra.mxu0 0.0
      %5121 = vmatprep.subr.mxu0 0.0
      %5122 = vmatpush1.msra.mxu0 0.0
      %5123 = vmatprep.subr.mxu0 0.0
      %5124 = vmatpush1.msra.mxu0 0.0
      %5125 = vmatprep.subr.mxu0 0.0
      %5126 = vmatpush1.msra.mxu0 0.0
      %5127 = vmatprep.subr.mxu0 0.0
      %5128 = vmatpush1.msra.mxu0 0.0
      %5129 = vmatprep.subr.mxu0 0.0
      %5130 = vmatpush1.msra.mxu0 0.0
      %5131 = vmatprep.subr.mxu0 0.0
      %5132 = vmatpush1.msra.mxu0 0.0
      %5133 = vmatprep.subr.mxu0 0.0
      %5134 = vmatpush1.msra.mxu0 0.0
      %5135 = vmatprep.subr.mxu0 0.0
      %5136 = vmatpush1.msra.mxu0 0.0
      %5137 = vmatprep.subr.mxu0 0.0
      %5138 = vmatpush1.msra.mxu0 0.0
      %5139 = vmatprep.subr.mxu0 0.0
      %5140 = vmatpush1.msra.mxu0 0.0
      %5141 = vmatprep.subr.mxu0 0.0
      %5142 = vmatpush1.msra.mxu0 0.0
      %5143 = vmatprep.subr.mxu0 0.0
      %5144 = vmatpush1.msra.mxu0 0.0
      %5145 = vmatprep.subr.mxu0 0.0
      %5146 = vmatpush1.msra.mxu0 0.0
      %5147 = vmatprep.subr.mxu0 0.0
      %5148 = vmatpush1.msra.mxu0 0.0
      %5149 = vmatprep.subr.mxu0 0.0
      %5150 = vmatpush1.msra.mxu0 0.0
      %5151 = vmatprep.subr.mxu0 0.0
      %5152 = vmatpush1.msra.mxu0 0.0
      %5153 = vmatprep.subr.mxu0 0.0
      %5154 = vmatpush1.msra.mxu0 0.0
      %5155 = vmatprep.subr.mxu0 0.0
      %5156 = vmatpush1.msra.mxu0 0.0
      %5157 = vmatprep.subr.mxu0 0.0
      %5158 = vmatpush1.msra.mxu0 0.0
      %5159 = vmatprep.subr.mxu0 0.0
      %5160 = vmatpush1.msra.mxu0 0.0
      %5161 = vmatprep.subr.mxu0 0.0
      %5162 = vmatpush1.msra.mxu0 0.0
      %5163 = vmatprep.subr.mxu0 0.0
      %5164 = vmatpush1.msra.mxu0 0.0
      %5165 = vmatprep.subr.mxu0 0.0
      %5166 = vmatpush1.msra.mxu0 0.0
      %5167 = vmatprep.subr.mxu0 0.0
      %5168 = vmatpush1.msra.mxu0 0.0
      %5169 = vmatprep.subr.mxu0 0.0
      %5170 = vmatpush1.msra.mxu0 0.0
      %5171 = vmatprep.subr.mxu0 0.0
      %5172 = vmatpush1.msra.mxu0 0.0
      %5173 = vmatprep.subr.mxu0 0.0
      %5174 = vmatpush1.msra.mxu0 0.0
      %5175 = vmatprep.mubr.f32.mxu0 0.0
      %5176 = vmatmul.mubr.f32.gmra.mrb[0].mxu0 %v3825
      %v5177 = vpop.f32.mrb[0].mxu0
      %v5178 = vadd.f32 0.0, %v5177
      %v5179 = vpop.f32.mrb[0].mxu0
      %5180 = vmatprep.mubr.f32.mxu0 0.0
      %5181 = vmatmul.mubr.f32.gmra.mrb[0].mxu0 %v3828
      %v5182 = vpop.f32.mrb[0].mxu0
      %v5183 = vadd.f32 0.0, %v5182
      %v5184 = vpop.f32.mrb[0].mxu0
      %5185 = vmatprep.mubr.f32.mxu0 0.0
      %5186 = vmatmul.mubr.f32.gmra.mrb[0].mxu0 %v3831
      %v5187 = vpop.f32.mrb[0].mxu0
      %v5188 = vadd.f32 0.0, %v5187
      %v5189 = vpop.f32.mrb[0].mxu0
      %5190 = vmatprep.mubr.f32.mxu0 0.0
      %5191 = vmatmul.mubr.f32.gmra.mrb[0].mxu0 %v3834
      %v5192 = vpop.f32.mrb[0].mxu0
      %v5193 = vadd.f32 0.0, %v5192
      %v5194 = vpop.f32.mrb[0].mxu0
      %5195 = vdwg.mxu0
      %v5196 = vmul.f32 %v3903, 0.25
      %v5197 = vmul.f32 %v3908, 0.25
      %v5198 = vmul.f32 %v3913, 0.25
      %v5199 = vmul.f32 %v3918, 0.25
      %v5200 = vmul.f32 %v3988, 0.25
      %v5201 = vmul.f32 %v3993, 0.25
      %v5202 = vmul.f32 %v3998, 0.25
      %v5203 = vmul.f32 %v4003, 0.25
      %v5204 = vmul.f32 %v4073, 0.25
      %v5205 = vmul.f32 %v4078, 0.25
      %v5206 = vmul.f32 %v4083, 0.25
      %v5207 = vmul.f32 %v4088, 0.25
      %v5208 = vmul.f32 %v4158, 0.25
      %v5209 = vmul.f32 %v4163, 0.25
      %v5210 = vmul.f32 %v4168, 0.25
      %v5211 = vmul.f32 %v4173, 0.25
      %v5212 = vmul.f32 %v4243, 0.25
      %v5213 = vmul.f32 %v4248, 0.25
      %v5214 = vmul.f32 %v4253, 0.25
      %v5215 = vmul.f32 %v4258, 0.25
      %v5216 = vmul.f32 %v4328, 0.25
      %v5217 = vmul.f32 %v4333, 0.25
      %v5218 = vmul.f32 %v4338, 0.25
      %v5219 = vmul.f32 %v4343, 0.25
      %v5220 = vmul.f32 %v4413, 0.25
      %v5221 = vmul.f32 %v4418, 0.25
      %v5222 = vmul.f32 %v4423, 0.25
      %v5223 = vmul.f32 %v4428, 0.25
      %v5224 = vmul.f32 %v4498, 0.25
      %v5225 = vmul.f32 %v4503, 0.25
      %v5226 = vmul.f32 %v4508, 0.25
      %v5227 = vmul.f32 %v4513, 0.25
      %v5228 = vmul.f32 %v4583, 0.25
      %v5229 = vmul.f32 %v4588, 0.25
      %v5230 = vmul.f32 %v4593, 0.25
      %v5231 = vmul.f32 %v4598, 0.25
      %v5232 = vmul.f32 %v4668, 0.25
      %v5233 = vmul.f32 %v4673, 0.25
      %v5234 = vmul.f32 %v4678, 0.25
      %v5235 = vmul.f32 %v4683, 0.25
      %v5236 = vmul.f32 %v4753, 0.25
      %v5237 = vmul.f32 %v4758, 0.25
      %v5238 = vmul.f32 %v4763, 0.25
      %v5239 = vmul.f32 %v4768, 0.25
      %v5240 = vmul.f32 %v4838, 0.25
      %v5241 = vmul.f32 %v4843, 0.25
      %v5242 = vmul.f32 %v4848, 0.25
      %v5243 = vmul.f32 %v4853, 0.25
      %v5244 = vmul.f32 %v4923, 0.25
      %v5245 = vmul.f32 %v4928, 0.25
      %v5246 = vmul.f32 %v4933, 0.25
      %v5247 = vmul.f32 %v4938, 0.25
      %v5248 = vmul.f32 %v5008, 0.25
      %v5249 = vmul.f32 %v5013, 0.25
      %v5250 = vmul.f32 %v5018, 0.25
      %v5251 = vmul.f32 %v5023, 0.25
      %v5252 = vmul.f32 %v5093, 0.25
      %v5253 = vmul.f32 %v5098, 0.25
      %v5254 = vmul.f32 %v5103, 0.25
      %v5255 = vmul.f32 %v5108, 0.25
      %v5256 = vmul.f32 %v3903, 0.75
      %v5257 = vmul.f32 %v3908, 0.75
      %v5258 = vmul.f32 %v3913, 0.75
      %v5259 = vmul.f32 %v3918, 0.75
      %v5260 = vmul.f32 %v3988, 0.75
      %v5261 = vmul.f32 %v3993, 0.75
      %v5262 = vmul.f32 %v3998, 0.75
      %v5263 = vmul.f32 %v4003, 0.75
      %v5264 = vmul.f32 %v4073, 0.75
      %v5265 = vmul.f32 %v4078, 0.75
      %v5266 = vmul.f32 %v4083, 0.75
      %v5267 = vmul.f32 %v4088, 0.75
      %v5268 = vmul.f32 %v4158, 0.75
      %v5269 = vmul.f32 %v4163, 0.75
      %v5270 = vmul.f32 %v4168, 0.75
      %v5271 = vmul.f32 %v4173, 0.75
      %v5272 = vmul.f32 %v4243, 0.75
      %v5273 = vmul.f32 %v4248, 0.75
      %v5274 = vmul.f32 %v4253, 0.75
      %v5275 = vmul.f32 %v4258, 0.75
      %v5276 = vmul.f32 %v4328, 0.75
      %v5277 = vmul.f32 %v4333, 0.75
      %v5278 = vmul.f32 %v4338, 0.75
      %v5279 = vmul.f32 %v4343, 0.75
      %v5280 = vmul.f32 %v4413, 0.75
      %v5281 = vmul.f32 %v4418, 0.75
      %v5282 = vmul.f32 %v4423, 0.75
      %v5283 = vmul.f32 %v4428, 0.75
      %v5284 = vmul.f32 %v4498, 0.75
      %v5285 = vmul.f32 %v4503, 0.75
      %v5286 = vmul.f32 %v4508, 0.75
      %v5287 = vmul.f32 %v4513, 0.75
      %v5288 = vmul.f32 %v4583, 0.75
      %v5289 = vmul.f32 %v4588, 0.75
      %v5290 = vmul.f32 %v4593, 0.75
      %v5291 = vmul.f32 %v4598, 0.75
      %v5292 = vmul.f32 %v4668, 0.75
      %v5293 = vmul.f32 %v4673, 0.75
      %v5294 = vmul.f32 %v4678, 0.75
      %v5295 = vmul.f32 %v4683, 0.75
      %v5296 = vmul.f32 %v4753, 0.75
      %v5297 = vmul.f32 %v4758, 0.75
      %v5298 = vmul.f32 %v4763, 0.75
      %v5299 = vmul.f32 %v4768, 0.75
      %v5300 = vmul.f32 %v4838, 0.75
      %v5301 = vmul.f32 %v4843, 0.75
      %v5302 = vmul.f32 %v4848, 0.75
      %v5303 = vmul.f32 %v4853, 0.75
      %v5304 = vmul.f32 %v4923, 0.75
      %v5305 = vmul.f32 %v4928, 0.75
      %v5306 = vmul.f32 %v4933, 0.75
      %v5307 = vmul.f32 %v4938, 0.75
      %v5308 = vmul.f32 %v5008, 0.75
      %v5309 = vmul.f32 %v5013, 0.75
      %v5310 = vmul.f32 %v5018, 0.75
      %v5311 = vmul.f32 %v5023, 0.75
      %v5312 = vmul.f32 %v5093, 0.75
      %v5313 = vmul.f32 %v5098, 0.75
      %v5314 = vmul.f32 %v5103, 0.75
      %v5315 = vmul.f32 %v5108, 0.75
      %v5316 = vmul.f32 %v5178, 0.75
      %v5317 = vmul.f32 %v5183, 0.75
      %v5318 = vmul.f32 %v5188, 0.75
      %v5319 = vmul.f32 %v5193, 0.75
      %v5320 = vadd.f32 %v5196, %v5256
      %v5321 = vadd.f32 %v5197, %v5257
      %v5322 = vadd.f32 %v5198, %v5258
      %v5323 = vadd.f32 %v5199, %v5259
      %v5324 = vadd.f32 %v5196, %v5260
      %v5325 = vadd.f32 %v5197, %v5261
      %v5326 = vadd.f32 %v5198, %v5262
      %v5327 = vadd.f32 %v5199, %v5263
      %v5328 = vadd.f32 %v5200, %v5264
      %v5329 = vadd.f32 %v5201, %v5265
      %v5330 = vadd.f32 %v5202, %v5266
      %v5331 = vadd.f32 %v5203, %v5267
      %v5332 = vadd.f32 %v5204, %v5268
      %v5333 = vadd.f32 %v5205, %v5269
      %v5334 = vadd.f32 %v5206, %v5270
      %v5335 = vadd.f32 %v5207, %v5271
      %v5336 = vadd.f32 %v5208, %v5272
      %v5337 = vadd.f32 %v5209, %v5273
      %v5338 = vadd.f32 %v5210, %v5274
      %v5339 = vadd.f32 %v5211, %v5275
      %v5340 = vadd.f32 %v5212, %v5276
      %v5341 = vadd.f32 %v5213, %v5277
      %v5342 = vadd.f32 %v5214, %v5278
      %v5343 = vadd.f32 %v5215, %v5279
      %v5344 = vadd.f32 %v5216, %v5280
      %v5345 = vadd.f32 %v5217, %v5281
      %v5346 = vadd.f32 %v5218, %v5282
      %v5347 = vadd.f32 %v5219, %v5283
      %v5348 = vadd.f32 %v5220, %v5284
      %v5349 = vadd.f32 %v5221, %v5285
      %v5350 = vadd.f32 %v5222, %v5286
      %v5351 = vadd.f32 %v5223, %v5287
      %v5352 = vadd.f32 %v5224, %v5288
      %v5353 = vadd.f32 %v5225, %v5289
      %v5354 = vadd.f32 %v5226, %v5290
      %v5355 = vadd.f32 %v5227, %v5291
      %v5356 = vadd.f32 %v5228, %v5292
      %v5357 = vadd.f32 %v5229, %v5293
      %v5358 = vadd.f32 %v5230, %v5294
      %v5359 = vadd.f32 %v5231, %v5295
      %v5360 = vadd.f32 %v5232, %v5296
      %v5361 = vadd.f32 %v5233, %v5297
      %v5362 = vadd.f32 %v5234, %v5298
      %v5363 = vadd.f32 %v5235, %v5299
      %v5364 = vadd.f32 %v5236, %v5300
      %v5365 = vadd.f32 %v5237, %v5301
      %v5366 = vadd.f32 %v5238, %v5302
      %v5367 = vadd.f32 %v5239, %v5303
      %v5368 = vadd.f32 %v5240, %v5304
      %v5369 = vadd.f32 %v5241, %v5305
      %v5370 = vadd.f32 %v5242, %v5306
      %v5371 = vadd.f32 %v5243, %v5307
      %v5372 = vadd.f32 %v5244, %v5308
      %v5373 = vadd.f32 %v5245, %v5309
      %v5374 = vadd.f32 %v5246, %v5310
      %v5375 = vadd.f32 %v5247, %v5311
      %v5376 = vadd.f32 %v5248, %v5312
      %v5377 = vadd.f32 %v5249, %v5313
      %v5378 = vadd.f32 %v5250, %v5314
      %v5379 = vadd.f32 %v5251, %v5315
      %v5380 = vadd.f32 %v5252, %v5316
      %v5381 = vadd.f32 %v5253, %v5317
      %v5382 = vadd.f32 %v5254, %v5318
      %v5383 = vadd.f32 %v5255, %v5319
      %v5384 = vmul.f32 %v5178, 0.25
      %v5385 = vmul.f32 %v5183, 0.25
      %v5386 = vmul.f32 %v5188, 0.25
      %v5387 = vmul.f32 %v5193, 0.25
      %v5388 = vadd.f32 %v5256, %v5200
      %v5389 = vadd.f32 %v5257, %v5201
      %v5390 = vadd.f32 %v5258, %v5202
      %v5391 = vadd.f32 %v5259, %v5203
      %v5392 = vadd.f32 %v5260, %v5204
      %v5393 = vadd.f32 %v5261, %v5205
      %v5394 = vadd.f32 %v5262, %v5206
      %v5395 = vadd.f32 %v5263, %v5207
      %v5396 = vadd.f32 %v5264, %v5208
      %v5397 = vadd.f32 %v5265, %v5209
      %v5398 = vadd.f32 %v5266, %v5210
      %v5399 = vadd.f32 %v5267, %v5211
      %v5400 = vadd.f32 %v5268, %v5212
      %v5401 = vadd.f32 %v5269, %v5213
      %v5402 = vadd.f32 %v5270, %v5214
      %v5403 = vadd.f32 %v5271, %v5215
      %v5404 = vadd.f32 %v5272, %v5216
      %v5405 = vadd.f32 %v5273, %v5217
      %v5406 = vadd.f32 %v5274, %v5218
      %v5407 = vadd.f32 %v5275, %v5219
      %v5408 = vadd.f32 %v5276, %v5220
      %v5409 = vadd.f32 %v5277, %v5221
      %v5410 = vadd.f32 %v5278, %v5222
      %v5411 = vadd.f32 %v5279, %v5223
      %v5412 = vadd.f32 %v5280, %v5224
      %v5413 = vadd.f32 %v5281, %v5225
      %v5414 = vadd.f32 %v5282, %v5226
      %v5415 = vadd.f32 %v5283, %v5227
      %v5416 = vadd.f32 %v5284, %v5228
      %v5417 = vadd.f32 %v5285, %v5229
      %v5418 = vadd.f32 %v5286, %v5230
      %v5419 = vadd.f32 %v5287, %v5231
      %v5420 = vadd.f32 %v5288, %v5232
      %v5421 = vadd.f32 %v5289, %v5233
      %v5422 = vadd.f32 %v5290, %v5234
      %v5423 = vadd.f32 %v5291, %v5235
      %v5424 = vadd.f32 %v5292, %v5236
      %v5425 = vadd.f32 %v5293, %v5237
      %v5426 = vadd.f32 %v5294, %v5238
      %v5427 = vadd.f32 %v5295, %v5239
      %v5428 = vadd.f32 %v5296, %v5240
      %v5429 = vadd.f32 %v5297, %v5241
      %v5430 = vadd.f32 %v5298, %v5242
      %v5431 = vadd.f32 %v5299, %v5243
      %v5432 = vadd.f32 %v5300, %v5244
      %v5433 = vadd.f32 %v5301, %v5245
      %v5434 = vadd.f32 %v5302, %v5246
      %v5435 = vadd.f32 %v5303, %v5247
      %v5436 = vadd.f32 %v5304, %v5248
      %v5437 = vadd.f32 %v5305, %v5249
      %v5438 = vadd.f32 %v5306, %v5250
      %v5439 = vadd.f32 %v5307, %v5251
      %v5440 = vadd.f32 %v5308, %v5252
      %v5441 = vadd.f32 %v5309, %v5253
      %v5442 = vadd.f32 %v5310, %v5254
      %v5443 = vadd.f32 %v5311, %v5255
      %v5444 = vadd.f32 %v5312, %v5384
      %v5445 = vadd.f32 %v5313, %v5385
      %v5446 = vadd.f32 %v5314, %v5386
      %v5447 = vadd.f32 %v5315, %v5387
      %v5448 = vadd.f32 %v5316, %v5384
      %v5449 = vadd.f32 %v5317, %v5385
      %v5450 = vadd.f32 %v5318, %v5386
      %v5451 = vadd.f32 %v5319, %v5387
      %v5452 = vadd.f32 %v5320, %v3182
      %v5453 = vadd.f32 %v5321, %v3187
      %v5454 = vadd.f32 %v5322, %v3192
      %v5455 = vadd.f32 %v5323, %v3197
      %v5456 = vadd.f32 %v5388, %v3202
      %v5457 = vadd.f32 %v5389, %v3207
      %v5458 = vadd.f32 %v5390, %v3212
      %v5459 = vadd.f32 %v5391, %v3217
      %v5460 = vadd.f32 %v5324, %v3222
      %v5461 = vadd.f32 %v5325, %v3227
      %v5462 = vadd.f32 %v5326, %v3232
      %v5463 = vadd.f32 %v5327, %v3237
      %v5464 = vadd.f32 %v5392, %v3242
      %v5465 = vadd.f32 %v5393, %v3247
      %v5466 = vadd.f32 %v5394, %v3252
      %v5467 = vadd.f32 %v5395, %v3257
      %v5468 = vadd.f32 %v5328, %v3262
      %v5469 = vadd.f32 %v5329, %v3267
      %v5470 = vadd.f32 %v5330, %v3272
      %v5471 = vadd.f32 %v5331, %v3277
      %v5472 = vadd.f32 %v5396, %v3282
      %v5473 = vadd.f32 %v5397, %v3287
      %v5474 = vadd.f32 %v5398, %v3292
      %v5475 = vadd.f32 %v5399, %v3297
      %v5476 = vadd.f32 %v5332, %v3302
      %v5477 = vadd.f32 %v5333, %v3307
      %v5478 = vadd.f32 %v5334, %v3312
      %v5479 = vadd.f32 %v5335, %v3317
      %v5480 = vadd.f32 %v5400, %v3322
      %v5481 = vadd.f32 %v5401, %v3327
      %v5482 = vadd.f32 %v5402, %v3332
      %v5483 = vadd.f32 %v5403, %v3337
      %v5484 = vadd.f32 %v5336, %v3342
      %v5485 = vadd.f32 %v5337, %v3347
      %v5486 = vadd.f32 %v5338, %v3352
      %v5487 = vadd.f32 %v5339, %v3357
      %v5488 = vadd.f32 %v5404, %v3362
      %v5489 = vadd.f32 %v5405, %v3367
      %v5490 = vadd.f32 %v5406, %v3372
      %v5491 = vadd.f32 %v5407, %v3377
      %v5492 = vadd.f32 %v5340, %v3382
      %v5493 = vadd.f32 %v5341, %v3387
      %v5494 = vadd.f32 %v5342, %v3392
      %v5495 = vadd.f32 %v5343, %v3397
      %v5496 = vadd.f32 %v5408, %v3402
      %v5497 = vadd.f32 %v5409, %v3407
      %v5498 = vadd.f32 %v5410, %v3412
      %v5499 = vadd.f32 %v5411, %v3417
      %v5500 = vadd.f32 %v5344, %v3422
      %v5501 = vadd.f32 %v5345, %v3427
      %v5502 = vadd.f32 %v5346, %v3432
      %v5503 = vadd.f32 %v5347, %v3437
      %v5504 = vadd.f32 %v5412, %v3442
      %v5505 = vadd.f32 %v5413, %v3447
      %v5506 = vadd.f32 %v5414, %v3452
      %v5507 = vadd.f32 %v5415, %v3457
      %v5508 = vadd.f32 %v5348, %v3462
      %v5509 = vadd.f32 %v5349, %v3467
      %v5510 = vadd.f32 %v5350, %v3472
      %v5511 = vadd.f32 %v5351, %v3477
      %v5512 = vadd.f32 %v5416, %v3482
      %v5513 = vadd.f32 %v5417, %v3487
      %v5514 = vadd.f32 %v5418, %v3492
      %v5515 = vadd.f32 %v5419, %v3497
      %v5516 = vadd.f32 %v5352, %v3502
      %v5517 = vadd.f32 %v5353, %v3507
      %v5518 = vadd.f32 %v5354, %v3512
      %v5519 = vadd.f32 %v5355, %v3517
      %v5520 = vadd.f32 %v5420, %v3522
      %v5521 = vadd.f32 %v5421, %v3527
      %v5522 = vadd.f32 %v5422, %v3532
      %v5523 = vadd.f32 %v5423, %v3537
      %v5524 = vadd.f32 %v5356, %v3542
      %v5525 = vadd.f32 %v5357, %v3547
      %v5526 = vadd.f32 %v5358, %v3552
      %v5527 = vadd.f32 %v5359, %v3557
      %v5528 = vadd.f32 %v5424, %v3562
      %v5529 = vadd.f32 %v5425, %v3567
      %v5530 = vadd.f32 %v5426, %v3572
      %v5531 = vadd.f32 %v5427, %v3577
      %v5532 = vadd.f32 %v5360, %v3582
      %v5533 = vadd.f32 %v5361, %v3587
      %v5534 = vadd.f32 %v5362, %v3592
      %v5535 = vadd.f32 %v5363, %v3597
      %v5536 = vadd.f32 %v5428, %v3602
      %v5537 = vadd.f32 %v5429, %v3607
      %v5538 = vadd.f32 %v5430, %v3612
      %v5539 = vadd.f32 %v5431, %v3617
      %v5540 = vadd.f32 %v5364, %v3622
      %v5541 = vadd.f32 %v5365, %v3627
      %v5542 = vadd.f32 %v5366, %v3632
      %v5543 = vadd.f32 %v5367, %v3637
      %v5544 = vadd.f32 %v5432, %v3642
      %v5545 = vadd.f32 %v5433, %v3647
      %v5546 = vadd.f32 %v5434, %v3652
      %v5547 = vadd.f32 %v5435, %v3657
      %v5548 = vadd.f32 %v5368, %v3662
      %v5549 = vadd.f32 %v5369, %v3667
      %v5550 = vadd.f32 %v5370, %v3672
      %v5551 = vadd.f32 %v5371, %v3677
      %v5552 = vadd.f32 %v5436, %v3682
      %v5553 = vadd.f32 %v5437, %v3687
      %v5554 = vadd.f32 %v5438, %v3692
      %v5555 = vadd.f32 %v5439, %v3697
      %v5556 = vadd.f32 %v5372, %v3702
      %v5557 = vadd.f32 %v5373, %v3707
      %v5558 = vadd.f32 %v5374, %v3712
      %v5559 = vadd.f32 %v5375, %v3717
      %v5560 = vadd.f32 %v5440, %v3722
      %v5561 = vadd.f32 %v5441, %v3727
      %v5562 = vadd.f32 %v5442, %v3732
      %v5563 = vadd.f32 %v5443, %v3737
      %v5564 = vadd.f32 %v5376, %v3742
      %v5565 = vadd.f32 %v5377, %v3747
      %v5566 = vadd.f32 %v5378, %v3752
      %v5567 = vadd.f32 %v5379, %v3757
      %v5568 = vadd.f32 %v5444, %v3762
      %v5569 = vadd.f32 %v5445, %v3767
      %v5570 = vadd.f32 %v5446, %v3772
      %v5571 = vadd.f32 %v5447, %v3777
      %v5572 = vadd.f32 %v5380, %v3782
      %v5573 = vadd.f32 %v5381, %v3787
      %v5574 = vadd.f32 %v5382, %v3792
      %v5575 = vadd.f32 %v5383, %v3797
      %v5576 = vadd.f32 %v5448, %v3802
      %v5577 = vadd.f32 %v5449, %v3807
      %v5578 = vadd.f32 %v5450, %v3812
      %v5579 = vadd.f32 %v5451, %v3817
      %5580 = vxpose.xlu0.b32.start [1/16] %v5452, 128
      %5581 = vxpose.xlu0.b32.cont [2/16] %v5453, 128
      %5582 = vxpose.xlu0.b32.cont [3/16] %v5454, 128
      %5583 = vxpose.xlu0.b32.cont [4/16] %v5455, 128
      %5584 = vxpose.xlu0.b32.cont [5/16] %v5456, 128
      %5585 = vxpose.xlu0.b32.cont [6/16] %v5457, 128
      %5586 = vxpose.xlu0.b32.cont [7/16] %v5458, 128
      %5587 = vxpose.xlu0.b32.cont [8/16] %v5459, 128
      %5588 = vxpose.xlu0.b32.cont [9/16] %v5460, 128
      %5589 = vxpose.xlu0.b32.cont [10/16] %v5461, 128
      %5590 = vxpose.xlu0.b32.cont [11/16] %v5462, 128
      %5591 = vxpose.xlu0.b32.cont [12/16] %v5463, 128
      %5592 = vxpose.xlu0.b32.cont [13/16] %v5464, 128
      %5593 = vxpose.xlu0.b32.cont [14/16] %v5465, 128
      %5594 = vxpose.xlu0.b32.cont [15/16] %v5466, 128
      %5595 = vxpose.xlu0.b32.end [16/16] %v5467, 128
      %v5596 = vpop.trf.xlu0
      %v5597 = vpop.trf.xlu0
      %v5598 = vpop.trf.xlu0
      %v5599 = vpop.trf.xlu0
      %v5600 = vpop.trf.xlu0
      %v5601 = vpop.trf.xlu0
      %v5602 = vpop.trf.xlu0
      %v5603 = vpop.trf.xlu0
      %v5604 = vpop.trf.xlu0
      %v5605 = vpop.trf.xlu0
      %v5606 = vpop.trf.xlu0
      %v5607 = vpop.trf.xlu0
      %v5608 = vpop.trf.xlu0
      %v5609 = vpop.trf.xlu0
      %v5610 = vpop.trf.xlu0
      %v5611 = vpop.trf.xlu0
      %5612 = vxpose.xlu0.b32.start [1/16] %v5468, 128
      %5613 = vxpose.xlu0.b32.cont [2/16] %v5469, 128
      %5614 = vxpose.xlu0.b32.cont [3/16] %v5470, 128
      %5615 = vxpose.xlu0.b32.cont [4/16] %v5471, 128
      %5616 = vxpose.xlu0.b32.cont [5/16] %v5472, 128
      %5617 = vxpose.xlu0.b32.cont [6/16] %v5473, 128
      %5618 = vxpose.xlu0.b32.cont [7/16] %v5474, 128
      %5619 = vxpose.xlu0.b32.cont [8/16] %v5475, 128
      %5620 = vxpose.xlu0.b32.cont [9/16] %v5476, 128
      %5621 = vxpose.xlu0.b32.cont [10/16] %v5477, 128
      %5622 = vxpose.xlu0.b32.cont [11/16] %v5478, 128
      %5623 = vxpose.xlu0.b32.cont [12/16] %v5479, 128
      %5624 = vxpose.xlu0.b32.cont [13/16] %v5480, 128
      %5625 = vxpose.xlu0.b32.cont [14/16] %v5481, 128
      %5626 = vxpose.xlu0.b32.cont [15/16] %v5482, 128
      %5627 = vxpose.xlu0.b32.end [16/16] %v5483, 128
      %v5628 = vpop.trf.xlu0
      %v5629 = vpop.trf.xlu0
      %v5630 = vpop.trf.xlu0
      %v5631 = vpop.trf.xlu0
      %v5632 = vpop.trf.xlu0
      %v5633 = vpop.trf.xlu0
      %v5634 = vpop.trf.xlu0
      %v5635 = vpop.trf.xlu0
      %v5636 = vpop.trf.xlu0
      %v5637 = vpop.trf.xlu0
      %v5638 = vpop.trf.xlu0
      %v5639 = vpop.trf.xlu0
      %v5640 = vpop.trf.xlu0
      %v5641 = vpop.trf.xlu0
      %v5642 = vpop.trf.xlu0
      %v5643 = vpop.trf.xlu0
      %5644 = vxpose.xlu0.b32.start [1/16] %v5484, 128
      %5645 = vxpose.xlu0.b32.cont [2/16] %v5485, 128
      %5646 = vxpose.xlu0.b32.cont [3/16] %v5486, 128
      %5647 = vxpose.xlu0.b32.cont [4/16] %v5487, 128
      %5648 = vxpose.xlu0.b32.cont [5/16] %v5488, 128
      %5649 = vxpose.xlu0.b32.cont [6/16] %v5489, 128
      %5650 = vxpose.xlu0.b32.cont [7/16] %v5490, 128
      %5651 = vxpose.xlu0.b32.cont [8/16] %v5491, 128
      %5652 = vxpose.xlu0.b32.cont [9/16] %v5492, 128
      %5653 = vxpose.xlu0.b32.cont [10/16] %v5493, 128
      %5654 = vxpose.xlu0.b32.cont [11/16] %v5494, 128
      %5655 = vxpose.xlu0.b32.cont [12/16] %v5495, 128
      %5656 = vxpose.xlu0.b32.cont [13/16] %v5496, 128
      %5657 = vxpose.xlu0.b32.cont [14/16] %v5497, 128
      %5658 = vxpose.xlu0.b32.cont [15/16] %v5498, 128
      %5659 = vxpose.xlu0.b32.end [16/16] %v5499, 128
      %v5660 = vpop.trf.xlu0
      %v5661 = vpop.trf.xlu0
      %v5662 = vpop.trf.xlu0
      %v5663 = vpop.trf.xlu0
      %v5664 = vpop.trf.xlu0
      %v5665 = vpop.trf.xlu0
      %v5666 = vpop.trf.xlu0
      %v5667 = vpop.trf.xlu0
      %v5668 = vpop.trf.xlu0
      %v5669 = vpop.trf.xlu0
      %v5670 = vpop.trf.xlu0
      %v5671 = vpop.trf.xlu0
      %v5672 = vpop.trf.xlu0
      %v5673 = vpop.trf.xlu0
      %v5674 = vpop.trf.xlu0
      %v5675 = vpop.trf.xlu0
      %5676 = vxpose.xlu0.b32.start [1/16] %v5500, 128
      %5677 = vxpose.xlu0.b32.cont [2/16] %v5501, 128
      %5678 = vxpose.xlu0.b32.cont [3/16] %v5502, 128
      %5679 = vxpose.xlu0.b32.cont [4/16] %v5503, 128
      %5680 = vxpose.xlu0.b32.cont [5/16] %v5504, 128
      %5681 = vxpose.xlu0.b32.cont [6/16] %v5505, 128
      %5682 = vxpose.xlu0.b32.cont [7/16] %v5506, 128
      %5683 = vxpose.xlu0.b32.cont [8/16] %v5507, 128
      %5684 = vxpose.xlu0.b32.cont [9/16] %v5508, 128
      %5685 = vxpose.xlu0.b32.cont [10/16] %v5509, 128
      %5686 = vxpose.xlu0.b32.cont [11/16] %v5510, 128
      %5687 = vxpose.xlu0.b32.cont [12/16] %v5511, 128
      %5688 = vxpose.xlu0.b32.cont [13/16] %v5512, 128
      %5689 = vxpose.xlu0.b32.cont [14/16] %v5513, 128
      %5690 = vxpose.xlu0.b32.cont [15/16] %v5514, 128
      %5691 = vxpose.xlu0.b32.end [16/16] %v5515, 128
      %v5692 = vpop.trf.xlu0
      %v5693 = vpop.trf.xlu0
      %v5694 = vpop.trf.xlu0
      %v5695 = vpop.trf.xlu0
      %v5696 = vpop.trf.xlu0
      %v5697 = vpop.trf.xlu0
      %v5698 = vpop.trf.xlu0
      %v5699 = vpop.trf.xlu0
      %v5700 = vpop.trf.xlu0
      %v5701 = vpop.trf.xlu0
      %v5702 = vpop.trf.xlu0
      %v5703 = vpop.trf.xlu0
      %v5704 = vpop.trf.xlu0
      %v5705 = vpop.trf.xlu0
      %v5706 = vpop.trf.xlu0
      %v5707 = vpop.trf.xlu0
      %5708 = vxpose.xlu0.b32.start [1/16] %v5516, 128
      %5709 = vxpose.xlu0.b32.cont [2/16] %v5517, 128
      %5710 = vxpose.xlu0.b32.cont [3/16] %v5518, 128
      %5711 = vxpose.xlu0.b32.cont [4/16] %v5519, 128
      %5712 = vxpose.xlu0.b32.cont [5/16] %v5520, 128
      %5713 = vxpose.xlu0.b32.cont [6/16] %v5521, 128
      %5714 = vxpose.xlu0.b32.cont [7/16] %v5522, 128
      %5715 = vxpose.xlu0.b32.cont [8/16] %v5523, 128
      %5716 = vxpose.xlu0.b32.cont [9/16] %v5524, 128
      %5717 = vxpose.xlu0.b32.cont [10/16] %v5525, 128
      %5718 = vxpose.xlu0.b32.cont [11/16] %v5526, 128
      %5719 = vxpose.xlu0.b32.cont [12/16] %v5527, 128
      %5720 = vxpose.xlu0.b32.cont [13/16] %v5528, 128
      %5721 = vxpose.xlu0.b32.cont [14/16] %v5529, 128
      %5722 = vxpose.xlu0.b32.cont [15/16] %v5530, 128
      %5723 = vxpose.xlu0.b32.end [16/16] %v5531, 128
      %v5724 = vpop.trf.xlu0
      %v5725 = vpop.trf.xlu0
      %v5726 = vpop.trf.xlu0
      %v5727 = vpop.trf.xlu0
      %v5728 = vpop.trf.xlu0
      %v5729 = vpop.trf.xlu0
      %v5730 = vpop.trf.xlu0
      %v5731 = vpop.trf.xlu0
      %v5732 = vpop.trf.xlu0
      %v5733 = vpop.trf.xlu0
      %v5734 = vpop.trf.xlu0
      %v5735 = vpop.trf.xlu0
      %v5736 = vpop.trf.xlu0
      %v5737 = vpop.trf.xlu0
      %v5738 = vpop.trf.xlu0
      %v5739 = vpop.trf.xlu0
      %5740 = vxpose.xlu0.b32.start [1/16] %v5532, 128
      %5741 = vxpose.xlu0.b32.cont [2/16] %v5533, 128
      %5742 = vxpose.xlu0.b32.cont [3/16] %v5534, 128
      %5743 = vxpose.xlu0.b32.cont [4/16] %v5535, 128
      %5744 = vxpose.xlu0.b32.cont [5/16] %v5536, 128
      %5745 = vxpose.xlu0.b32.cont [6/16] %v5537, 128
      %5746 = vxpose.xlu0.b32.cont [7/16] %v5538, 128
      %5747 = vxpose.xlu0.b32.cont [8/16] %v5539, 128
      %5748 = vxpose.xlu0.b32.cont [9/16] %v5540, 128
      %5749 = vxpose.xlu0.b32.cont [10/16] %v5541, 128
      %5750 = vxpose.xlu0.b32.cont [11/16] %v5542, 128
      %5751 = vxpose.xlu0.b32.cont [12/16] %v5543, 128
      %5752 = vxpose.xlu0.b32.cont [13/16] %v5544, 128
      %5753 = vxpose.xlu0.b32.cont [14/16] %v5545, 128
      %5754 = vxpose.xlu0.b32.cont [15/16] %v5546, 128
      %5755 = vxpose.xlu0.b32.end [16/16] %v5547, 128
      %v5756 = vpop.trf.xlu0
      %v5757 = vpop.trf.xlu0
      %v5758 = vpop.trf.xlu0
      %v5759 = vpop.trf.xlu0
      %v5760 = vpop.trf.xlu0
      %v5761 = vpop.trf.xlu0
      %v5762 = vpop.trf.xlu0
      %v5763 = vpop.trf.xlu0
      %v5764 = vpop.trf.xlu0
      %v5765 = vpop.trf.xlu0
      %v5766 = vpop.trf.xlu0
      %v5767 = vpop.trf.xlu0
      %v5768 = vpop.trf.xlu0
      %v5769 = vpop.trf.xlu0
      %v5770 = vpop.trf.xlu0
      %v5771 = vpop.trf.xlu0
      %5772 = vxpose.xlu0.b32.start [1/16] %v5548, 128
      %5773 = vxpose.xlu0.b32.cont [2/16] %v5549, 128
      %5774 = vxpose.xlu0.b32.cont [3/16] %v5550, 128
      %5775 = vxpose.xlu0.b32.cont [4/16] %v5551, 128
      %5776 = vxpose.xlu0.b32.cont [5/16] %v5552, 128
      %5777 = vxpose.xlu0.b32.cont [6/16] %v5553, 128
      %5778 = vxpose.xlu0.b32.cont [7/16] %v5554, 128
      %5779 = vxpose.xlu0.b32.cont [8/16] %v5555, 128
      %5780 = vxpose.xlu0.b32.cont [9/16] %v5556, 128
      %5781 = vxpose.xlu0.b32.cont [10/16] %v5557, 128
      %5782 = vxpose.xlu0.b32.cont [11/16] %v5558, 128
      %5783 = vxpose.xlu0.b32.cont [12/16] %v5559, 128
      %5784 = vxpose.xlu0.b32.cont [13/16] %v5560, 128
      %5785 = vxpose.xlu0.b32.cont [14/16] %v5561, 128
      %5786 = vxpose.xlu0.b32.cont [15/16] %v5562, 128
      %5787 = vxpose.xlu0.b32.end [16/16] %v5563, 128
      %v5788 = vpop.trf.xlu0
      %v5789 = vpop.trf.xlu0
      %v5790 = vpop.trf.xlu0
      %v5791 = vpop.trf.xlu0
      %v5792 = vpop.trf.xlu0
      %v5793 = vpop.trf.xlu0
      %v5794 = vpop.trf.xlu0
      %v5795 = vpop.trf.xlu0
      %v5796 = vpop.trf.xlu0
      %v5797 = vpop.trf.xlu0
      %v5798 = vpop.trf.xlu0
      %v5799 = vpop.trf.xlu0
      %v5800 = vpop.trf.xlu0
      %v5801 = vpop.trf.xlu0
      %v5802 = vpop.trf.xlu0
      %v5803 = vpop.trf.xlu0
      %5804 = vxpose.xlu0.b32.start [1/16] %v5564, 128
      %5805 = vxpose.xlu0.b32.cont [2/16] %v5565, 128
      %5806 = vxpose.xlu0.b32.cont [3/16] %v5566, 128
      %5807 = vxpose.xlu0.b32.cont [4/16] %v5567, 128
      %5808 = vxpose.xlu0.b32.cont [5/16] %v5568, 128
      %5809 = vxpose.xlu0.b32.cont [6/16] %v5569, 128
      %5810 = vxpose.xlu0.b32.cont [7/16] %v5570, 128
      %5811 = vxpose.xlu0.b32.cont [8/16] %v5571, 128
      %5812 = vxpose.xlu0.b32.cont [9/16] %v5572, 128
      %5813 = vxpose.xlu0.b32.cont [10/16] %v5573, 128
      %5814 = vxpose.xlu0.b32.cont [11/16] %v5574, 128
      %5815 = vxpose.xlu0.b32.cont [12/16] %v5575, 128
      %5816 = vxpose.xlu0.b32.cont [13/16] %v5576, 128
      %5817 = vxpose.xlu0.b32.cont [14/16] %v5577, 128
      %5818 = vxpose.xlu0.b32.cont [15/16] %v5578, 128
      %5819 = vxpose.xlu0.b32.end [16/16] %v5579, 128
      %v5820 = vpop.trf.xlu0
      %v5821 = vpop.trf.xlu0
      %v5822 = vpop.trf.xlu0
      %v5823 = vpop.trf.xlu0
      %v5824 = vpop.trf.xlu0
      %v5825 = vpop.trf.xlu0
      %v5826 = vpop.trf.xlu0
      %v5827 = vpop.trf.xlu0
      %v5828 = vpop.trf.xlu0
      %v5829 = vpop.trf.xlu0
      %v5830 = vpop.trf.xlu0
      %v5831 = vpop.trf.xlu0
      %v5832 = vpop.trf.xlu0
      %v5833 = vpop.trf.xlu0
      %v5834 = vpop.trf.xlu0
      %v5835 = vpop.trf.xlu0
      %5836 = vst [vmem:[%s554] sm:$0xff] %v5596
      %5837 = vst [vmem:[%s554 + $0x8] sm:$0xff] %v5628
      %5838 = vst [vmem:[%s554 + $0x10] sm:$0xff] %v5660
      %5839 = vst [vmem:[%s554 + $0x18] sm:$0xff] %v5692
      %5840 = vst [vmem:[%s554 + $0x20] sm:$0xff] %v5724
      %5841 = vst [vmem:[%s554 + $0x28] sm:$0xff] %v5756
      %5842 = vst [vmem:[%s554 + $0x30] sm:$0xff] %v5788
      %5843 = vst [vmem:[%s554 + $0x38] sm:$0xff] %v5820
      %5844 = vst [vmem:[%s554 + $0x40] sm:$0xff] %v5597
      %5845 = vst [vmem:[%s554 + $0x48] sm:$0xff] %v5629
      %5846 = vst [vmem:[%s554 + $0x50] sm:$0xff] %v5661
      %5847 = vst [vmem:[%s554 + $0x58] sm:$0xff] %v5693
      %5848 = vst [vmem:[%s554 + $0x60] sm:$0xff] %v5725
      %5849 = vst [vmem:[%s554 + $0x68] sm:$0xff] %v5757
      %5850 = vst [vmem:[%s554 + $0x70] sm:$0xff] %v5789
      %5851 = vst [vmem:[%s554 + $0x78] sm:$0xff] %v5821
      %5852 = vst [vmem:[%s554 + $0x80] sm:$0xff] %v5598
      %5853 = vst [vmem:[%s554 + $0x88] sm:$0xff] %v5630
      %5854 = vst [vmem:[%s554 + $0x90] sm:$0xff] %v5662
      %5855 = vst [vmem:[%s554 + $0x98] sm:$0xff] %v5694
      %5856 = vst [vmem:[%s554 + $0xa0] sm:$0xff] %v5726
      %5857 = vst [vmem:[%s554 + $0xa8] sm:$0xff] %v5758
      %5858 = vst [vmem:[%s554 + $0xb0] sm:$0xff] %v5790
      %5859 = vst [vmem:[%s554 + $0xb8] sm:$0xff] %v5822
      %5860 = vst [vmem:[%s554 + $0xc0] sm:$0xff] %v5599
      %5861 = vst [vmem:[%s554 + $0xc8] sm:$0xff] %v5631
      %5862 = vst [vmem:[%s554 + $0xd0] sm:$0xff] %v5663
      %5863 = vst [vmem:[%s554 + $0xd8] sm:$0xff] %v5695
      %5864 = vst [vmem:[%s554 + $0xe0] sm:$0xff] %v5727
      %5865 = vst [vmem:[%s554 + $0xe8] sm:$0xff] %v5759
      %5866 = vst [vmem:[%s554 + $0xf0] sm:$0xff] %v5791
      %5867 = vst [vmem:[%s554 + $0xf8] sm:$0xff] %v5823
      %5868 = vst [vmem:[%s554 + $0x100] sm:$0xff] %v5600
      %5869 = vst [vmem:[%s554 + $0x108] sm:$0xff] %v5632
      %5870 = vst [vmem:[%s554 + $0x110] sm:$0xff] %v5664
      %5871 = vst [vmem:[%s554 + $0x118] sm:$0xff] %v5696
      %5872 = vst [vmem:[%s554 + $0x120] sm:$0xff] %v5728
      %5873 = vst [vmem:[%s554 + $0x128] sm:$0xff] %v5760
      %5874 = vst [vmem:[%s554 + $0x130] sm:$0xff] %v5792
      %5875 = vst [vmem:[%s554 + $0x138] sm:$0xff] %v5824
      %5876 = vst [vmem:[%s554 + $0x140] sm:$0xff] %v5601
      %5877 = vst [vmem:[%s554 + $0x148] sm:$0xff] %v5633
      %5878 = vst [vmem:[%s554 + $0x150] sm:$0xff] %v5665
      %5879 = vst [vmem:[%s554 + $0x158] sm:$0xff] %v5697
      %5880 = vst [vmem:[%s554 + $0x160] sm:$0xff] %v5729
      %5881 = vst [vmem:[%s554 + $0x168] sm:$0xff] %v5761
      %5882 = vst [vmem:[%s554 + $0x170] sm:$0xff] %v5793
      %5883 = vst [vmem:[%s554 + $0x178] sm:$0xff] %v5825
      %5884 = vst [vmem:[%s554 + $0x180] sm:$0xff] %v5602
      %5885 = vst [vmem:[%s554 + $0x188] sm:$0xff] %v5634
      %5886 = vst [vmem:[%s554 + $0x190] sm:$0xff] %v5666
      %5887 = vst [vmem:[%s554 + $0x198] sm:$0xff] %v5698
      %5888 = vst [vmem:[%s554 + $0x1a0] sm:$0xff] %v5730
      %5889 = vst [vmem:[%s554 + $0x1a8] sm:$0xff] %v5762
      %5890 = vst [vmem:[%s554 + $0x1b0] sm:$0xff] %v5794
      %5891 = vst [vmem:[%s554 + $0x1b8] sm:$0xff] %v5826
      %5892 = vst [vmem:[%s554 + $0x1c0] sm:$0xff] %v5603
      %5893 = vst [vmem:[%s554 + $0x1c8] sm:$0xff] %v5635
      %5894 = vst [vmem:[%s554 + $0x1d0] sm:$0xff] %v5667
      %5895 = vst [vmem:[%s554 + $0x1d8] sm:$0xff] %v5699
      %5896 = vst [vmem:[%s554 + $0x1e0] sm:$0xff] %v5731
      %5897 = vst [vmem:[%s554 + $0x1e8] sm:$0xff] %v5763
      %5898 = vst [vmem:[%s554 + $0x1f0] sm:$0xff] %v5795
      %5899 = vst [vmem:[%s554 + $0x1f8] sm:$0xff] %v5827
      %5900 = vst [vmem:[%s554 + $0x200] sm:$0xff] %v5604
      %5901 = vst [vmem:[%s554 + $0x208] sm:$0xff] %v5636
      %5902 = vst [vmem:[%s554 + $0x210] sm:$0xff] %v5668
      %5903 = vst [vmem:[%s554 + $0x218] sm:$0xff] %v5700
      %5904 = vst [vmem:[%s554 + $0x220] sm:$0xff] %v5732
      %5905 = vst [vmem:[%s554 + $0x228] sm:$0xff] %v5764
      %5906 = vst [vmem:[%s554 + $0x230] sm:$0xff] %v5796
      %5907 = vst [vmem:[%s554 + $0x238] sm:$0xff] %v5828
      %5908 = vst [vmem:[%s554 + $0x240] sm:$0xff] %v5605
      %5909 = vst [vmem:[%s554 + $0x248] sm:$0xff] %v5637
      %5910 = vst [vmem:[%s554 + $0x250] sm:$0xff] %v5669
      %5911 = vst [vmem:[%s554 + $0x258] sm:$0xff] %v5701
      %5912 = vst [vmem:[%s554 + $0x260] sm:$0xff] %v5733
      %5913 = vst [vmem:[%s554 + $0x268] sm:$0xff] %v5765
      %5914 = vst [vmem:[%s554 + $0x270] sm:$0xff] %v5797
      %5915 = vst [vmem:[%s554 + $0x278] sm:$0xff] %v5829
      %5916 = vst [vmem:[%s554 + $0x280] sm:$0xff] %v5606
      %5917 = vst [vmem:[%s554 + $0x288] sm:$0xff] %v5638
      %5918 = vst [vmem:[%s554 + $0x290] sm:$0xff] %v5670
      %5919 = vst [vmem:[%s554 + $0x298] sm:$0xff] %v5702
      %5920 = vst [vmem:[%s554 + $0x2a0] sm:$0xff] %v5734
      %5921 = vst [vmem:[%s554 + $0x2a8] sm:$0xff] %v5766
      %5922 = vst [vmem:[%s554 + $0x2b0] sm:$0xff] %v5798
      %5923 = vst [vmem:[%s554 + $0x2b8] sm:$0xff] %v5830
      %5924 = vst [vmem:[%s554 + $0x2c0] sm:$0xff] %v5607
      %5925 = vst [vmem:[%s554 + $0x2c8] sm:$0xff] %v5639
      %5926 = vst [vmem:[%s554 + $0x2d0] sm:$0xff] %v5671
      %5927 = vst [vmem:[%s554 + $0x2d8] sm:$0xff] %v5703
      %5928 = vst [vmem:[%s554 + $0x2e0] sm:$0xff] %v5735
      %5929 = vst [vmem:[%s554 + $0x2e8] sm:$0xff] %v5767
      %5930 = vst [vmem:[%s554 + $0x2f0] sm:$0xff] %v5799
      %5931 = vst [vmem:[%s554 + $0x2f8] sm:$0xff] %v5831
      %5932 = vst [vmem:[%s554 + $0x300] sm:$0xff] %v5608
      %5933 = vst [vmem:[%s554 + $0x308] sm:$0xff] %v5640
      %5934 = vst [vmem:[%s554 + $0x310] sm:$0xff] %v5672
      %5935 = vst [vmem:[%s554 + $0x318] sm:$0xff] %v5704
      %5936 = vst [vmem:[%s554 + $0x320] sm:$0xff] %v5736
      %5937 = vst [vmem:[%s554 + $0x328] sm:$0xff] %v5768
      %5938 = vst [vmem:[%s554 + $0x330] sm:$0xff] %v5800
      %5939 = vst [vmem:[%s554 + $0x338] sm:$0xff] %v5832
      %5940 = vst [vmem:[%s554 + $0x340] sm:$0xff] %v5609
      %5941 = vst [vmem:[%s554 + $0x348] sm:$0xff] %v5641
      %5942 = vst [vmem:[%s554 + $0x350] sm:$0xff] %v5673
      %5943 = vst [vmem:[%s554 + $0x358] sm:$0xff] %v5705
      %5944 = vst [vmem:[%s554 + $0x360] sm:$0xff] %v5737
      %5945 = vst [vmem:[%s554 + $0x368] sm:$0xff] %v5769
      %5946 = vst [vmem:[%s554 + $0x370] sm:$0xff] %v5801
      %5947 = vst [vmem:[%s554 + $0x378] sm:$0xff] %v5833
      %5948 = vst [vmem:[%s554 + $0x380] sm:$0xff] %v5610
      %5949 = vst [vmem:[%s554 + $0x388] sm:$0xff] %v5642
      %5950 = vst [vmem:[%s554 + $0x390] sm:$0xff] %v5674
      %5951 = vst [vmem:[%s554 + $0x398] sm:$0xff] %v5706
      %5952 = vst [vmem:[%s554 + $0x3a0] sm:$0xff] %v5738
      %5953 = vst [vmem:[%s554 + $0x3a8] sm:$0xff] %v5770
      %5954 = vst [vmem:[%s554 + $0x3b0] sm:$0xff] %v5802
      %5955 = vst [vmem:[%s554 + $0x3b8] sm:$0xff] %v5834
      %5956 = vst [vmem:[%s554 + $0x3c0] sm:$0xff] %v5611
      %5957 = vst [vmem:[%s554 + $0x3c8] sm:$0xff] %v5643
      %5958 = vst [vmem:[%s554 + $0x3d0] sm:$0xff] %v5675
      %5959 = vst [vmem:[%s554 + $0x3d8] sm:$0xff] %v5707
      %5960 = vst [vmem:[%s554 + $0x3e0] sm:$0xff] %v5739
      %5961 = vst [vmem:[%s554 + $0x3e8] sm:$0xff] %v5771
      %5962 = vst [vmem:[%s554 + $0x3f0] sm:$0xff] %v5803
      %5963 = vst [vmem:[%s554 + $0x3f8] sm:$0xff] %v5835
      %p5964 = scmp.lt.s32.totalorder %s26, 1
      %s5965 = scalar_select %p5964, %s26, 1
      %s5966 = smul.addr %s5965, 128
      %s5967 = smul.addr %s5966, 8
      %s5968 = scalar_lea.vmem %s15, %s5967
      // Predicated region
      $region81: #{_fpn_forward.1} parent=79 // pred_check
        %p5969 = pneg %p379
      $region82: #{_fpn_forward.1} parent=79 // pred_check_branch
        %5971 = sbr.rel (%p5969) target = $region84
      $region83: #{_fpn_forward.1} parent=79 // pred_region
        _
      $region84: #{_fpn_forward.1} parent=79 // pred_fallthru
        _
    $region80: #{_fpn_forward.1} parent=5 // pred_fallthru
      _
    %p5972 = scmp.le.s32.totalorder 2, %s21
    // Predicated region
    $region85: #{_fpn_forward.1} parent=5 // pred_check
      %p5973 = pneg %p5972
    $region86: #{_fpn_forward.1} parent=5 // pred_check_branch
      %5975 = sbr.rel (%p5973) target = $region88
    $region87: #{_fpn_forward.1} parent=5 // pred_region
      %s5976 = ssub.s32 %s21, 2
      // Predicated region
      $region89: #{_fpn_forward.1} parent=87 // pred_check
        %p5977 = pneg %p385
      $region90: #{_fpn_forward.1} parent=87 // pred_check_branch
        %5979 = sbr.rel (%p5977) target = $region92
      $region91: #{_fpn_forward.1} parent=87 // pred_region
        %p5980 = scmp.lt.s32.totalorder %s27, 1
        %s5981 = scalar_select %p5980, %s27, 1
        %s5982 = smul.addr %s5981, 128
        %s5983 = smul.addr %s5982, 8
        %s5984 = scalar_lea.vmem %s15, %s5983
      $region92: #{_fpn_forward.1} parent=87 // pred_fallthru
        _
    $region88: #{_fpn_forward.1} parent=5 // pred_fallthru
      _
  $region6: #{_fpn_forward.1} parent=0 // loop_footer
    %s25 = sadd.s32 1, %s21
  $region7: #{_fpn_forward.1} parent=0 // loop_footer_branch
    %20 = sbr.rel target = $region3
  $region8: #{_fpn_forward.1} parent=0 // loop_exit
    _

</llo_original>
